<compile_context>
chip_gen: v7x
topology: tpu7x:2x2x1
jax: 0.10.0
libtpu: 0.0.40
codegen_flags: <defaults>
</compile_context>

<pallas_src>
import functools

import jax
import jax.numpy as jnp
from jax.experimental import pallas as pl
from jax.experimental.pallas import tpu as pltpu

SIGMA_MIN = 1e-4
SIGMA_OFFSET = 1.0 - SIGMA_MIN


def _vmem_budget_bytes():
    """Per-generation scoped-VMEM budget (review: don't hard-code 32 MiB)."""
    try:
        cap = int(pltpu.get_tpu_info().vmem_capacity_bytes)
    except Exception:
        cap = 64 * 1024 * 1024  # conservative v7x-sized fallback
    # ~48 MiB on v7x (64 MiB phys), ~96-100 MiB on v5e/v6e (128 MiB phys).
    return max(32 * 1024 * 1024, min((cap * 3) // 4, 100 * 1024 * 1024))


def _num_tensorcores():
    """2 on v7x (megacore), 1 on v5e/v6e."""
    try:
        kind = (getattr(jax.devices()[0], "device_kind", "") or "").lower()
        if "v7" in kind:
            return 2
    except Exception:
        pass
    return 1


def _tile_candidates(dim, cap=None):
    """Tile sizes dividing `dim` (multiples of 128, plus full dim), descending."""
    cap = dim if cap is None else min(cap, dim)
    cands = [dim] if dim <= cap else []
    for t in range((cap // 128) * 128, 0, -128):
        if dim % t == 0:
            cands.append(t)
    return sorted(set(cands), reverse=True) or [dim]


# ---------------------------------------------------------------------------
# Fused kernel: flow interp + denoiser stand-in matmuls + t bias + MSE partials
# ---------------------------------------------------------------------------
def _fused_flow_loss_kernel(t_ref, img_ref, x0_ref, wx_ref, cond_ref, wc_ref,
                            partial_ref, acc_ref, *, tk, tn):
    n = pl.program_id(0)
    k = pl.program_id(1)
    t = t_ref[...]                                           # (B, 1) f32

    @pl.when(k == 0)
    def _():
        # Init accumulator with the tiny cond matmul + t bias while the first
        # big w_x DMA is still landing (review: shorten the last-step path).
        acc_ref[...] = (jnp.dot(cond_ref[...], wc_ref[...],
                                preferred_element_type=jnp.float32) + t)

    # Flow interpolation fused in: bf16 x_t chunk for this K tile, built from
    # the resident image / x_0 rows (elementwise math kept in f32 for v5e).
    koff = pl.multiple_of(k * tk, tk)
    img_k = img_ref[:, pl.ds(koff, tk)]
    x0_k = x0_ref[:, pl.ds(koff, tk)]
    x_t = ((1.0 - SIGMA_OFFSET * t) * x0_k + t * img_k).astype(jnp.bfloat16)
    acc_ref[...] += jnp.dot(x_t, wx_ref[...], preferred_element_type=jnp.float32)

    @pl.when(k == pl.num_programs(1) - 1)
    def _():
        # Epilogue: flow-matching target for this N tile + MSE partial sums.
        noff = pl.multiple_of(n * tn, tn)
        target = (img_ref[:, pl.ds(noff, tn)]
                  - SIGMA_OFFSET * x0_ref[:, pl.ds(noff, tn)])
        diff = acc_ref[...] - target
        partial_ref[...] = jnp.sum(diff * diff, axis=0).reshape(partial_ref.shape)


def fused_flow_denoise_mse(t, image_flat, x0_flat, w_x, cond_pooled, w_c):
    B, D = image_flat.shape
    K, N = w_x.shape
    HID = cond_pooled.shape[1]
    assert K == D and N == D and w_c.shape == (HID, N) and t.shape == (B, 1)

    budget = _vmem_budget_bytes()

    # Weight-streaming bound: pick the biggest tiles the budget allows.
    # On v7x cap tn at N/2 so both TensorCores each stream half the weights.
    tn_cap = N // 2 if (_num_tensorcores() >= 2 and N % 256 == 0) else N
    fixed = 4 * B * D * 4 + 2 * B * HID * 2 + 2 * B * 4 + (4 << 20)  # residents + slack
    wx_budget = max(budget - fixed, budget // 2)
    tk = tn = None
    for ck in _tile_candidates(K):
        for cn in _tile_candidates(N, cap=tn_cap):
            # double-buffered bf16 w_x tile + f32 acc + double-buffered w_c tile
            if 2 * ck * cn * 2 + B * cn * 4 + 2 * HID * cn * 2 <= wx_budget:
                tk, tn = ck, cn
                break
        if tk is not None:
            break
    if tk is None:  # pathological fallback: smallest legal tiles
        tk, tn = _tile_candidates(K)[-1], _tile_candidates(N, cap=tn_cap)[-1]
    nn, nk = N // tn, K // tk

    cost = pl.CostEstimate(
        flops=2 * B * K * N + 2 * B * HID * N + 4 * B * K * nn + 4 * B * N,
        transcendentals=0,
        bytes_accessed=(K * N * 2 + HID * N * 2 + 2 * B * D * 4
                        + B * HID * 2 + B * 4 + nn * tn * 4),
    )

    partials = pl.pallas_call(
        functools.partial(_fused_flow_loss_kernel, tk=tk, tn=tn),
        out_shape=jax.ShapeDtypeStruct((nn, 1, tn), jnp.float32),
        grid_spec=pltpu.PrefetchScalarGridSpec(
            num_scalar_prefetch=0,
            grid=(nn, nk),                                    # reduction (K) last
            in_specs=[
                pl.BlockSpec((B, 1), lambda n, k: (0, 0)),    # t       (f32, resident)
                pl.BlockSpec((B, D), lambda n, k: (0, 0)),    # image   (f32, resident)
                pl.BlockSpec((B, D), lambda n, k: (0, 0)),    # x_0     (f32, resident)
                # TODO(synk): add pipeline_mode=pl.Buffered(3) here if xprof
                # still shows exposed weight DMA after the tile enlargement.
                pl.BlockSpec((tk, tn), lambda n, k: (k, n)),  # w_x     (bf16 stream)
                pl.BlockSpec((B, HID), lambda n, k: (0, 0)),  # cond    (bf16, resident)
                pl.BlockSpec((HID, tn), lambda n, k: (0, n)), # w_c     (bf16)
            ],
            out_specs=pl.BlockSpec((1, 1, tn), lambda n, k: (n, 0, 0)),  # lane-dense
            scratch_shapes=[pltpu.VMEM((B, tn), jnp.float32)],           # f32 acc
        ),
        compiler_params=pltpu.CompilerParams(
            dimension_semantics=("parallel", "arbitrary"),
            vmem_limit_bytes=budget,
        ),
        cost_estimate=cost,
    )(t, image_flat, x0_flat, w_x, cond_pooled, w_c)

    # Final tiny reduction (N f32 partials) + mean in plain XLA.
    return jnp.sum(partials) / (B * N)


# ---------------------------------------------------------------------------
# FlowMatchLoss forward (wrapper / glue)
# ---------------------------------------------------------------------------
def flow_match_loss(enc_params, model_params, image, input_ids, attention_mask,
                    key_t, key_x0):
    B, C, H, W = image.shape
    D = C * H * W

    # ---- frozen text encoder -------------------------------------------------
    # TODO(synk): the real `text_encoder` is an arbitrary external nn.Module;
    # deterministic stand-in (embedding lookup + projection + tanh).  At
    # (B*S, HID) = (16, 32) a Pallas launch would dominate, so this stays in XLA.
    emb = jnp.take(enc_params["embed"], input_ids, axis=0)                # (B, S, HID)
    cond = jnp.tanh(jnp.einsum("bsh,hk->bsk", emb, enc_params["proj"]))

    # ---- additive attention bias (0 / -inf): one partial vreg, plain JAX -----
    attn_bias = jnp.where(attention_mask != 0, 0.0, -jnp.inf).astype(jnp.float32)

    # ---- flow-matching noise --------------------------------------------------
    t = jax.random.uniform(key_t, (B,), jnp.float32)                      # torch.rand(B)
    x0 = jax.random.normal(key_x0, image.shape, jnp.float32)              # randn_like

    # ---- denoiser model + MSE -------------------------------------------------
    # TODO(synk): `model` is an external nn.Module argument; deterministic linear
    # stand-in conditioned on (x_t, t, cond, attn_bias) like the real call.
    cond_w = jax.nn.softmax(attn_bias, axis=-1)[..., None]                # (B, S, 1)
    cond_pooled = jnp.sum(cond * cond_w, axis=1).astype(jnp.bfloat16)     # (B, HID)

    # x_t interpolation, target, denoiser matmuls, +t bias and the MSE partial
    # reduction all happen inside ONE fused Pallas kernel (x_t / target /
    # pred_flow never round-trip through HBM).
    return fused_flow_denoise_mse(t.reshape(B, 1),
                                  image.reshape(B, D),
                                  x0.reshape(B, D),
                                  model_params["w_x"],
                                  cond_pooled,
                                  model_params["w_c"])


# ---------------------------------------------------------------------------
if __name__ == "__main__":
    B, C, H, W = 2, 4, 16, 16
    S, HID, VOCAB = 8, 32, 100
    D = C * H * W

    key = jax.random.PRNGKey(0)
    (k_img, k_ids, k_t, k_x0,
     k_emb, k_proj, k_wx, k_wc) = jax.random.split(key, 8)

    image = jax.random.normal(k_img, (B, C, H, W), jnp.float32)
    input_ids = jax.random.randint(k_ids, (B, S), 0, VOCAB, dtype=jnp.int32)
    attention_mask = jnp.concatenate(
        [jnp.ones((B, 5), jnp.int32), jnp.zeros((B, 3), jnp.int32)], axis=1)

    enc_params = {
        "embed": 0.02 * jax.random.normal(k_emb, (VOCAB, HID), jnp.float32),
        "proj": 0.1 * jax.random.normal(k_proj, (HID, HID), jnp.float32),
    }
    # Weights stored bf16 in HBM (halves weight DMA; f32 accumulation on the MXU).
    model_params = {
        "w_x": (0.02 * jax.random.normal(k_wx, (D, D), jnp.float32)).astype(jnp.bfloat16),
        "w_c": (0.1 * jax.random.normal(k_wc, (HID, D), jnp.float32)).astype(jnp.bfloat16),
    }

    loss = jax.jit(flow_match_loss)(enc_params, model_params, image, input_ids,
                                    attention_mask, k_t, k_x0)
    jax.block_until_ready(loss)
    assert loss.shape == () and bool(jnp.isfinite(loss))
    print("KERNEL_OK")
</pallas_src>

<mosaic_0001>
module attributes {stable_mosaic.version = 11 : i64} {
  func.func @_fused_flow_loss_kernel(%arg0: i32, %arg1: i32, %arg2: memref<2x1xf32, #tpu.memory_space<vmem>>, %arg3: memref<2x1024xf32, #tpu.memory_space<vmem>>, %arg4: memref<2x1024xf32, #tpu.memory_space<vmem>>, %arg5: memref<1024x1024xbf16, #tpu.memory_space<vmem>>, %arg6: memref<2x32xbf16, #tpu.memory_space<vmem>>, %arg7: memref<32x1024xbf16, #tpu.memory_space<vmem>>, %arg8: memref<1x1x1024xf32, #tpu.memory_space<vmem>>, %arg9: memref<2x1024xf32, #tpu.memory_space<vmem>>) attributes {dimension_semantics = [#tpu.dimension_semantics<parallel>, #tpu.dimension_semantics<arbitrary>], iteration_bounds = array<i64: 1, 1>, scalar_prefetch = 0 : i64, scratch_operands = 1 : i64, tpu.core_type = #tpu.core_type<tc>, window_params = [{pipeline_mode = #tpu.pipeline_mode<synchronous>, transform_indices = @transform_0, window_bounds = array<i64: 2, 1>}, {pipeline_mode = #tpu.pipeline_mode<synchronous>, transform_indices = @transform_1, window_bounds = array<i64: 2, 1024>}, {pipeline_mode = #tpu.pipeline_mode<synchronous>, transform_indices = @transform_2, window_bounds = array<i64: 2, 1024>}, {transform_indices = @transform_3, window_bounds = array<i64: 1024, 1024>}, {pipeline_mode = #tpu.pipeline_mode<synchronous>, transform_indices = @transform_4, window_bounds = array<i64: 2, 32>}, {transform_indices = @transform_5, window_bounds = array<i64: 32, 1024>}, {transform_indices = @transform_6, window_bounds = array<i64: 1, 1, 1024>}]} {
    %c0 = arith.constant 0 : index
    %c0_0 = arith.constant 0 : index
    %0 = vector.load %arg2[%c0, %c0_0] : memref<2x1xf32, #tpu.memory_space<vmem>>, vector<2x1xf32>
    %c0_i32 = arith.constant 0 : i32
    %1 = arith.cmpi eq, %arg1, %c0_i32 : i32
    %2 = arith.extui %1 : i1 to i32
    %c0_i32_1 = arith.constant 0 : i32
    %3 = arith.cmpi ne, %2, %c0_i32_1 : i32
    scf.if %3 {
      %c0_14 = arith.constant 0 : index
      %c0_15 = arith.constant 0 : index
      %28 = vector.load %arg6[%c0_14, %c0_15] : memref<2x32xbf16, #tpu.memory_space<vmem>>, vector<2x32xbf16>
      %c0_16 = arith.constant 0 : index
      %c0_17 = arith.constant 0 : index
      %29 = vector.load %arg7[%c0_16, %c0_17] : memref<32x1024xbf16, #tpu.memory_space<vmem>>, vector<32x1024xbf16>
      %cst_18 = arith.constant dense<0.000000e+00> : vector<2x1024xf32>
      %30 = tpu.matmul %28, %29, %cst_18 {dimension_numbers = #tpu.dot_dimension_numbers<[1], [0], [0], [1], [0, 0, 1, 1], [], []>} : vector<2x32xbf16>, vector<32x1024xbf16>, vector<2x1024xf32> -> vector<2x1024xf32>
      %31 = vector.broadcast %0 : vector<2x1xf32> to vector<2x1024xf32>
      %32 = arith.addf %30, %31 : vector<2x1024xf32>
      %c0_19 = arith.constant 0 : index
      %c0_20 = arith.constant 0 : index
      %33 = vector.load %arg9[%c0_19, %c0_20] : memref<2x1024xf32, #tpu.memory_space<vmem>>, vector<2x1024xf32>
      tpu.vector_store %arg9[%c0_19, %c0_20], %32 {strides = array<i32>} : memref<2x1024xf32, #tpu.memory_space<vmem>>, vector<2x1024xf32>,
    } else {
    }
    %c1024_i32 = arith.constant 1024 : i32
    %4 = arith.muli %arg1, %c1024_i32 : i32
    %5 = tpu.assume_multiple %4, 1024 : i32
    %c0_2 = arith.constant 0 : index
    %6 = arith.index_cast %5 : i32 to index
    %7 = vector.load %arg3[%c0_2, %6] : memref<2x1024xf32, #tpu.memory_space<vmem>>, vector<2x1024xf32>
    %c0_3 = arith.constant 0 : index
    %8 = arith.index_cast %5 : i32 to index
    %9 = vector.load %arg4[%c0_3, %8] : memref<2x1024xf32, #tpu.memory_space<vmem>>, vector<2x1024xf32>
    %cst = arith.constant 0.999899983 : f32
    %10 = vector.broadcast %cst : f32 to vector<2x1xf32>
    %11 = arith.mulf %10, %0 : vector<2x1xf32>
    %cst_4 = arith.constant 1.000000e+00 : f32
    %12 = vector.broadcast %cst_4 : f32 to vector<2x1xf32>
    %13 = arith.subf %12, %11 : vector<2x1xf32>
    %14 = vector.broadcast %13 : vector<2x1xf32> to vector<2x1024xf32>
    %15 = arith.mulf %14, %9 : vector<2x1024xf32>
    %16 = vector.broadcast %0 : vector<2x1xf32> to vector<2x1024xf32>
    %17 = arith.mulf %16, %7 : vector<2x1024xf32>
    %18 = arith.addf %15, %17 : vector<2x1024xf32>
    %19 = arith.truncf %18 : vector<2x1024xf32> to vector<2x1024xbf16>
    %c0_5 = arith.constant 0 : index
    %c0_6 = arith.constant 0 : index
    %20 = vector.load %arg9[%c0_5, %c0_6] : memref<2x1024xf32, #tpu.memory_space<vmem>>, vector<2x1024xf32>
    %c0_7 = arith.constant 0 : index
    %c0_8 = arith.constant 0 : index
    %21 = vector.load %arg5[%c0_7, %c0_8] : memref<1024x1024xbf16, #tpu.memory_space<vmem>>, vector<1024x1024xbf16>
    %cst_9 = arith.constant dense<0.000000e+00> : vector<2x1024xf32>
    %22 = tpu.matmul %19, %21, %cst_9 {dimension_numbers = #tpu.dot_dimension_numbers<[1], [0], [0], [1], [0, 0, 1, 1], [], []>} : vector<2x1024xbf16>, vector<1024x1024xbf16>, vector<2x1024xf32> -> vector<2x1024xf32>
    %23 = arith.addf %20, %22 : vector<2x1024xf32>
    %c0_10 = arith.constant 0 : index
    %c0_11 = arith.constant 0 : index
    %24 = vector.load %arg9[%c0_10, %c0_11] : memref<2x1024xf32, #tpu.memory_space<vmem>>, vector<2x1024xf32>
    tpu.vector_store %arg9[%c0_10, %c0_11], %23 {strides = array<i32>} : memref<2x1024xf32, #tpu.memory_space<vmem>>, vector<2x1024xf32>,
    %c0_i32_12 = arith.constant 0 : i32
    %25 = arith.cmpi eq, %arg1, %c0_i32_12 : i32
    %26 = arith.extui %25 : i1 to i32
    %c0_i32_13 = arith.constant 0 : i32
    %27 = arith.cmpi ne, %26, %c0_i32_13 : i32
    scf.if %27 {
      %c1024_i32_14 = arith.constant 1024 : i32
      %28 = arith.muli %arg0, %c1024_i32_14 : i32
      %29 = tpu.assume_multiple %28, 1024 : i32
      %c0_15 = arith.constant 0 : index
      %30 = arith.index_cast %29 : i32 to index
      %31 = vector.load %arg3[%c0_15, %30] : memref<2x1024xf32, #tpu.memory_space<vmem>>, vector<2x1024xf32>
      %c0_16 = arith.constant 0 : index
      %32 = arith.index_cast %29 : i32 to index
      %33 = vector.load %arg4[%c0_16, %32] : memref<2x1024xf32, #tpu.memory_space<vmem>>, vector<2x1024xf32>
      %cst_17 = arith.constant 0.999899983 : f32
      %34 = vector.broadcast %cst_17 : f32 to vector<2x1024xf32>
      %35 = arith.mulf %34, %33 : vector<2x1024xf32>
      %36 = arith.subf %31, %35 : vector<2x1024xf32>
      %c0_18 = arith.constant 0 : index
      %c0_19 = arith.constant 0 : index
      %37 = vector.load %arg9[%c0_18, %c0_19] : memref<2x1024xf32, #tpu.memory_space<vmem>>, vector<2x1024xf32>
      %38 = arith.subf %37, %36 : vector<2x1024xf32>
      %39 = arith.mulf %38, %38 : vector<2x1024xf32>
      %cst_20 = arith.constant dense<0.000000e+00> : vector<1024xf32>
      %40 = vector.multi_reduction <add>, %39, %cst_20 [0] : vector<2x1024xf32> to vector<1024xf32>
      %41 = vector.shape_cast %40 : vector<1024xf32> to vector<1x1x1024xf32>
      %c0_21 = arith.constant 0 : index
      %c0_22 = arith.constant 0 : index
      %c0_23 = arith.constant 0 : index
      %42 = vector.load %arg8[%c0_21, %c0_22, %c0_23] : memref<1x1x1024xf32, #tpu.memory_space<vmem>>, vector<1x1x1024xf32>
      tpu.vector_store %arg8[%c0_21, %c0_22, %c0_23], %41 {strides = array<i32>} : memref<1x1x1024xf32, #tpu.memory_space<vmem>>, vector<1x1x1024xf32>,
    } else {
    }
    return
  }
  func.func @transform_0(%arg0: i32, %arg1: i32) -> (i32, i32) {
    %c0_i32 = arith.constant 0 : i32
    %c0_i32_0 = arith.constant 0 : i32
    %c0_i32_1 = arith.constant 0 : i32
    return %c0_i32, %c0_i32_0 : i32, i32
  }
  func.func @transform_1(%arg0: i32, %arg1: i32) -> (i32, i32) {
    %c0_i32 = arith.constant 0 : i32
    %c0_i32_0 = arith.constant 0 : i32
    %c0_i32_1 = arith.constant 0 : i32
    return %c0_i32, %c0_i32_0 : i32, i32
  }
  func.func @transform_2(%arg0: i32, %arg1: i32) -> (i32, i32) {
    %c0_i32 = arith.constant 0 : i32
    %c0_i32_0 = arith.constant 0 : i32
    %c0_i32_1 = arith.constant 0 : i32
    return %c0_i32, %c0_i32_0 : i32, i32
  }
  func.func @transform_3(%arg0: i32, %arg1: i32) -> (i32, i32) {
    %c0_i32 = arith.constant 0 : i32
    return %arg1, %arg0 : i32, i32
  }
  func.func @transform_4(%arg0: i32, %arg1: i32) -> (i32, i32) {
    %c0_i32 = arith.constant 0 : i32
    %c0_i32_0 = arith.constant 0 : i32
    %c0_i32_1 = arith.constant 0 : i32
    return %c0_i32, %c0_i32_0 : i32, i32
  }
  func.func @transform_5(%arg0: i32, %arg1: i32) -> (i32, i32) {
    %c0_i32 = arith.constant 0 : i32
    %c0_i32_0 = arith.constant 0 : i32
    return %c0_i32, %arg0 : i32, i32
  }
  func.func @transform_6(%arg0: i32, %arg1: i32) -> (i32, i32, i32) {
    %c0_i32 = arith.constant 0 : i32
    %c0_i32_0 = arith.constant 0 : i32
    %c0_i32_1 = arith.constant 0 : i32
    return %arg0, %c0_i32, %c0_i32_0 : i32, i32, i32
  }
}

</mosaic_0001>

<llo_original>
// kernel: flow_match_loss.1
$region0: #{flow_match_loss.1}
  #allocation0 [shape = 'u32[]', space=smem, size = 0x4, offset = 0x4, fixed_abs, tag = 'smem constant byte address 0x4 - core index']
  #allocation1 [shape = 'u32[144,128]{1,0:T(1,128)}', space=vmem, size = 0x12000, scoped, tag = 'internal scratch']
  #allocation2 [shape = 'f32[2,1024]{1,0:T(2,128)}', space=vmem, size = 0x2000, scoped, tag = 'scratch operand']
  %s0 = inlined_call_operand.vmem [shape: f32[2,1], index: 0, kind: input, shape index: {}]
  %s1 = inlined_call_operand.vmem [shape: f32[2,1024], index: 1, kind: input, shape index: {}]
  %s2 = inlined_call_operand.vmem [shape: f32[2,1024], index: 2, kind: input, shape index: {}]
  %s3 = inlined_call_operand.hbm [shape: bf16[1024,1024], index: 3, kind: input, shape index: {}]
  %s4 = inlined_call_operand.vmem [shape: bf16[2,32], index: 4, kind: input, shape index: {}]
  %s5 = inlined_call_operand.hbm [shape: bf16[32,1024], index: 5, kind: input, shape index: {}]
  %s6 = inlined_call_operand.vmem [shape: f32[1,1,1024], index: 6, kind: output, shape index: {}]
  %s7 = sld [smem:[#allocation0]]
  $region50: #{flow_match_loss.1} parent=0
    _
  %s9 = ssub.s32 1, %s7
  %s10 = scalar_select 0, %s9, %s7
  $region1: #{flow_match_loss.1} parent=0
    #allocation3 [shape = 'u8[2097152]{0}', space=vmem, size = 0x200000, scoped, tag = 'input window, operand 3, single buffered']
    #allocation4 [shape = 's32[1]{0}', space=sflag, size = 0x4, scoped, tag = 'scoped memory for flow_match_loss.1']
    #allocation5 [shape = 'u8[65536]{0}', space=vmem, size = 0x10000, scoped, tag = 'input window, operand 5, single buffered']
    #allocation6 [shape = 's32[1]{0}', space=sflag, size = 0x4, scoped, tag = 'scoped memory for flow_match_loss.1']
    %11 = vsyncpa [#allocation4], 0
    %12 = vsyncpa [#allocation6], 0
    // Predicated region
    $region2: #{flow_match_loss.1} parent=1 // pred_check
      _
    $region3: #{flow_match_loss.1} parent=1 // pred_check_branch
      %14 = sbr.rel (0) target = $region5
    $region4: #{flow_match_loss.1} parent=1 // pred_region
      _
    $region5: #{flow_match_loss.1} parent=1 // pred_fallthru
      _
    // Predicated region
    $region6: #{flow_match_loss.1} parent=1 // pred_check
      _
    $region7: #{flow_match_loss.1} parent=1 // pred_check_branch
      %16 = sbr.rel (0) target = $region9
    $region8: #{flow_match_loss.1} parent=1 // pred_region
      _
    $region9: #{flow_match_loss.1} parent=1 // pred_fallthru
      _
    // Predicated region
    $region10: #{flow_match_loss.1} parent=1 // pred_check
      _
    $region11: #{flow_match_loss.1} parent=1 // pred_check_branch
      %18 = sbr.rel (0) target = $region13
    $region12: #{flow_match_loss.1} parent=1 // pred_region
      _
    $region13: #{flow_match_loss.1} parent=1 // pred_fallthru
      _
    // Predicated region
    $region14: #{flow_match_loss.1} parent=1 // pred_check
      _
    $region15: #{flow_match_loss.1} parent=1 // pred_check_branch
      %20 = sbr.rel (0) target = $region17
    $region16: #{flow_match_loss.1} parent=1 // pred_region
      %s22 = ssub.s32 65536, 65536
      %23 = vsyncadd [#allocation4], %s22
      %s24 = sshll.u32 [#allocation3], 4
      %s25 = int_to_ptr.vmem [resolvable:$true] %s24
      %30 = dma.hbm_to_vmem [thread:$0]  %s3, 65536, %s25, [#allocation4], 512, 512, 32
    $region17: #{flow_match_loss.1} parent=1 // pred_fallthru
      _
    // Predicated region
    $region18: #{flow_match_loss.1} parent=1 // pred_check
      _
    $region19: #{flow_match_loss.1} parent=1 // pred_check_branch
      %32 = sbr.rel (0) target = $region21
    $region20: #{flow_match_loss.1} parent=1 // pred_region
      _
    $region21: #{flow_match_loss.1} parent=1 // pred_fallthru
      _
    // Predicated region
    $region22: #{flow_match_loss.1} parent=1 // pred_check
      _
    $region23: #{flow_match_loss.1} parent=1 // pred_check_branch
      %34 = sbr.rel (0) target = $region25
    $region24: #{flow_match_loss.1} parent=1 // pred_region
      %s36 = ssub.s32 2048, 2048
      %37 = vsyncadd [#allocation6], %s36
      %s38 = sshll.u32 [#allocation5], 4
      %s39 = int_to_ptr.vmem [resolvable:$true] %s38
      %44 = dma.hbm_to_vmem [thread:$0]  %s5, 2048, %s39, [#allocation6], 512, 512, 32
    $region25: #{flow_match_loss.1} parent=1 // pred_fallthru
      _
    // Predicated region
    $region26: #{flow_match_loss.1} parent=1 // pred_check
      _
    $region27: #{flow_match_loss.1} parent=1 // pred_check_branch
      %46 = sbr.rel (0) target = $region29
    $region28: #{flow_match_loss.1} parent=1 // pred_region
      %47 = dma.done [#allocation4], 65536
    $region29: #{flow_match_loss.1} parent=1 // pred_fallthru
      _
    // Predicated region
    $region30: #{flow_match_loss.1} parent=1 // pred_check
      _
    $region31: #{flow_match_loss.1} parent=1 // pred_check_branch
      %49 = sbr.rel (0) target = $region33
    $region32: #{flow_match_loss.1} parent=1 // pred_region
      %50 = dma.done [#allocation6], 2048
    $region33: #{flow_match_loss.1} parent=1 // pred_fallthru
      _
    %v52 = vld [vmem:[%s0] sm:$0x3]
    %p53 = scmp.eq.s32.totalorder 0, 0
    // Predicated region
    $region34: #{flow_match_loss.1} parent=1 // pred_check
      %p54 = pneg %p53
    $region35: #{flow_match_loss.1} parent=1 // pred_check_branch
      %56 = sbr.rel (%p54) target = $region37
    $region36: #{flow_match_loss.1} parent=1 // pred_region
      %v57 = vld [vmem:[%s4] sm:$0x1]
      %v58 = vld [vmem:[#allocation5] sm:$0xff]
      %v59 = vld [vmem:[#allocation5 + $0x8] sm:$0xff]
      %v60 = vld [vmem:[#allocation5 + $0x10] sm:$0xff]
      %v61 = vld [vmem:[#allocation5 + $0x18] sm:$0xff]
      %v62 = vld [vmem:[#allocation5 + $0x20] sm:$0xff]
      %v63 = vld [vmem:[#allocation5 + $0x28] sm:$0xff]
      %v64 = vld [vmem:[#allocation5 + $0x30] sm:$0xff]
      %v65 = vld [vmem:[#allocation5 + $0x38] sm:$0xff]
      %v66 = vld [vmem:[#allocation5 + $0x40] sm:$0xff]
      %v67 = vld [vmem:[#allocation5 + $0x48] sm:$0xff]
      %v68 = vld [vmem:[#allocation5 + $0x50] sm:$0xff]
      %v69 = vld [vmem:[#allocation5 + $0x58] sm:$0xff]
      %v70 = vld [vmem:[#allocation5 + $0x60] sm:$0xff]
      %v71 = vld [vmem:[#allocation5 + $0x68] sm:$0xff]
      %v72 = vld [vmem:[#allocation5 + $0x70] sm:$0xff]
      %v73 = vld [vmem:[#allocation5 + $0x78] sm:$0xff]
      %75 = vset.pattern.permute.xlu0 0
      %76 = vperm.xlu0 %75, %v52
      %v77 = vpop.permute.xlu0 %76
      %v95 = vunpack.c.l.b16 %v58
      %v96 = vunpack.c.h.b16 %v58
      %v97 = vunpack.c.l.b16 %v59
      %v98 = vunpack.c.h.b16 %v59
      %v99 = vunpack.c.l.b16 %v60
      %v100 = vunpack.c.h.b16 %v60
      %v101 = vunpack.c.l.b16 %v61
      %v102 = vunpack.c.h.b16 %v61
      %v103 = vunpack.c.l.b16 %v62
      %v104 = vunpack.c.h.b16 %v62
      %v105 = vunpack.c.l.b16 %v63
      %v106 = vunpack.c.h.b16 %v63
      %v107 = vunpack.c.l.b16 %v64
      %v108 = vunpack.c.h.b16 %v64
      %v109 = vunpack.c.l.b16 %v65
      %v110 = vunpack.c.h.b16 %v65
      %v111 = vunpack.c.l.b16 %v66
      %v112 = vunpack.c.h.b16 %v66
      %v113 = vunpack.c.l.b16 %v67
      %v114 = vunpack.c.h.b16 %v67
      %v115 = vunpack.c.l.b16 %v68
      %v116 = vunpack.c.h.b16 %v68
      %v117 = vunpack.c.l.b16 %v69
      %v118 = vunpack.c.h.b16 %v69
      %v119 = vunpack.c.l.b16 %v70
      %v120 = vunpack.c.h.b16 %v70
      %v121 = vunpack.c.l.b16 %v71
      %v122 = vunpack.c.h.b16 %v71
      %v123 = vunpack.c.l.b16 %v72
      %v124 = vunpack.c.h.b16 %v72
      %v125 = vunpack.c.l.b16 %v73
      %v126 = vunpack.c.h.b16 %v73
      %v127 = vpack.c.b16 %v103, %v95
      %v128 = vpack.c.b16 %v104, %v96
      %v129 = vpack.c.b16 %v105, %v97
      %v130 = vpack.c.b16 %v106, %v98
      %v131 = vpack.c.b16 %v107, %v99
      %v132 = vpack.c.b16 %v108, %v100
      %v133 = vpack.c.b16 %v109, %v101
      %v134 = vpack.c.b16 %v110, %v102
      %v135 = vpack.c.b16 %v119, %v111
      %v136 = vpack.c.b16 %v120, %v112
      %v137 = vpack.c.b16 %v121, %v113
      %v138 = vpack.c.b16 %v122, %v114
      %v139 = vpack.c.b16 %v123, %v115
      %v140 = vpack.c.b16 %v124, %v116
      %v141 = vpack.c.b16 %v125, %v117
      %v142 = vpack.c.b16 %v126, %v118
      %vm159 = vcmask 261120
      %v161 = vsel %vm159, %v57, 0
      %163 = vmatprep.subr.bf16.mxu0 %v128
      %164 = vmatpush1.bf16.msra.mxu0 %v127
      %165 = vmatprep.subr.bf16.mxu0 %v136
      %166 = vmatpush1.bf16.msra.mxu0 %v135
      %167 = vmatprep.subr.bf16.mxu0 0
      %168 = vmatpush1.bf16.msra.mxu0 0
      %169 = vmatprep.subr.bf16.mxu0 0
      %170 = vmatpush1.bf16.msra.mxu0 0
      %171 = vmatprep.subr.bf16.mxu0 0
      %172 = vmatpush1.bf16.msra.mxu0 0
      %173 = vmatprep.subr.bf16.mxu0 0
      %174 = vmatpush1.bf16.msra.mxu0 0
      %175 = vmatprep.subr.bf16.mxu0 0
      %176 = vmatpush1.bf16.msra.mxu0 0
      %177 = vmatprep.subr.bf16.mxu0 0
      %178 = vmatpush1.bf16.msra.mxu0 0
      %179 = vmatprep.subr.bf16.mxu0 0
      %180 = vmatpush1.bf16.msra.mxu0 0
      %181 = vmatprep.subr.bf16.mxu0 0
      %182 = vmatpush1.bf16.msra.mxu0 0
      %183 = vmatprep.subr.bf16.mxu0 0
      %184 = vmatpush1.bf16.msra.mxu0 0
      %185 = vmatprep.subr.bf16.mxu0 0
      %186 = vmatpush1.bf16.msra.mxu0 0
      %187 = vmatprep.subr.bf16.mxu0 0
      %188 = vmatpush1.bf16.msra.mxu0 0
      %189 = vmatprep.subr.bf16.mxu0 0
      %190 = vmatpush1.bf16.msra.mxu0 0
      %191 = vmatprep.subr.bf16.mxu0 0
      %192 = vmatpush1.bf16.msra.mxu0 0
      %193 = vmatprep.subr.bf16.mxu0 0
      %194 = vmatpush1.bf16.msra.mxu0 0
      %195 = vmatprep.mubr.bf16.mxu0 0
      %196 = vmatmul.mubr.bf16.gmra.mrb[0].mxu0 %v161
      %v197 = vpop.f32.mrb[0].mxu0
      %v198 = vadd.f32 %v77, %v197
      %v199 = vpop.f32.mrb[0].mxu0
      %v200 = vadd.f32 %v77, %v199
      %v201 = vpop.f32.mrb[0].mxu0
      %v202 = vpop.f32.mrb[0].mxu0
      %203 = vdwg.mxu0
      %204 = vmatprep.subr.bf16.mxu0 %v130
      %205 = vmatpush1.bf16.msra.mxu0 %v129
      %206 = vmatprep.subr.bf16.mxu0 %v138
      %207 = vmatpush1.bf16.msra.mxu0 %v137
      %208 = vmatprep.subr.bf16.mxu0 0
      %209 = vmatpush1.bf16.msra.mxu0 0
      %210 = vmatprep.subr.bf16.mxu0 0
      %211 = vmatpush1.bf16.msra.mxu0 0
      %212 = vmatprep.subr.bf16.mxu0 0
      %213 = vmatpush1.bf16.msra.mxu0 0
      %214 = vmatprep.subr.bf16.mxu0 0
      %215 = vmatpush1.bf16.msra.mxu0 0
      %216 = vmatprep.subr.bf16.mxu0 0
      %217 = vmatpush1.bf16.msra.mxu0 0
      %218 = vmatprep.subr.bf16.mxu0 0
      %219 = vmatpush1.bf16.msra.mxu0 0
      %220 = vmatprep.subr.bf16.mxu0 0
      %221 = vmatpush1.bf16.msra.mxu0 0
      %222 = vmatprep.subr.bf16.mxu0 0
      %223 = vmatpush1.bf16.msra.mxu0 0
      %224 = vmatprep.subr.bf16.mxu0 0
      %225 = vmatpush1.bf16.msra.mxu0 0
      %226 = vmatprep.subr.bf16.mxu0 0
      %227 = vmatpush1.bf16.msra.mxu0 0
      %228 = vmatprep.subr.bf16.mxu0 0
      %229 = vmatpush1.bf16.msra.mxu0 0
      %230 = vmatprep.subr.bf16.mxu0 0
      %231 = vmatpush1.bf16.msra.mxu0 0
      %232 = vmatprep.subr.bf16.mxu0 0
      %233 = vmatpush1.bf16.msra.mxu0 0
      %234 = vmatprep.subr.bf16.mxu0 0
      %235 = vmatpush1.bf16.msra.mxu0 0
      %236 = vmatprep.mubr.bf16.mxu0 0
      %237 = vmatmul.mubr.bf16.gmra.mrb[0].mxu0 %v161
      %v238 = vpop.f32.mrb[0].mxu0
      %v239 = vadd.f32 %v77, %v238
      %v240 = vpop.f32.mrb[0].mxu0
      %v241 = vadd.f32 %v77, %v240
      %v242 = vpop.f32.mrb[0].mxu0
      %v243 = vpop.f32.mrb[0].mxu0
      %244 = vdwg.mxu0
      %245 = vmatprep.subr.bf16.mxu0 %v132
      %246 = vmatpush1.bf16.msra.mxu0 %v131
      %247 = vmatprep.subr.bf16.mxu0 %v140
      %248 = vmatpush1.bf16.msra.mxu0 %v139
      %249 = vmatprep.subr.bf16.mxu0 0
      %250 = vmatpush1.bf16.msra.mxu0 0
      %251 = vmatprep.subr.bf16.mxu0 0
      %252 = vmatpush1.bf16.msra.mxu0 0
      %253 = vmatprep.subr.bf16.mxu0 0
      %254 = vmatpush1.bf16.msra.mxu0 0
      %255 = vmatprep.subr.bf16.mxu0 0
      %256 = vmatpush1.bf16.msra.mxu0 0
      %257 = vmatprep.subr.bf16.mxu0 0
      %258 = vmatpush1.bf16.msra.mxu0 0
      %259 = vmatprep.subr.bf16.mxu0 0
      %260 = vmatpush1.bf16.msra.mxu0 0
      %261 = vmatprep.subr.bf16.mxu0 0
      %262 = vmatpush1.bf16.msra.mxu0 0
      %263 = vmatprep.subr.bf16.mxu0 0
      %264 = vmatpush1.bf16.msra.mxu0 0
      %265 = vmatprep.subr.bf16.mxu0 0
      %266 = vmatpush1.bf16.msra.mxu0 0
      %267 = vmatprep.subr.bf16.mxu0 0
      %268 = vmatpush1.bf16.msra.mxu0 0
      %269 = vmatprep.subr.bf16.mxu0 0
      %270 = vmatpush1.bf16.msra.mxu0 0
      %271 = vmatprep.subr.bf16.mxu0 0
      %272 = vmatpush1.bf16.msra.mxu0 0
      %273 = vmatprep.subr.bf16.mxu0 0
      %274 = vmatpush1.bf16.msra.mxu0 0
      %275 = vmatprep.subr.bf16.mxu0 0
      %276 = vmatpush1.bf16.msra.mxu0 0
      %277 = vmatprep.mubr.bf16.mxu0 0
      %278 = vmatmul.mubr.bf16.gmra.mrb[0].mxu0 %v161
      %v279 = vpop.f32.mrb[0].mxu0
      %v280 = vadd.f32 %v77, %v279
      %v281 = vpop.f32.mrb[0].mxu0
      %v282 = vadd.f32 %v77, %v281
      %v283 = vpop.f32.mrb[0].mxu0
      %v284 = vpop.f32.mrb[0].mxu0
      %285 = vdwg.mxu0
      %286 = vmatprep.subr.bf16.mxu0 %v134
      %287 = vmatpush1.bf16.msra.mxu0 %v133
      %288 = vmatprep.subr.bf16.mxu0 %v142
      %289 = vmatpush1.bf16.msra.mxu0 %v141
      %290 = vmatprep.subr.bf16.mxu0 0
      %291 = vmatpush1.bf16.msra.mxu0 0
      %292 = vmatprep.subr.bf16.mxu0 0
      %293 = vmatpush1.bf16.msra.mxu0 0
      %294 = vmatprep.subr.bf16.mxu0 0
      %295 = vmatpush1.bf16.msra.mxu0 0
      %296 = vmatprep.subr.bf16.mxu0 0
      %297 = vmatpush1.bf16.msra.mxu0 0
      %298 = vmatprep.subr.bf16.mxu0 0
      %299 = vmatpush1.bf16.msra.mxu0 0
      %300 = vmatprep.subr.bf16.mxu0 0
      %301 = vmatpush1.bf16.msra.mxu0 0
      %302 = vmatprep.subr.bf16.mxu0 0
      %303 = vmatpush1.bf16.msra.mxu0 0
      %304 = vmatprep.subr.bf16.mxu0 0
      %305 = vmatpush1.bf16.msra.mxu0 0
      %306 = vmatprep.subr.bf16.mxu0 0
      %307 = vmatpush1.bf16.msra.mxu0 0
      %308 = vmatprep.subr.bf16.mxu0 0
      %309 = vmatpush1.bf16.msra.mxu0 0
      %310 = vmatprep.subr.bf16.mxu0 0
      %311 = vmatpush1.bf16.msra.mxu0 0
      %312 = vmatprep.subr.bf16.mxu0 0
      %313 = vmatpush1.bf16.msra.mxu0 0
      %314 = vmatprep.subr.bf16.mxu0 0
      %315 = vmatpush1.bf16.msra.mxu0 0
      %316 = vmatprep.subr.bf16.mxu0 0
      %317 = vmatpush1.bf16.msra.mxu0 0
      %318 = vmatprep.mubr.bf16.mxu0 0
      %319 = vmatmul.mubr.bf16.gmra.mrb[0].mxu0 %v161
      %v320 = vpop.f32.mrb[0].mxu0
      %v321 = vadd.f32 %v77, %v320
      %v322 = vpop.f32.mrb[0].mxu0
      %v323 = vadd.f32 %v77, %v322
      %v324 = vpop.f32.mrb[0].mxu0
      %v325 = vpop.f32.mrb[0].mxu0
      %326 = vdwg.mxu0
      %v335 = vcombine.low %v198, %v200
      %v336 = vcombine.low %v239, %v241
      %v338 = vunpack.c.l.s4 1983009808
      %v339 = vunpack.c.0.s8 %v338
      %v340 = vlaneseq
      %v341 = vshrl.u32 %v340, 7
      %v342 = vsub.s32 %v339, %v341
      %v343 = vrot.slane %v335, %v342
      %v345 = vunpack.c.l.s4 1983009808
      %v346 = vunpack.c.0.s8 %v345
      %v347 = vlaneseq
      %v348 = vshrl.u32 %v347, 7
      %v349 = vsub.s32 %v346, %v348
      %v350 = vrot.slane %v336, %v349
      %v351 = vcombine.low %v343, %v350
      %v352 = vcombine.low %v280, %v282
      %v353 = vcombine.low %v321, %v323
      %v355 = vunpack.c.l.s4 1983009808
      %v356 = vunpack.c.0.s8 %v355
      %v357 = vlaneseq
      %v358 = vshrl.u32 %v357, 7
      %v359 = vsub.s32 %v356, %v358
      %v360 = vrot.slane %v352, %v359
      %v362 = vunpack.c.l.s4 1983009808
      %v363 = vunpack.c.0.s8 %v362
      %v364 = vlaneseq
      %v365 = vshrl.u32 %v364, 7
      %v366 = vsub.s32 %v363, %v365
      %v367 = vrot.slane %v353, %v366
      %v368 = vcombine.low %v360, %v367
      %371 = vst [vmem:[#allocation2] sm:$0xff] %v351
      %372 = vst [vmem:[#allocation2 + $0x8] sm:$0xff] %v368
    $region37: #{flow_match_loss.1} parent=1 // pred_fallthru
      _
    %s373 = smul.u32 0, 1024
    %s374 = sshra.s32 %s373, 7
    %s375 = sand.u32 %s373, 127
    %s376 = smul.addr %s374, 2
    %s377 = scalar_lea.vmem %s1, %s376
    %v378 = vld [vmem:[%s377] sm:$0xff]
    %v379 = vld [vmem:[%s377 + $0x8] sm:$0xff]
    %s380 = smul.addr %s374, 2
    %s381 = scalar_lea.vmem %s2, %s380
    %v382 = vld [vmem:[%s381] sm:$0xff]
    %v383 = vld [vmem:[%s381 + $0x8] sm:$0xff]
    %v384 = vmul.f32 %v52, 0.9999
    %v385 = vsub.f32 1.0, %v384
    %387 = vset.pattern.permute.xlu0 0
    %388 = vperm.xlu0 %387, %v385
    %v389 = vpop.permute.xlu0 %388
    %v393 = vcombine.high %v382, %v382
    %v395 = vunpack.c.l.s4 1983009808
    %v396 = vunpack.c.0.s8 %v395
    %v397 = vlaneseq
    %v398 = vshrl.u32 %v397, 7
    %v399 = vsub.s32 %v396, %v398
    %v400 = vrot.slane %v382, %v399
    %v402 = vunpack.c.l.s4 1983009808
    %v403 = vunpack.c.0.s8 %v402
    %v404 = vlaneseq
    %v405 = vshrl.u32 %v404, 7
    %v406 = vsub.s32 %v403, %v405
    %v407 = vrot.slane %v393, %v406
    %v408 = vcombine.high %v400, %v400
    %v409 = vcombine.high %v407, %v407
    %v410 = vcombine.high %v383, %v383
    %v412 = vunpack.c.l.s4 1983009808
    %v413 = vunpack.c.0.s8 %v412
    %v414 = vlaneseq
    %v415 = vshrl.u32 %v414, 7
    %v416 = vsub.s32 %v413, %v415
    %v417 = vrot.slane %v383, %v416
    %v419 = vunpack.c.l.s4 1983009808
    %v420 = vunpack.c.0.s8 %v419
    %v421 = vlaneseq
    %v422 = vshrl.u32 %v421, 7
    %v423 = vsub.s32 %v420, %v422
    %v424 = vrot.slane %v410, %v423
    %v425 = vcombine.high %v417, %v417
    %v426 = vcombine.high %v424, %v424
    %v435 = vmul.f32 %v389, %v400
    %v436 = vmul.f32 %v389, %v408
    %v437 = vmul.f32 %v389, %v407
    %v438 = vmul.f32 %v389, %v409
    %v439 = vmul.f32 %v389, %v417
    %v440 = vmul.f32 %v389, %v425
    %v441 = vmul.f32 %v389, %v424
    %v442 = vmul.f32 %v389, %v426
    %444 = vset.pattern.permute.xlu0 0
    %445 = vperm.xlu0 %444, %v52
    %v446 = vpop.permute.xlu0 %445
    %v450 = vcombine.high %v378, %v378
    %v452 = vunpack.c.l.s4 1983009808
    %v453 = vunpack.c.0.s8 %v452
    %v454 = vlaneseq
    %v455 = vshrl.u32 %v454, 7
    %v456 = vsub.s32 %v453, %v455
    %v457 = vrot.slane %v378, %v456
    %v459 = vunpack.c.l.s4 1983009808
    %v460 = vunpack.c.0.s8 %v459
    %v461 = vlaneseq
    %v462 = vshrl.u32 %v461, 7
    %v463 = vsub.s32 %v460, %v462
    %v464 = vrot.slane %v450, %v463
    %v465 = vcombine.high %v457, %v457
    %v466 = vcombine.high %v464, %v464
    %v467 = vcombine.high %v379, %v379
    %v469 = vunpack.c.l.s4 1983009808
    %v470 = vunpack.c.0.s8 %v469
    %v471 = vlaneseq
    %v472 = vshrl.u32 %v471, 7
    %v473 = vsub.s32 %v470, %v472
    %v474 = vrot.slane %v379, %v473
    %v476 = vunpack.c.l.s4 1983009808
    %v477 = vunpack.c.0.s8 %v476
    %v478 = vlaneseq
    %v479 = vshrl.u32 %v478, 7
    %v480 = vsub.s32 %v477, %v479
    %v481 = vrot.slane %v467, %v480
    %v482 = vcombine.high %v474, %v474
    %v483 = vcombine.high %v481, %v481
    %v492 = vmul.f32 %v446, %v457
    %v493 = vmul.f32 %v446, %v465
    %v494 = vmul.f32 %v446, %v464
    %v495 = vmul.f32 %v446, %v466
    %v496 = vmul.f32 %v446, %v474
    %v497 = vmul.f32 %v446, %v482
    %v498 = vmul.f32 %v446, %v481
    %v499 = vmul.f32 %v446, %v483
    %v500 = vadd.f32 %v435, %v492
    %v501 = vadd.f32 %v436, %v493
    %v502 = vadd.f32 %v437, %v494
    %v503 = vadd.f32 %v438, %v495
    %v504 = vadd.f32 %v439, %v496
    %v505 = vadd.f32 %v440, %v497
    %v506 = vadd.f32 %v441, %v498
    %v507 = vadd.f32 %v442, %v499
    %v508 = vpack.c.bf16 %v500, %v500
    %v509 = vpack.c.bf16 %v501, %v501
    %v510 = vpack.c.bf16 %v502, %v502
    %v511 = vpack.c.bf16 %v503, %v503
    %v512 = vpack.c.bf16 %v504, %v504
    %v513 = vpack.c.bf16 %v505, %v505
    %v514 = vpack.c.bf16 %v506, %v506
    %v515 = vpack.c.bf16 %v507, %v507
    %v516 = vld [vmem:[#allocation2] sm:$0xff]
    %v517 = vld [vmem:[#allocation2 + $0x8] sm:$0xff]
    %v518 = vld [vmem:[#allocation3] sm:$0xff]
    %v519 = vld [vmem:[#allocation3 + $0x8] sm:$0xff]
    %v520 = vld [vmem:[#allocation3 + $0x10] sm:$0xff]
    %v521 = vld [vmem:[#allocation3 + $0x18] sm:$0xff]
    %v522 = vld [vmem:[#allocation3 + $0x20] sm:$0xff]
    %v523 = vld [vmem:[#allocation3 + $0x28] sm:$0xff]
    %v524 = vld [vmem:[#allocation3 + $0x30] sm:$0xff]
    %v525 = vld [vmem:[#allocation3 + $0x38] sm:$0xff]
    %v526 = vld [vmem:[#allocation3 + $0x40] sm:$0xff]
    %v527 = vld [vmem:[#allocation3 + $0x48] sm:$0xff]
    %v528 = vld [vmem:[#allocation3 + $0x50] sm:$0xff]
    %v529 = vld [vmem:[#allocation3 + $0x58] sm:$0xff]
    %v530 = vld [vmem:[#allocation3 + $0x60] sm:$0xff]
    %v531 = vld [vmem:[#allocation3 + $0x68] sm:$0xff]
    %v532 = vld [vmem:[#allocation3 + $0x70] sm:$0xff]
    %v533 = vld [vmem:[#allocation3 + $0x78] sm:$0xff]
    %v534 = vld [vmem:[#allocation3 + $0x80] sm:$0xff]
    %v535 = vld [vmem:[#allocation3 + $0x88] sm:$0xff]
    %v536 = vld [vmem:[#allocation3 + $0x90] sm:$0xff]
    %v537 = vld [vmem:[#allocation3 + $0x98] sm:$0xff]
    %v538 = vld [vmem:[#allocation3 + $0xa0] sm:$0xff]
    %v539 = vld [vmem:[#allocation3 + $0xa8] sm:$0xff]
    %v540 = vld [vmem:[#allocation3 + $0xb0] sm:$0xff]
    %v541 = vld [vmem:[#allocation3 + $0xb8] sm:$0xff]
    %v542 = vld [vmem:[#allocation3 + $0xc0] sm:$0xff]
    %v543 = vld [vmem:[#allocation3 + $0xc8] sm:$0xff]
    %v544 = vld [vmem:[#allocation3 + $0xd0] sm:$0xff]
    %v545 = vld [vmem:[#allocation3 + $0xd8] sm:$0xff]
    %v546 = vld [vmem:[#allocation3 + $0xe0] sm:$0xff]
    %v547 = vld [vmem:[#allocation3 + $0xe8] sm:$0xff]
    %v548 = vld [vmem:[#allocation3 + $0xf0] sm:$0xff]
    %v549 = vld [vmem:[#allocation3 + $0xf8] sm:$0xff]
    %v550 = vld [vmem:[#allocation3 + $0x100] sm:$0xff]
    %v551 = vld [vmem:[#allocation3 + $0x108] sm:$0xff]
    %v552 = vld [vmem:[#allocation3 + $0x110] sm:$0xff]
    %v553 = vld [vmem:[#allocation3 + $0x118] sm:$0xff]
    %v554 = vld [vmem:[#allocation3 + $0x120] sm:$0xff]
    %v555 = vld [vmem:[#allocation3 + $0x128] sm:$0xff]
    %v556 = vld [vmem:[#allocation3 + $0x130] sm:$0xff]
    %v557 = vld [vmem:[#allocation3 + $0x138] sm:$0xff]
    %v558 = vld [vmem:[#allocation3 + $0x140] sm:$0xff]
    %v559 = vld [vmem:[#allocation3 + $0x148] sm:$0xff]
    %v560 = vld [vmem:[#allocation3 + $0x150] sm:$0xff]
    %v561 = vld [vmem:[#allocation3 + $0x158] sm:$0xff]
    %v562 = vld [vmem:[#allocation3 + $0x160] sm:$0xff]
    %v563 = vld [vmem:[#allocation3 + $0x168] sm:$0xff]
    %v564 = vld [vmem:[#allocation3 + $0x170] sm:$0xff]
    %v565 = vld [vmem:[#allocation3 + $0x178] sm:$0xff]
    %v566 = vld [vmem:[#allocation3 + $0x180] sm:$0xff]
    %v567 = vld [vmem:[#allocation3 + $0x188] sm:$0xff]
    %v568 = vld [vmem:[#allocation3 + $0x190] sm:$0xff]
    %v569 = vld [vmem:[#allocation3 + $0x198] sm:$0xff]
    %v570 = vld [vmem:[#allocation3 + $0x1a0] sm:$0xff]
    %v571 = vld [vmem:[#allocation3 + $0x1a8] sm:$0xff]
    %v572 = vld [vmem:[#allocation3 + $0x1b0] sm:$0xff]
    %v573 = vld [vmem:[#allocation3 + $0x1b8] sm:$0xff]
    %v574 = vld [vmem:[#allocation3 + $0x1c0] sm:$0xff]
    %v575 = vld [vmem:[#allocation3 + $0x1c8] sm:$0xff]
    %v576 = vld [vmem:[#allocation3 + $0x1d0] sm:$0xff]
    %v577 = vld [vmem:[#allocation3 + $0x1d8] sm:$0xff]
    %v578 = vld [vmem:[#allocation3 + $0x1e0] sm:$0xff]
    %v579 = vld [vmem:[#allocation3 + $0x1e8] sm:$0xff]
    %v580 = vld [vmem:[#allocation3 + $0x1f0] sm:$0xff]
    %v581 = vld [vmem:[#allocation3 + $0x1f8] sm:$0xff]
    %v582 = vld [vmem:[#allocation3 + $0x200] sm:$0xff]
    %v583 = vld [vmem:[#allocation3 + $0x208] sm:$0xff]
    %v584 = vld [vmem:[#allocation3 + $0x210] sm:$0xff]
    %v585 = vld [vmem:[#allocation3 + $0x218] sm:$0xff]
    %v586 = vld [vmem:[#allocation3 + $0x220] sm:$0xff]
    %v587 = vld [vmem:[#allocation3 + $0x228] sm:$0xff]
    %v588 = vld [vmem:[#allocation3 + $0x230] sm:$0xff]
    %v589 = vld [vmem:[#allocation3 + $0x238] sm:$0xff]
    %v590 = vld [vmem:[#allocation3 + $0x240] sm:$0xff]
    %v591 = vld [vmem:[#allocation3 + $0x248] sm:$0xff]
    %v592 = vld [vmem:[#allocation3 + $0x250] sm:$0xff]
    %v593 = vld [vmem:[#allocation3 + $0x258] sm:$0xff]
    %v594 = vld [vmem:[#allocation3 + $0x260] sm:$0xff]
    %v595 = vld [vmem:[#allocation3 + $0x268] sm:$0xff]
    %v596 = vld [vmem:[#allocation3 + $0x270] sm:$0xff]
    %v597 = vld [vmem:[#allocation3 + $0x278] sm:$0xff]
    %v598 = vld [vmem:[#allocation3 + $0x280] sm:$0xff]
    %v599 = vld [vmem:[#allocation3 + $0x288] sm:$0xff]
    %v600 = vld [vmem:[#allocation3 + $0x290] sm:$0xff]
    %v601 = vld [vmem:[#allocation3 + $0x298] sm:$0xff]
    %v602 = vld [vmem:[#allocation3 + $0x2a0] sm:$0xff]
    %v603 = vld [vmem:[#allocation3 + $0x2a8] sm:$0xff]
    %v604 = vld [vmem:[#allocation3 + $0x2b0] sm:$0xff]
    %v605 = vld [vmem:[#allocation3 + $0x2b8] sm:$0xff]
    %v606 = vld [vmem:[#allocation3 + $0x2c0] sm:$0xff]
    %v607 = vld [vmem:[#allocation3 + $0x2c8] sm:$0xff]
    %v608 = vld [vmem:[#allocation3 + $0x2d0] sm:$0xff]
    %v609 = vld [vmem:[#allocation3 + $0x2d8] sm:$0xff]
    %v610 = vld [vmem:[#allocation3 + $0x2e0] sm:$0xff]
    %v611 = vld [vmem:[#allocation3 + $0x2e8] sm:$0xff]
    %v612 = vld [vmem:[#allocation3 + $0x2f0] sm:$0xff]
    %v613 = vld [vmem:[#allocation3 + $0x2f8] sm:$0xff]
    %v614 = vld [vmem:[#allocation3 + $0x300] sm:$0xff]
    %v615 = vld [vmem:[#allocation3 + $0x308] sm:$0xff]
    %v616 = vld [vmem:[#allocation3 + $0x310] sm:$0xff]
    %v617 = vld [vmem:[#allocation3 + $0x318] sm:$0xff]
    %v618 = vld [vmem:[#allocation3 + $0x320] sm:$0xff]
    %v619 = vld [vmem:[#allocation3 + $0x328] sm:$0xff]
    %v620 = vld [vmem:[#allocation3 + $0x330] sm:$0xff]
    %v621 = vld [vmem:[#allocation3 + $0x338] sm:$0xff]
    %v622 = vld [vmem:[#allocation3 + $0x340] sm:$0xff]
    %v623 = vld [vmem:[#allocation3 + $0x348] sm:$0xff]
    %v624 = vld [vmem:[#allocation3 + $0x350] sm:$0xff]
    %v625 = vld [vmem:[#allocation3 + $0x358] sm:$0xff]
    %v626 = vld [vmem:[#allocation3 + $0x360] sm:$0xff]
    %v627 = vld [vmem:[#allocation3 + $0x368] sm:$0xff]
    %v628 = vld [vmem:[#allocation3 + $0x370] sm:$0xff]
    %v629 = vld [vmem:[#allocation3 + $0x378] sm:$0xff]
    %v630 = vld [vmem:[#allocation3 + $0x380] sm:$0xff]
    %v631 = vld [vmem:[#allocation3 + $0x388] sm:$0xff]
    %v632 = vld [vmem:[#allocation3 + $0x390] sm:$0xff]
    %v633 = vld [vmem:[#allocation3 + $0x398] sm:$0xff]
    %v634 = vld [vmem:[#allocation3 + $0x3a0] sm:$0xff]
    %v635 = vld [vmem:[#allocation3 + $0x3a8] sm:$0xff]
    %v636 = vld [vmem:[#allocation3 + $0x3b0] sm:$0xff]
    %v637 = vld [vmem:[#allocation3 + $0x3b8] sm:$0xff]
    %v638 = vld [vmem:[#allocation3 + $0x3c0] sm:$0xff]
    %v639 = vld [vmem:[#allocation3 + $0x3c8] sm:$0xff]
    %v640 = vld [vmem:[#allocation3 + $0x3d0] sm:$0xff]
    %v641 = vld [vmem:[#allocation3 + $0x3d8] sm:$0xff]
    %v642 = vld [vmem:[#allocation3 + $0x3e0] sm:$0xff]
    %v643 = vld [vmem:[#allocation3 + $0x3e8] sm:$0xff]
    %v644 = vld [vmem:[#allocation3 + $0x3f0] sm:$0xff]
    %v645 = vld [vmem:[#allocation3 + $0x3f8] sm:$0xff]
    %v646 = vld [vmem:[#allocation3 + $0x400] sm:$0xff]
    %v647 = vld [vmem:[#allocation3 + $0x408] sm:$0xff]
    %v648 = vld [vmem:[#allocation3 + $0x410] sm:$0xff]
    %v649 = vld [vmem:[#allocation3 + $0x418] sm:$0xff]
    %v650 = vld [vmem:[#allocation3 + $0x420] sm:$0xff]
    %v651 = vld [vmem:[#allocation3 + $0x428] sm:$0xff]
    %v652 = vld [vmem:[#allocation3 + $0x430] sm:$0xff]
    %v653 = vld [vmem:[#allocation3 + $0x438] sm:$0xff]
    %v654 = vld [vmem:[#allocation3 + $0x440] sm:$0xff]
    %v655 = vld [vmem:[#allocation3 + $0x448] sm:$0xff]
    %v656 = vld [vmem:[#allocation3 + $0x450] sm:$0xff]
    %v657 = vld [vmem:[#allocation3 + $0x458] sm:$0xff]
    %v658 = vld [vmem:[#allocation3 + $0x460] sm:$0xff]
    %v659 = vld [vmem:[#allocation3 + $0x468] sm:$0xff]
    %v660 = vld [vmem:[#allocation3 + $0x470] sm:$0xff]
    %v661 = vld [vmem:[#allocation3 + $0x478] sm:$0xff]
    %v662 = vld [vmem:[#allocation3 + $0x480] sm:$0xff]
    %v663 = vld [vmem:[#allocation3 + $0x488] sm:$0xff]
    %v664 = vld [vmem:[#allocation3 + $0x490] sm:$0xff]
    %v665 = vld [vmem:[#allocation3 + $0x498] sm:$0xff]
    %v666 = vld [vmem:[#allocation3 + $0x4a0] sm:$0xff]
    %v667 = vld [vmem:[#allocation3 + $0x4a8] sm:$0xff]
    %v668 = vld [vmem:[#allocation3 + $0x4b0] sm:$0xff]
    %v669 = vld [vmem:[#allocation3 + $0x4b8] sm:$0xff]
    %v670 = vld [vmem:[#allocation3 + $0x4c0] sm:$0xff]
    %v671 = vld [vmem:[#allocation3 + $0x4c8] sm:$0xff]
    %v672 = vld [vmem:[#allocation3 + $0x4d0] sm:$0xff]
    %v673 = vld [vmem:[#allocation3 + $0x4d8] sm:$0xff]
    %v674 = vld [vmem:[#allocation3 + $0x4e0] sm:$0xff]
    %v675 = vld [vmem:[#allocation3 + $0x4e8] sm:$0xff]
    %v676 = vld [vmem:[#allocation3 + $0x4f0] sm:$0xff]
    %v677 = vld [vmem:[#allocation3 + $0x4f8] sm:$0xff]
    %v678 = vld [vmem:[#allocation3 + $0x500] sm:$0xff]
    %v679 = vld [vmem:[#allocation3 + $0x508] sm:$0xff]
    %v680 = vld [vmem:[#allocation3 + $0x510] sm:$0xff]
    %v681 = vld [vmem:[#allocation3 + $0x518] sm:$0xff]
    %v682 = vld [vmem:[#allocation3 + $0x520] sm:$0xff]
    %v683 = vld [vmem:[#allocation3 + $0x528] sm:$0xff]
    %v684 = vld [vmem:[#allocation3 + $0x530] sm:$0xff]
    %v685 = vld [vmem:[#allocation3 + $0x538] sm:$0xff]
    %v686 = vld [vmem:[#allocation3 + $0x540] sm:$0xff]
    %v687 = vld [vmem:[#allocation3 + $0x548] sm:$0xff]
    %v688 = vld [vmem:[#allocation3 + $0x550] sm:$0xff]
    %v689 = vld [vmem:[#allocation3 + $0x558] sm:$0xff]
    %v690 = vld [vmem:[#allocation3 + $0x560] sm:$0xff]
    %v691 = vld [vmem:[#allocation3 + $0x568] sm:$0xff]
    %v692 = vld [vmem:[#allocation3 + $0x570] sm:$0xff]
    %v693 = vld [vmem:[#allocation3 + $0x578] sm:$0xff]
    %v694 = vld [vmem:[#allocation3 + $0x580] sm:$0xff]
    %v695 = vld [vmem:[#allocation3 + $0x588] sm:$0xff]
    %v696 = vld [vmem:[#allocation3 + $0x590] sm:$0xff]
    %v697 = vld [vmem:[#allocation3 + $0x598] sm:$0xff]
    %v698 = vld [vmem:[#allocation3 + $0x5a0] sm:$0xff]
    %v699 = vld [vmem:[#allocation3 + $0x5a8] sm:$0xff]
    %v700 = vld [vmem:[#allocation3 + $0x5b0] sm:$0xff]
    %v701 = vld [vmem:[#allocation3 + $0x5b8] sm:$0xff]
    %v702 = vld [vmem:[#allocation3 + $0x5c0] sm:$0xff]
    %v703 = vld [vmem:[#allocation3 + $0x5c8] sm:$0xff]
    %v704 = vld [vmem:[#allocation3 + $0x5d0] sm:$0xff]
    %v705 = vld [vmem:[#allocation3 + $0x5d8] sm:$0xff]
    %v706 = vld [vmem:[#allocation3 + $0x5e0] sm:$0xff]
    %v707 = vld [vmem:[#allocation3 + $0x5e8] sm:$0xff]
    %v708 = vld [vmem:[#allocation3 + $0x5f0] sm:$0xff]
    %v709 = vld [vmem:[#allocation3 + $0x5f8] sm:$0xff]
    %v710 = vld [vmem:[#allocation3 + $0x600] sm:$0xff]
    %v711 = vld [vmem:[#allocation3 + $0x608] sm:$0xff]
    %v712 = vld [vmem:[#allocation3 + $0x610] sm:$0xff]
    %v713 = vld [vmem:[#allocation3 + $0x618] sm:$0xff]
    %v714 = vld [vmem:[#allocation3 + $0x620] sm:$0xff]
    %v715 = vld [vmem:[#allocation3 + $0x628] sm:$0xff]
    %v716 = vld [vmem:[#allocation3 + $0x630] sm:$0xff]
    %v717 = vld [vmem:[#allocation3 + $0x638] sm:$0xff]
    %v718 = vld [vmem:[#allocation3 + $0x640] sm:$0xff]
    %v719 = vld [vmem:[#allocation3 + $0x648] sm:$0xff]
    %v720 = vld [vmem:[#allocation3 + $0x650] sm:$0xff]
    %v721 = vld [vmem:[#allocation3 + $0x658] sm:$0xff]
    %v722 = vld [vmem:[#allocation3 + $0x660] sm:$0xff]
    %v723 = vld [vmem:[#allocation3 + $0x668] sm:$0xff]
    %v724 = vld [vmem:[#allocation3 + $0x670] sm:$0xff]
    %v725 = vld [vmem:[#allocation3 + $0x678] sm:$0xff]
    %v726 = vld [vmem:[#allocation3 + $0x680] sm:$0xff]
    %v727 = vld [vmem:[#allocation3 + $0x688] sm:$0xff]
    %v728 = vld [vmem:[#allocation3 + $0x690] sm:$0xff]
    %v729 = vld [vmem:[#allocation3 + $0x698] sm:$0xff]
    %v730 = vld [vmem:[#allocation3 + $0x6a0] sm:$0xff]
    %v731 = vld [vmem:[#allocation3 + $0x6a8] sm:$0xff]
    %v732 = vld [vmem:[#allocation3 + $0x6b0] sm:$0xff]
    %v733 = vld [vmem:[#allocation3 + $0x6b8] sm:$0xff]
    %v734 = vld [vmem:[#allocation3 + $0x6c0] sm:$0xff]
    %v735 = vld [vmem:[#allocation3 + $0x6c8] sm:$0xff]
    %v736 = vld [vmem:[#allocation3 + $0x6d0] sm:$0xff]
    %v737 = vld [vmem:[#allocation3 + $0x6d8] sm:$0xff]
    %v738 = vld [vmem:[#allocation3 + $0x6e0] sm:$0xff]
    %v739 = vld [vmem:[#allocation3 + $0x6e8] sm:$0xff]
    %v740 = vld [vmem:[#allocation3 + $0x6f0] sm:$0xff]
    %v741 = vld [vmem:[#allocation3 + $0x6f8] sm:$0xff]
    %v742 = vld [vmem:[#allocation3 + $0x700] sm:$0xff]
    %v743 = vld [vmem:[#allocation3 + $0x708] sm:$0xff]
    %v744 = vld [vmem:[#allocation3 + $0x710] sm:$0xff]
    %v745 = vld [vmem:[#allocation3 + $0x718] sm:$0xff]
    %v746 = vld [vmem:[#allocation3 + $0x720] sm:$0xff]
    %v747 = vld [vmem:[#allocation3 + $0x728] sm:$0xff]
    %v748 = vld [vmem:[#allocation3 + $0x730] sm:$0xff]
    %v749 = vld [vmem:[#allocation3 + $0x738] sm:$0xff]
    %v750 = vld [vmem:[#allocation3 + $0x740] sm:$0xff]
    %v751 = vld [vmem:[#allocation3 + $0x748] sm:$0xff]
    %v752 = vld [vmem:[#allocation3 + $0x750] sm:$0xff]
    %v753 = vld [vmem:[#allocation3 + $0x758] sm:$0xff]
    %v754 = vld [vmem:[#allocation3 + $0x760] sm:$0xff]
    %v755 = vld [vmem:[#allocation3 + $0x768] sm:$0xff]
    %v756 = vld [vmem:[#allocation3 + $0x770] sm:$0xff]
    %v757 = vld [vmem:[#allocation3 + $0x778] sm:$0xff]
    %v758 = vld [vmem:[#allocation3 + $0x780] sm:$0xff]
    %v759 = vld [vmem:[#allocation3 + $0x788] sm:$0xff]
    %v760 = vld [vmem:[#allocation3 + $0x790] sm:$0xff]
    %v761 = vld [vmem:[#allocation3 + $0x798] sm:$0xff]
    %v762 = vld [vmem:[#allocation3 + $0x7a0] sm:$0xff]
    %v763 = vld [vmem:[#allocation3 + $0x7a8] sm:$0xff]
    %v764 = vld [vmem:[#allocation3 + $0x7b0] sm:$0xff]
    %v765 = vld [vmem:[#allocation3 + $0x7b8] sm:$0xff]
    %v766 = vld [vmem:[#allocation3 + $0x7c0] sm:$0xff]
    %v767 = vld [vmem:[#allocation3 + $0x7c8] sm:$0xff]
    %v768 = vld [vmem:[#allocation3 + $0x7d0] sm:$0xff]
    %v769 = vld [vmem:[#allocation3 + $0x7d8] sm:$0xff]
    %v770 = vld [vmem:[#allocation3 + $0x7e0] sm:$0xff]
    %v771 = vld [vmem:[#allocation3 + $0x7e8] sm:$0xff]
    %v772 = vld [vmem:[#allocation3 + $0x7f0] sm:$0xff]
    %v773 = vld [vmem:[#allocation3 + $0x7f8] sm:$0xff]
    %v774 = vld [vmem:[#allocation3 + $0x800] sm:$0xff]
    %v775 = vld [vmem:[#allocation3 + $0x808] sm:$0xff]
    %v776 = vld [vmem:[#allocation3 + $0x810] sm:$0xff]
    %v777 = vld [vmem:[#allocation3 + $0x818] sm:$0xff]
    %v778 = vld [vmem:[#allocation3 + $0x820] sm:$0xff]
    %v779 = vld [vmem:[#allocation3 + $0x828] sm:$0xff]
    %v780 = vld [vmem:[#allocation3 + $0x830] sm:$0xff]
    %v781 = vld [vmem:[#allocation3 + $0x838] sm:$0xff]
    %v782 = vld [vmem:[#allocation3 + $0x840] sm:$0xff]
    %v783 = vld [vmem:[#allocation3 + $0x848] sm:$0xff]
    %v784 = vld [vmem:[#allocation3 + $0x850] sm:$0xff]
    %v785 = vld [vmem:[#allocation3 + $0x858] sm:$0xff]
    %v786 = vld [vmem:[#allocation3 + $0x860] sm:$0xff]
    %v787 = vld [vmem:[#allocation3 + $0x868] sm:$0xff]
    %v788 = vld [vmem:[#allocation3 + $0x870] sm:$0xff]
    %v789 = vld [vmem:[#allocation3 + $0x878] sm:$0xff]
    %v790 = vld [vmem:[#allocation3 + $0x880] sm:$0xff]
    %v791 = vld [vmem:[#allocation3 + $0x888] sm:$0xff]
    %v792 = vld [vmem:[#allocation3 + $0x890] sm:$0xff]
    %v793 = vld [vmem:[#allocation3 + $0x898] sm:$0xff]
    %v794 = vld [vmem:[#allocation3 + $0x8a0] sm:$0xff]
    %v795 = vld [vmem:[#allocation3 + $0x8a8] sm:$0xff]
    %v796 = vld [vmem:[#allocation3 + $0x8b0] sm:$0xff]
    %v797 = vld [vmem:[#allocation3 + $0x8b8] sm:$0xff]
    %v798 = vld [vmem:[#allocation3 + $0x8c0] sm:$0xff]
    %v799 = vld [vmem:[#allocation3 + $0x8c8] sm:$0xff]
    %v800 = vld [vmem:[#allocation3 + $0x8d0] sm:$0xff]
    %v801 = vld [vmem:[#allocation3 + $0x8d8] sm:$0xff]
    %v802 = vld [vmem:[#allocation3 + $0x8e0] sm:$0xff]
    %v803 = vld [vmem:[#allocation3 + $0x8e8] sm:$0xff]
    %v804 = vld [vmem:[#allocation3 + $0x8f0] sm:$0xff]
    %v805 = vld [vmem:[#allocation3 + $0x8f8] sm:$0xff]
    %v806 = vld [vmem:[#allocation3 + $0x900] sm:$0xff]
    %v807 = vld [vmem:[#allocation3 + $0x908] sm:$0xff]
    %v808 = vld [vmem:[#allocation3 + $0x910] sm:$0xff]
    %v809 = vld [vmem:[#allocation3 + $0x918] sm:$0xff]
    %v810 = vld [vmem:[#allocation3 + $0x920] sm:$0xff]
    %v811 = vld [vmem:[#allocation3 + $0x928] sm:$0xff]
    %v812 = vld [vmem:[#allocation3 + $0x930] sm:$0xff]
    %v813 = vld [vmem:[#allocation3 + $0x938] sm:$0xff]
    %v814 = vld [vmem:[#allocation3 + $0x940] sm:$0xff]
    %v815 = vld [vmem:[#allocation3 + $0x948] sm:$0xff]
    %v816 = vld [vmem:[#allocation3 + $0x950] sm:$0xff]
    %v817 = vld [vmem:[#allocation3 + $0x958] sm:$0xff]
    %v818 = vld [vmem:[#allocation3 + $0x960] sm:$0xff]
    %v819 = vld [vmem:[#allocation3 + $0x968] sm:$0xff]
    %v820 = vld [vmem:[#allocation3 + $0x970] sm:$0xff]
    %v821 = vld [vmem:[#allocation3 + $0x978] sm:$0xff]
    %v822 = vld [vmem:[#allocation3 + $0x980] sm:$0xff]
    %v823 = vld [vmem:[#allocation3 + $0x988] sm:$0xff]
    %v824 = vld [vmem:[#allocation3 + $0x990] sm:$0xff]
    %v825 = vld [vmem:[#allocation3 + $0x998] sm:$0xff]
    %v826 = vld [vmem:[#allocation3 + $0x9a0] sm:$0xff]
    %v827 = vld [vmem:[#allocation3 + $0x9a8] sm:$0xff]
    %v828 = vld [vmem:[#allocation3 + $0x9b0] sm:$0xff]
    %v829 = vld [vmem:[#allocation3 + $0x9b8] sm:$0xff]
    %v830 = vld [vmem:[#allocation3 + $0x9c0] sm:$0xff]
    %v831 = vld [vmem:[#allocation3 + $0x9c8] sm:$0xff]
    %v832 = vld [vmem:[#allocation3 + $0x9d0] sm:$0xff]
    %v833 = vld [vmem:[#allocation3 + $0x9d8] sm:$0xff]
    %v834 = vld [vmem:[#allocation3 + $0x9e0] sm:$0xff]
    %v835 = vld [vmem:[#allocation3 + $0x9e8] sm:$0xff]
    %v836 = vld [vmem:[#allocation3 + $0x9f0] sm:$0xff]
    %v837 = vld [vmem:[#allocation3 + $0x9f8] sm:$0xff]
    %v838 = vld [vmem:[#allocation3 + $0xa00] sm:$0xff]
    %v839 = vld [vmem:[#allocation3 + $0xa08] sm:$0xff]
    %v840 = vld [vmem:[#allocation3 + $0xa10] sm:$0xff]
    %v841 = vld [vmem:[#allocation3 + $0xa18] sm:$0xff]
    %v842 = vld [vmem:[#allocation3 + $0xa20] sm:$0xff]
    %v843 = vld [vmem:[#allocation3 + $0xa28] sm:$0xff]
    %v844 = vld [vmem:[#allocation3 + $0xa30] sm:$0xff]
    %v845 = vld [vmem:[#allocation3 + $0xa38] sm:$0xff]
    %v846 = vld [vmem:[#allocation3 + $0xa40] sm:$0xff]
    %v847 = vld [vmem:[#allocation3 + $0xa48] sm:$0xff]
    %v848 = vld [vmem:[#allocation3 + $0xa50] sm:$0xff]
    %v849 = vld [vmem:[#allocation3 + $0xa58] sm:$0xff]
    %v850 = vld [vmem:[#allocation3 + $0xa60] sm:$0xff]
    %v851 = vld [vmem:[#allocation3 + $0xa68] sm:$0xff]
    %v852 = vld [vmem:[#allocation3 + $0xa70] sm:$0xff]
    %v853 = vld [vmem:[#allocation3 + $0xa78] sm:$0xff]
    %v854 = vld [vmem:[#allocation3 + $0xa80] sm:$0xff]
    %v855 = vld [vmem:[#allocation3 + $0xa88] sm:$0xff]
    %v856 = vld [vmem:[#allocation3 + $0xa90] sm:$0xff]
    %v857 = vld [vmem:[#allocation3 + $0xa98] sm:$0xff]
    %v858 = vld [vmem:[#allocation3 + $0xaa0] sm:$0xff]
    %v859 = vld [vmem:[#allocation3 + $0xaa8] sm:$0xff]
    %v860 = vld [vmem:[#allocation3 + $0xab0] sm:$0xff]
    %v861 = vld [vmem:[#allocation3 + $0xab8] sm:$0xff]
    %v862 = vld [vmem:[#allocation3 + $0xac0] sm:$0xff]
    %v863 = vld [vmem:[#allocation3 + $0xac8] sm:$0xff]
    %v864 = vld [vmem:[#allocation3 + $0xad0] sm:$0xff]
    %v865 = vld [vmem:[#allocation3 + $0xad8] sm:$0xff]
    %v866 = vld [vmem:[#allocation3 + $0xae0] sm:$0xff]
    %v867 = vld [vmem:[#allocation3 + $0xae8] sm:$0xff]
    %v868 = vld [vmem:[#allocation3 + $0xaf0] sm:$0xff]
    %v869 = vld [vmem:[#allocation3 + $0xaf8] sm:$0xff]
    %v870 = vld [vmem:[#allocation3 + $0xb00] sm:$0xff]
    %v871 = vld [vmem:[#allocation3 + $0xb08] sm:$0xff]
    %v872 = vld [vmem:[#allocation3 + $0xb10] sm:$0xff]
    %v873 = vld [vmem:[#allocation3 + $0xb18] sm:$0xff]
    %v874 = vld [vmem:[#allocation3 + $0xb20] sm:$0xff]
    %v875 = vld [vmem:[#allocation3 + $0xb28] sm:$0xff]
    %v876 = vld [vmem:[#allocation3 + $0xb30] sm:$0xff]
    %v877 = vld [vmem:[#allocation3 + $0xb38] sm:$0xff]
    %v878 = vld [vmem:[#allocation3 + $0xb40] sm:$0xff]
    %v879 = vld [vmem:[#allocation3 + $0xb48] sm:$0xff]
    %v880 = vld [vmem:[#allocation3 + $0xb50] sm:$0xff]
    %v881 = vld [vmem:[#allocation3 + $0xb58] sm:$0xff]
    %v882 = vld [vmem:[#allocation3 + $0xb60] sm:$0xff]
    %v883 = vld [vmem:[#allocation3 + $0xb68] sm:$0xff]
    %v884 = vld [vmem:[#allocation3 + $0xb70] sm:$0xff]
    %v885 = vld [vmem:[#allocation3 + $0xb78] sm:$0xff]
    %v886 = vld [vmem:[#allocation3 + $0xb80] sm:$0xff]
    %v887 = vld [vmem:[#allocation3 + $0xb88] sm:$0xff]
    %v888 = vld [vmem:[#allocation3 + $0xb90] sm:$0xff]
    %v889 = vld [vmem:[#allocation3 + $0xb98] sm:$0xff]
    %v890 = vld [vmem:[#allocation3 + $0xba0] sm:$0xff]
    %v891 = vld [vmem:[#allocation3 + $0xba8] sm:$0xff]
    %v892 = vld [vmem:[#allocation3 + $0xbb0] sm:$0xff]
    %v893 = vld [vmem:[#allocation3 + $0xbb8] sm:$0xff]
    %v894 = vld [vmem:[#allocation3 + $0xbc0] sm:$0xff]
    %v895 = vld [vmem:[#allocation3 + $0xbc8] sm:$0xff]
    %v896 = vld [vmem:[#allocation3 + $0xbd0] sm:$0xff]
    %v897 = vld [vmem:[#allocation3 + $0xbd8] sm:$0xff]
    %v898 = vld [vmem:[#allocation3 + $0xbe0] sm:$0xff]
    %v899 = vld [vmem:[#allocation3 + $0xbe8] sm:$0xff]
    %v900 = vld [vmem:[#allocation3 + $0xbf0] sm:$0xff]
    %v901 = vld [vmem:[#allocation3 + $0xbf8] sm:$0xff]
    %v902 = vld [vmem:[#allocation3 + $0xc00] sm:$0xff]
    %v903 = vld [vmem:[#allocation3 + $0xc08] sm:$0xff]
    %v904 = vld [vmem:[#allocation3 + $0xc10] sm:$0xff]
    %v905 = vld [vmem:[#allocation3 + $0xc18] sm:$0xff]
    %v906 = vld [vmem:[#allocation3 + $0xc20] sm:$0xff]
    %v907 = vld [vmem:[#allocation3 + $0xc28] sm:$0xff]
    %v908 = vld [vmem:[#allocation3 + $0xc30] sm:$0xff]
    %v909 = vld [vmem:[#allocation3 + $0xc38] sm:$0xff]
    %v910 = vld [vmem:[#allocation3 + $0xc40] sm:$0xff]
    %v911 = vld [vmem:[#allocation3 + $0xc48] sm:$0xff]
    %v912 = vld [vmem:[#allocation3 + $0xc50] sm:$0xff]
    %v913 = vld [vmem:[#allocation3 + $0xc58] sm:$0xff]
    %v914 = vld [vmem:[#allocation3 + $0xc60] sm:$0xff]
    %v915 = vld [vmem:[#allocation3 + $0xc68] sm:$0xff]
    %v916 = vld [vmem:[#allocation3 + $0xc70] sm:$0xff]
    %v917 = vld [vmem:[#allocation3 + $0xc78] sm:$0xff]
    %v918 = vld [vmem:[#allocation3 + $0xc80] sm:$0xff]
    %v919 = vld [vmem:[#allocation3 + $0xc88] sm:$0xff]
    %v920 = vld [vmem:[#allocation3 + $0xc90] sm:$0xff]
    %v921 = vld [vmem:[#allocation3 + $0xc98] sm:$0xff]
    %v922 = vld [vmem:[#allocation3 + $0xca0] sm:$0xff]
    %v923 = vld [vmem:[#allocation3 + $0xca8] sm:$0xff]
    %v924 = vld [vmem:[#allocation3 + $0xcb0] sm:$0xff]
    %v925 = vld [vmem:[#allocation3 + $0xcb8] sm:$0xff]
    %v926 = vld [vmem:[#allocation3 + $0xcc0] sm:$0xff]
    %v927 = vld [vmem:[#allocation3 + $0xcc8] sm:$0xff]
    %v928 = vld [vmem:[#allocation3 + $0xcd0] sm:$0xff]
    %v929 = vld [vmem:[#allocation3 + $0xcd8] sm:$0xff]
    %v930 = vld [vmem:[#allocation3 + $0xce0] sm:$0xff]
    %v931 = vld [vmem:[#allocation3 + $0xce8] sm:$0xff]
    %v932 = vld [vmem:[#allocation3 + $0xcf0] sm:$0xff]
    %v933 = vld [vmem:[#allocation3 + $0xcf8] sm:$0xff]
    %v934 = vld [vmem:[#allocation3 + $0xd00] sm:$0xff]
    %v935 = vld [vmem:[#allocation3 + $0xd08] sm:$0xff]
    %v936 = vld [vmem:[#allocation3 + $0xd10] sm:$0xff]
    %v937 = vld [vmem:[#allocation3 + $0xd18] sm:$0xff]
    %v938 = vld [vmem:[#allocation3 + $0xd20] sm:$0xff]
    %v939 = vld [vmem:[#allocation3 + $0xd28] sm:$0xff]
    %v940 = vld [vmem:[#allocation3 + $0xd30] sm:$0xff]
    %v941 = vld [vmem:[#allocation3 + $0xd38] sm:$0xff]
    %v942 = vld [vmem:[#allocation3 + $0xd40] sm:$0xff]
    %v943 = vld [vmem:[#allocation3 + $0xd48] sm:$0xff]
    %v944 = vld [vmem:[#allocation3 + $0xd50] sm:$0xff]
    %v945 = vld [vmem:[#allocation3 + $0xd58] sm:$0xff]
    %v946 = vld [vmem:[#allocation3 + $0xd60] sm:$0xff]
    %v947 = vld [vmem:[#allocation3 + $0xd68] sm:$0xff]
    %v948 = vld [vmem:[#allocation3 + $0xd70] sm:$0xff]
    %v949 = vld [vmem:[#allocation3 + $0xd78] sm:$0xff]
    %v950 = vld [vmem:[#allocation3 + $0xd80] sm:$0xff]
    %v951 = vld [vmem:[#allocation3 + $0xd88] sm:$0xff]
    %v952 = vld [vmem:[#allocation3 + $0xd90] sm:$0xff]
    %v953 = vld [vmem:[#allocation3 + $0xd98] sm:$0xff]
    %v954 = vld [vmem:[#allocation3 + $0xda0] sm:$0xff]
    %v955 = vld [vmem:[#allocation3 + $0xda8] sm:$0xff]
    %v956 = vld [vmem:[#allocation3 + $0xdb0] sm:$0xff]
    %v957 = vld [vmem:[#allocation3 + $0xdb8] sm:$0xff]
    %v958 = vld [vmem:[#allocation3 + $0xdc0] sm:$0xff]
    %v959 = vld [vmem:[#allocation3 + $0xdc8] sm:$0xff]
    %v960 = vld [vmem:[#allocation3 + $0xdd0] sm:$0xff]
    %v961 = vld [vmem:[#allocation3 + $0xdd8] sm:$0xff]
    %v962 = vld [vmem:[#allocation3 + $0xde0] sm:$0xff]
    %v963 = vld [vmem:[#allocation3 + $0xde8] sm:$0xff]
    %v964 = vld [vmem:[#allocation3 + $0xdf0] sm:$0xff]
    %v965 = vld [vmem:[#allocation3 + $0xdf8] sm:$0xff]
    %v966 = vld [vmem:[#allocation3 + $0xe00] sm:$0xff]
    %v967 = vld [vmem:[#allocation3 + $0xe08] sm:$0xff]
    %v968 = vld [vmem:[#allocation3 + $0xe10] sm:$0xff]
    %v969 = vld [vmem:[#allocation3 + $0xe18] sm:$0xff]
    %v970 = vld [vmem:[#allocation3 + $0xe20] sm:$0xff]
    %v971 = vld [vmem:[#allocation3 + $0xe28] sm:$0xff]
    %v972 = vld [vmem:[#allocation3 + $0xe30] sm:$0xff]
    %v973 = vld [vmem:[#allocation3 + $0xe38] sm:$0xff]
    %v974 = vld [vmem:[#allocation3 + $0xe40] sm:$0xff]
    %v975 = vld [vmem:[#allocation3 + $0xe48] sm:$0xff]
    %v976 = vld [vmem:[#allocation3 + $0xe50] sm:$0xff]
    %v977 = vld [vmem:[#allocation3 + $0xe58] sm:$0xff]
    %v978 = vld [vmem:[#allocation3 + $0xe60] sm:$0xff]
    %v979 = vld [vmem:[#allocation3 + $0xe68] sm:$0xff]
    %v980 = vld [vmem:[#allocation3 + $0xe70] sm:$0xff]
    %v981 = vld [vmem:[#allocation3 + $0xe78] sm:$0xff]
    %v982 = vld [vmem:[#allocation3 + $0xe80] sm:$0xff]
    %v983 = vld [vmem:[#allocation3 + $0xe88] sm:$0xff]
    %v984 = vld [vmem:[#allocation3 + $0xe90] sm:$0xff]
    %v985 = vld [vmem:[#allocation3 + $0xe98] sm:$0xff]
    %v986 = vld [vmem:[#allocation3 + $0xea0] sm:$0xff]
    %v987 = vld [vmem:[#allocation3 + $0xea8] sm:$0xff]
    %v988 = vld [vmem:[#allocation3 + $0xeb0] sm:$0xff]
    %v989 = vld [vmem:[#allocation3 + $0xeb8] sm:$0xff]
    %v990 = vld [vmem:[#allocation3 + $0xec0] sm:$0xff]
    %v991 = vld [vmem:[#allocation3 + $0xec8] sm:$0xff]
    %v992 = vld [vmem:[#allocation3 + $0xed0] sm:$0xff]
    %v993 = vld [vmem:[#allocation3 + $0xed8] sm:$0xff]
    %v994 = vld [vmem:[#allocation3 + $0xee0] sm:$0xff]
    %v995 = vld [vmem:[#allocation3 + $0xee8] sm:$0xff]
    %v996 = vld [vmem:[#allocation3 + $0xef0] sm:$0xff]
    %v997 = vld [vmem:[#allocation3 + $0xef8] sm:$0xff]
    %v998 = vld [vmem:[#allocation3 + $0xf00] sm:$0xff]
    %v999 = vld [vmem:[#allocation3 + $0xf08] sm:$0xff]
    %v1000 = vld [vmem:[#allocation3 + $0xf10] sm:$0xff]
    %v1001 = vld [vmem:[#allocation3 + $0xf18] sm:$0xff]
    %v1002 = vld [vmem:[#allocation3 + $0xf20] sm:$0xff]
    %v1003 = vld [vmem:[#allocation3 + $0xf28] sm:$0xff]
    %v1004 = vld [vmem:[#allocation3 + $0xf30] sm:$0xff]
    %v1005 = vld [vmem:[#allocation3 + $0xf38] sm:$0xff]
    %v1006 = vld [vmem:[#allocation3 + $0xf40] sm:$0xff]
    %v1007 = vld [vmem:[#allocation3 + $0xf48] sm:$0xff]
    %v1008 = vld [vmem:[#allocation3 + $0xf50] sm:$0xff]
    %v1009 = vld [vmem:[#allocation3 + $0xf58] sm:$0xff]
    %v1010 = vld [vmem:[#allocation3 + $0xf60] sm:$0xff]
    %v1011 = vld [vmem:[#allocation3 + $0xf68] sm:$0xff]
    %v1012 = vld [vmem:[#allocation3 + $0xf70] sm:$0xff]
    %v1013 = vld [vmem:[#allocation3 + $0xf78] sm:$0xff]
    %v1014 = vld [vmem:[#allocation3 + $0xf80] sm:$0xff]
    %v1015 = vld [vmem:[#allocation3 + $0xf88] sm:$0xff]
    %v1016 = vld [vmem:[#allocation3 + $0xf90] sm:$0xff]
    %v1017 = vld [vmem:[#allocation3 + $0xf98] sm:$0xff]
    %v1018 = vld [vmem:[#allocation3 + $0xfa0] sm:$0xff]
    %v1019 = vld [vmem:[#allocation3 + $0xfa8] sm:$0xff]
    %v1020 = vld [vmem:[#allocation3 + $0xfb0] sm:$0xff]
    %v1021 = vld [vmem:[#allocation3 + $0xfb8] sm:$0xff]
    %v1022 = vld [vmem:[#allocation3 + $0xfc0] sm:$0xff]
    %v1023 = vld [vmem:[#allocation3 + $0xfc8] sm:$0xff]
    %v1024 = vld [vmem:[#allocation3 + $0xfd0] sm:$0xff]
    %v1025 = vld [vmem:[#allocation3 + $0xfd8] sm:$0xff]
    %v1026 = vld [vmem:[#allocation3 + $0xfe0] sm:$0xff]
    %v1027 = vld [vmem:[#allocation3 + $0xfe8] sm:$0xff]
    %v1028 = vld [vmem:[#allocation3 + $0xff0] sm:$0xff]
    %v1029 = vld [vmem:[#allocation3 + $0xff8] sm:$0xff]
    %v1542 = vunpack.c.l.b16 %v518
    %v1543 = vunpack.c.h.b16 %v518
    %v1544 = vunpack.c.l.b16 %v519
    %v1545 = vunpack.c.h.b16 %v519
    %v1546 = vunpack.c.l.b16 %v520
    %v1547 = vunpack.c.h.b16 %v520
    %v1548 = vunpack.c.l.b16 %v521
    %v1549 = vunpack.c.h.b16 %v521
    %v1550 = vunpack.c.l.b16 %v522
    %v1551 = vunpack.c.h.b16 %v522
    %v1552 = vunpack.c.l.b16 %v523
    %v1553 = vunpack.c.h.b16 %v523
    %v1554 = vunpack.c.l.b16 %v524
    %v1555 = vunpack.c.h.b16 %v524
    %v1556 = vunpack.c.l.b16 %v525
    %v1557 = vunpack.c.h.b16 %v525
    %v1558 = vunpack.c.l.b16 %v526
    %v1559 = vunpack.c.h.b16 %v526
    %v1560 = vunpack.c.l.b16 %v527
    %v1561 = vunpack.c.h.b16 %v527
    %v1562 = vunpack.c.l.b16 %v528
    %v1563 = vunpack.c.h.b16 %v528
    %v1564 = vunpack.c.l.b16 %v529
    %v1565 = vunpack.c.h.b16 %v529
    %v1566 = vunpack.c.l.b16 %v530
    %v1567 = vunpack.c.h.b16 %v530
    %v1568 = vunpack.c.l.b16 %v531
    %v1569 = vunpack.c.h.b16 %v531
    %v1570 = vunpack.c.l.b16 %v532
    %v1571 = vunpack.c.h.b16 %v532
    %v1572 = vunpack.c.l.b16 %v533
    %v1573 = vunpack.c.h.b16 %v533
    %v1574 = vunpack.c.l.b16 %v534
    %v1575 = vunpack.c.h.b16 %v534
    %v1576 = vunpack.c.l.b16 %v535
    %v1577 = vunpack.c.h.b16 %v535
    %v1578 = vunpack.c.l.b16 %v536
    %v1579 = vunpack.c.h.b16 %v536
    %v1580 = vunpack.c.l.b16 %v537
    %v1581 = vunpack.c.h.b16 %v537
    %v1582 = vunpack.c.l.b16 %v538
    %v1583 = vunpack.c.h.b16 %v538
    %v1584 = vunpack.c.l.b16 %v539
    %v1585 = vunpack.c.h.b16 %v539
    %v1586 = vunpack.c.l.b16 %v540
    %v1587 = vunpack.c.h.b16 %v540
    %v1588 = vunpack.c.l.b16 %v541
    %v1589 = vunpack.c.h.b16 %v541
    %v1590 = vunpack.c.l.b16 %v542
    %v1591 = vunpack.c.h.b16 %v542
    %v1592 = vunpack.c.l.b16 %v543
    %v1593 = vunpack.c.h.b16 %v543
    %v1594 = vunpack.c.l.b16 %v544
    %v1595 = vunpack.c.h.b16 %v544
    %v1596 = vunpack.c.l.b16 %v545
    %v1597 = vunpack.c.h.b16 %v545
    %v1598 = vunpack.c.l.b16 %v546
    %v1599 = vunpack.c.h.b16 %v546
    %v1600 = vunpack.c.l.b16 %v547
    %v1601 = vunpack.c.h.b16 %v547
    %v1602 = vunpack.c.l.b16 %v548
    %v1603 = vunpack.c.h.b16 %v548
    %v1604 = vunpack.c.l.b16 %v549
    %v1605 = vunpack.c.h.b16 %v549
    %v1606 = vunpack.c.l.b16 %v550
    %v1607 = vunpack.c.h.b16 %v550
    %v1608 = vunpack.c.l.b16 %v551
    %v1609 = vunpack.c.h.b16 %v551
    %v1610 = vunpack.c.l.b16 %v552
    %v1611 = vunpack.c.h.b16 %v552
    %v1612 = vunpack.c.l.b16 %v553
    %v1613 = vunpack.c.h.b16 %v553
    %v1614 = vunpack.c.l.b16 %v554
    %v1615 = vunpack.c.h.b16 %v554
    %v1616 = vunpack.c.l.b16 %v555
    %v1617 = vunpack.c.h.b16 %v555
    %v1618 = vunpack.c.l.b16 %v556
    %v1619 = vunpack.c.h.b16 %v556
    %v1620 = vunpack.c.l.b16 %v557
    %v1621 = vunpack.c.h.b16 %v557
    %v1622 = vunpack.c.l.b16 %v558
    %v1623 = vunpack.c.h.b16 %v558
    %v1624 = vunpack.c.l.b16 %v559
    %v1625 = vunpack.c.h.b16 %v559
    %v1626 = vunpack.c.l.b16 %v560
    %v1627 = vunpack.c.h.b16 %v560
    %v1628 = vunpack.c.l.b16 %v561
    %v1629 = vunpack.c.h.b16 %v561
    %v1630 = vunpack.c.l.b16 %v562
    %v1631 = vunpack.c.h.b16 %v562
    %v1632 = vunpack.c.l.b16 %v563
    %v1633 = vunpack.c.h.b16 %v563
    %v1634 = vunpack.c.l.b16 %v564
    %v1635 = vunpack.c.h.b16 %v564
    %v1636 = vunpack.c.l.b16 %v565
    %v1637 = vunpack.c.h.b16 %v565
    %v1638 = vunpack.c.l.b16 %v566
    %v1639 = vunpack.c.h.b16 %v566
    %v1640 = vunpack.c.l.b16 %v567
    %v1641 = vunpack.c.h.b16 %v567
    %v1642 = vunpack.c.l.b16 %v568
    %v1643 = vunpack.c.h.b16 %v568
    %v1644 = vunpack.c.l.b16 %v569
    %v1645 = vunpack.c.h.b16 %v569
    %v1646 = vunpack.c.l.b16 %v570
    %v1647 = vunpack.c.h.b16 %v570
    %v1648 = vunpack.c.l.b16 %v571
    %v1649 = vunpack.c.h.b16 %v571
    %v1650 = vunpack.c.l.b16 %v572
    %v1651 = vunpack.c.h.b16 %v572
    %v1652 = vunpack.c.l.b16 %v573
    %v1653 = vunpack.c.h.b16 %v573
    %v1654 = vunpack.c.l.b16 %v574
    %v1655 = vunpack.c.h.b16 %v574
    %v1656 = vunpack.c.l.b16 %v575
    %v1657 = vunpack.c.h.b16 %v575
    %v1658 = vunpack.c.l.b16 %v576
    %v1659 = vunpack.c.h.b16 %v576
    %v1660 = vunpack.c.l.b16 %v577
    %v1661 = vunpack.c.h.b16 %v577
    %v1662 = vunpack.c.l.b16 %v578
    %v1663 = vunpack.c.h.b16 %v578
    %v1664 = vunpack.c.l.b16 %v579
    %v1665 = vunpack.c.h.b16 %v579
    %v1666 = vunpack.c.l.b16 %v580
    %v1667 = vunpack.c.h.b16 %v580
    %v1668 = vunpack.c.l.b16 %v581
    %v1669 = vunpack.c.h.b16 %v581
    %v1670 = vunpack.c.l.b16 %v582
    %v1671 = vunpack.c.h.b16 %v582
    %v1672 = vunpack.c.l.b16 %v583
    %v1673 = vunpack.c.h.b16 %v583
    %v1674 = vunpack.c.l.b16 %v584
    %v1675 = vunpack.c.h.b16 %v584
    %v1676 = vunpack.c.l.b16 %v585
    %v1677 = vunpack.c.h.b16 %v585
    %v1678 = vunpack.c.l.b16 %v586
    %v1679 = vunpack.c.h.b16 %v586
    %v1680 = vunpack.c.l.b16 %v587
    %v1681 = vunpack.c.h.b16 %v587
    %v1682 = vunpack.c.l.b16 %v588
    %v1683 = vunpack.c.h.b16 %v588
    %v1684 = vunpack.c.l.b16 %v589
    %v1685 = vunpack.c.h.b16 %v589
    %v1686 = vunpack.c.l.b16 %v590
    %v1687 = vunpack.c.h.b16 %v590
    %v1688 = vunpack.c.l.b16 %v591
    %v1689 = vunpack.c.h.b16 %v591
    %v1690 = vunpack.c.l.b16 %v592
    %v1691 = vunpack.c.h.b16 %v592
    %v1692 = vunpack.c.l.b16 %v593
    %v1693 = vunpack.c.h.b16 %v593
    %v1694 = vunpack.c.l.b16 %v594
    %v1695 = vunpack.c.h.b16 %v594
    %v1696 = vunpack.c.l.b16 %v595
    %v1697 = vunpack.c.h.b16 %v595
    %v1698 = vunpack.c.l.b16 %v596
    %v1699 = vunpack.c.h.b16 %v596
    %v1700 = vunpack.c.l.b16 %v597
    %v1701 = vunpack.c.h.b16 %v597
    %v1702 = vunpack.c.l.b16 %v598
    %v1703 = vunpack.c.h.b16 %v598
    %v1704 = vunpack.c.l.b16 %v599
    %v1705 = vunpack.c.h.b16 %v599
    %v1706 = vunpack.c.l.b16 %v600
    %v1707 = vunpack.c.h.b16 %v600
    %v1708 = vunpack.c.l.b16 %v601
    %v1709 = vunpack.c.h.b16 %v601
    %v1710 = vunpack.c.l.b16 %v602
    %v1711 = vunpack.c.h.b16 %v602
    %v1712 = vunpack.c.l.b16 %v603
    %v1713 = vunpack.c.h.b16 %v603
    %v1714 = vunpack.c.l.b16 %v604
    %v1715 = vunpack.c.h.b16 %v604
    %v1716 = vunpack.c.l.b16 %v605
    %v1717 = vunpack.c.h.b16 %v605
    %v1718 = vunpack.c.l.b16 %v606
    %v1719 = vunpack.c.h.b16 %v606
    %v1720 = vunpack.c.l.b16 %v607
    %v1721 = vunpack.c.h.b16 %v607
    %v1722 = vunpack.c.l.b16 %v608
    %v1723 = vunpack.c.h.b16 %v608
    %v1724 = vunpack.c.l.b16 %v609
    %v1725 = vunpack.c.h.b16 %v609
    %v1726 = vunpack.c.l.b16 %v610
    %v1727 = vunpack.c.h.b16 %v610
    %v1728 = vunpack.c.l.b16 %v611
    %v1729 = vunpack.c.h.b16 %v611
    %v1730 = vunpack.c.l.b16 %v612
    %v1731 = vunpack.c.h.b16 %v612
    %v1732 = vunpack.c.l.b16 %v613
    %v1733 = vunpack.c.h.b16 %v613
    %v1734 = vunpack.c.l.b16 %v614
    %v1735 = vunpack.c.h.b16 %v614
    %v1736 = vunpack.c.l.b16 %v615
    %v1737 = vunpack.c.h.b16 %v615
    %v1738 = vunpack.c.l.b16 %v616
    %v1739 = vunpack.c.h.b16 %v616
    %v1740 = vunpack.c.l.b16 %v617
    %v1741 = vunpack.c.h.b16 %v617
    %v1742 = vunpack.c.l.b16 %v618
    %v1743 = vunpack.c.h.b16 %v618
    %v1744 = vunpack.c.l.b16 %v619
    %v1745 = vunpack.c.h.b16 %v619
    %v1746 = vunpack.c.l.b16 %v620
    %v1747 = vunpack.c.h.b16 %v620
    %v1748 = vunpack.c.l.b16 %v621
    %v1749 = vunpack.c.h.b16 %v621
    %v1750 = vunpack.c.l.b16 %v622
    %v1751 = vunpack.c.h.b16 %v622
    %v1752 = vunpack.c.l.b16 %v623
    %v1753 = vunpack.c.h.b16 %v623
    %v1754 = vunpack.c.l.b16 %v624
    %v1755 = vunpack.c.h.b16 %v624
    %v1756 = vunpack.c.l.b16 %v625
    %v1757 = vunpack.c.h.b16 %v625
    %v1758 = vunpack.c.l.b16 %v626
    %v1759 = vunpack.c.h.b16 %v626
    %v1760 = vunpack.c.l.b16 %v627
    %v1761 = vunpack.c.h.b16 %v627
    %v1762 = vunpack.c.l.b16 %v628
    %v1763 = vunpack.c.h.b16 %v628
    %v1764 = vunpack.c.l.b16 %v629
    %v1765 = vunpack.c.h.b16 %v629
    %v1766 = vunpack.c.l.b16 %v630
    %v1767 = vunpack.c.h.b16 %v630
    %v1768 = vunpack.c.l.b16 %v631
    %v1769 = vunpack.c.h.b16 %v631
    %v1770 = vunpack.c.l.b16 %v632
    %v1771 = vunpack.c.h.b16 %v632
    %v1772 = vunpack.c.l.b16 %v633
    %v1773 = vunpack.c.h.b16 %v633
    %v1774 = vunpack.c.l.b16 %v634
    %v1775 = vunpack.c.h.b16 %v634
    %v1776 = vunpack.c.l.b16 %v635
    %v1777 = vunpack.c.h.b16 %v635
    %v1778 = vunpack.c.l.b16 %v636
    %v1779 = vunpack.c.h.b16 %v636
    %v1780 = vunpack.c.l.b16 %v637
    %v1781 = vunpack.c.h.b16 %v637
    %v1782 = vunpack.c.l.b16 %v638
    %v1783 = vunpack.c.h.b16 %v638
    %v1784 = vunpack.c.l.b16 %v639
    %v1785 = vunpack.c.h.b16 %v639
    %v1786 = vunpack.c.l.b16 %v640
    %v1787 = vunpack.c.h.b16 %v640
    %v1788 = vunpack.c.l.b16 %v641
    %v1789 = vunpack.c.h.b16 %v641
    %v1790 = vunpack.c.l.b16 %v642
    %v1791 = vunpack.c.h.b16 %v642
    %v1792 = vunpack.c.l.b16 %v643
    %v1793 = vunpack.c.h.b16 %v643
    %v1794 = vunpack.c.l.b16 %v644
    %v1795 = vunpack.c.h.b16 %v644
    %v1796 = vunpack.c.l.b16 %v645
    %v1797 = vunpack.c.h.b16 %v645
    %v1798 = vunpack.c.l.b16 %v646
    %v1799 = vunpack.c.h.b16 %v646
    %v1800 = vunpack.c.l.b16 %v647
    %v1801 = vunpack.c.h.b16 %v647
    %v1802 = vunpack.c.l.b16 %v648
    %v1803 = vunpack.c.h.b16 %v648
    %v1804 = vunpack.c.l.b16 %v649
    %v1805 = vunpack.c.h.b16 %v649
    %v1806 = vunpack.c.l.b16 %v650
    %v1807 = vunpack.c.h.b16 %v650
    %v1808 = vunpack.c.l.b16 %v651
    %v1809 = vunpack.c.h.b16 %v651
    %v1810 = vunpack.c.l.b16 %v652
    %v1811 = vunpack.c.h.b16 %v652
    %v1812 = vunpack.c.l.b16 %v653
    %v1813 = vunpack.c.h.b16 %v653
    %v1814 = vunpack.c.l.b16 %v654
    %v1815 = vunpack.c.h.b16 %v654
    %v1816 = vunpack.c.l.b16 %v655
    %v1817 = vunpack.c.h.b16 %v655
    %v1818 = vunpack.c.l.b16 %v656
    %v1819 = vunpack.c.h.b16 %v656
    %v1820 = vunpack.c.l.b16 %v657
    %v1821 = vunpack.c.h.b16 %v657
    %v1822 = vunpack.c.l.b16 %v658
    %v1823 = vunpack.c.h.b16 %v658
    %v1824 = vunpack.c.l.b16 %v659
    %v1825 = vunpack.c.h.b16 %v659
    %v1826 = vunpack.c.l.b16 %v660
    %v1827 = vunpack.c.h.b16 %v660
    %v1828 = vunpack.c.l.b16 %v661
    %v1829 = vunpack.c.h.b16 %v661
    %v1830 = vunpack.c.l.b16 %v662
    %v1831 = vunpack.c.h.b16 %v662
    %v1832 = vunpack.c.l.b16 %v663
    %v1833 = vunpack.c.h.b16 %v663
    %v1834 = vunpack.c.l.b16 %v664
    %v1835 = vunpack.c.h.b16 %v664
    %v1836 = vunpack.c.l.b16 %v665
    %v1837 = vunpack.c.h.b16 %v665
    %v1838 = vunpack.c.l.b16 %v666
    %v1839 = vunpack.c.h.b16 %v666
    %v1840 = vunpack.c.l.b16 %v667
    %v1841 = vunpack.c.h.b16 %v667
    %v1842 = vunpack.c.l.b16 %v668
    %v1843 = vunpack.c.h.b16 %v668
    %v1844 = vunpack.c.l.b16 %v669
    %v1845 = vunpack.c.h.b16 %v669
    %v1846 = vunpack.c.l.b16 %v670
    %v1847 = vunpack.c.h.b16 %v670
    %v1848 = vunpack.c.l.b16 %v671
    %v1849 = vunpack.c.h.b16 %v671
    %v1850 = vunpack.c.l.b16 %v672
    %v1851 = vunpack.c.h.b16 %v672
    %v1852 = vunpack.c.l.b16 %v673
    %v1853 = vunpack.c.h.b16 %v673
    %v1854 = vunpack.c.l.b16 %v674
    %v1855 = vunpack.c.h.b16 %v674
    %v1856 = vunpack.c.l.b16 %v675
    %v1857 = vunpack.c.h.b16 %v675
    %v1858 = vunpack.c.l.b16 %v676
    %v1859 = vunpack.c.h.b16 %v676
    %v1860 = vunpack.c.l.b16 %v677
    %v1861 = vunpack.c.h.b16 %v677
    %v1862 = vunpack.c.l.b16 %v678
    %v1863 = vunpack.c.h.b16 %v678
    %v1864 = vunpack.c.l.b16 %v679
    %v1865 = vunpack.c.h.b16 %v679
    %v1866 = vunpack.c.l.b16 %v680
    %v1867 = vunpack.c.h.b16 %v680
    %v1868 = vunpack.c.l.b16 %v681
    %v1869 = vunpack.c.h.b16 %v681
    %v1870 = vunpack.c.l.b16 %v682
    %v1871 = vunpack.c.h.b16 %v682
    %v1872 = vunpack.c.l.b16 %v683
    %v1873 = vunpack.c.h.b16 %v683
    %v1874 = vunpack.c.l.b16 %v684
    %v1875 = vunpack.c.h.b16 %v684
    %v1876 = vunpack.c.l.b16 %v685
    %v1877 = vunpack.c.h.b16 %v685
    %v1878 = vunpack.c.l.b16 %v686
    %v1879 = vunpack.c.h.b16 %v686
    %v1880 = vunpack.c.l.b16 %v687
    %v1881 = vunpack.c.h.b16 %v687
    %v1882 = vunpack.c.l.b16 %v688
    %v1883 = vunpack.c.h.b16 %v688
    %v1884 = vunpack.c.l.b16 %v689
    %v1885 = vunpack.c.h.b16 %v689
    %v1886 = vunpack.c.l.b16 %v690
    %v1887 = vunpack.c.h.b16 %v690
    %v1888 = vunpack.c.l.b16 %v691
    %v1889 = vunpack.c.h.b16 %v691
    %v1890 = vunpack.c.l.b16 %v692
    %v1891 = vunpack.c.h.b16 %v692
    %v1892 = vunpack.c.l.b16 %v693
    %v1893 = vunpack.c.h.b16 %v693
    %v1894 = vunpack.c.l.b16 %v694
    %v1895 = vunpack.c.h.b16 %v694
    %v1896 = vunpack.c.l.b16 %v695
    %v1897 = vunpack.c.h.b16 %v695
    %v1898 = vunpack.c.l.b16 %v696
    %v1899 = vunpack.c.h.b16 %v696
    %v1900 = vunpack.c.l.b16 %v697
    %v1901 = vunpack.c.h.b16 %v697
    %v1902 = vunpack.c.l.b16 %v698
    %v1903 = vunpack.c.h.b16 %v698
    %v1904 = vunpack.c.l.b16 %v699
    %v1905 = vunpack.c.h.b16 %v699
    %v1906 = vunpack.c.l.b16 %v700
    %v1907 = vunpack.c.h.b16 %v700
    %v1908 = vunpack.c.l.b16 %v701
    %v1909 = vunpack.c.h.b16 %v701
    %v1910 = vunpack.c.l.b16 %v702
    %v1911 = vunpack.c.h.b16 %v702
    %v1912 = vunpack.c.l.b16 %v703
    %v1913 = vunpack.c.h.b16 %v703
    %v1914 = vunpack.c.l.b16 %v704
    %v1915 = vunpack.c.h.b16 %v704
    %v1916 = vunpack.c.l.b16 %v705
    %v1917 = vunpack.c.h.b16 %v705
    %v1918 = vunpack.c.l.b16 %v706
    %v1919 = vunpack.c.h.b16 %v706
    %v1920 = vunpack.c.l.b16 %v707
    %v1921 = vunpack.c.h.b16 %v707
    %v1922 = vunpack.c.l.b16 %v708
    %v1923 = vunpack.c.h.b16 %v708
    %v1924 = vunpack.c.l.b16 %v709
    %v1925 = vunpack.c.h.b16 %v709
    %v1926 = vunpack.c.l.b16 %v710
    %v1927 = vunpack.c.h.b16 %v710
    %v1928 = vunpack.c.l.b16 %v711
    %v1929 = vunpack.c.h.b16 %v711
    %v1930 = vunpack.c.l.b16 %v712
    %v1931 = vunpack.c.h.b16 %v712
    %v1932 = vunpack.c.l.b16 %v713
    %v1933 = vunpack.c.h.b16 %v713
    %v1934 = vunpack.c.l.b16 %v714
    %v1935 = vunpack.c.h.b16 %v714
    %v1936 = vunpack.c.l.b16 %v715
    %v1937 = vunpack.c.h.b16 %v715
    %v1938 = vunpack.c.l.b16 %v716
    %v1939 = vunpack.c.h.b16 %v716
    %v1940 = vunpack.c.l.b16 %v717
    %v1941 = vunpack.c.h.b16 %v717
    %v1942 = vunpack.c.l.b16 %v718
    %v1943 = vunpack.c.h.b16 %v718
    %v1944 = vunpack.c.l.b16 %v719
    %v1945 = vunpack.c.h.b16 %v719
    %v1946 = vunpack.c.l.b16 %v720
    %v1947 = vunpack.c.h.b16 %v720
    %v1948 = vunpack.c.l.b16 %v721
    %v1949 = vunpack.c.h.b16 %v721
    %v1950 = vunpack.c.l.b16 %v722
    %v1951 = vunpack.c.h.b16 %v722
    %v1952 = vunpack.c.l.b16 %v723
    %v1953 = vunpack.c.h.b16 %v723
    %v1954 = vunpack.c.l.b16 %v724
    %v1955 = vunpack.c.h.b16 %v724
    %v1956 = vunpack.c.l.b16 %v725
    %v1957 = vunpack.c.h.b16 %v725
    %v1958 = vunpack.c.l.b16 %v726
    %v1959 = vunpack.c.h.b16 %v726
    %v1960 = vunpack.c.l.b16 %v727
    %v1961 = vunpack.c.h.b16 %v727
    %v1962 = vunpack.c.l.b16 %v728
    %v1963 = vunpack.c.h.b16 %v728
    %v1964 = vunpack.c.l.b16 %v729
    %v1965 = vunpack.c.h.b16 %v729
    %v1966 = vunpack.c.l.b16 %v730
    %v1967 = vunpack.c.h.b16 %v730
    %v1968 = vunpack.c.l.b16 %v731
    %v1969 = vunpack.c.h.b16 %v731
    %v1970 = vunpack.c.l.b16 %v732
    %v1971 = vunpack.c.h.b16 %v732
    %v1972 = vunpack.c.l.b16 %v733
    %v1973 = vunpack.c.h.b16 %v733
    %v1974 = vunpack.c.l.b16 %v734
    %v1975 = vunpack.c.h.b16 %v734
    %v1976 = vunpack.c.l.b16 %v735
    %v1977 = vunpack.c.h.b16 %v735
    %v1978 = vunpack.c.l.b16 %v736
    %v1979 = vunpack.c.h.b16 %v736
    %v1980 = vunpack.c.l.b16 %v737
    %v1981 = vunpack.c.h.b16 %v737
    %v1982 = vunpack.c.l.b16 %v738
    %v1983 = vunpack.c.h.b16 %v738
    %v1984 = vunpack.c.l.b16 %v739
    %v1985 = vunpack.c.h.b16 %v739
    %v1986 = vunpack.c.l.b16 %v740
    %v1987 = vunpack.c.h.b16 %v740
    %v1988 = vunpack.c.l.b16 %v741
    %v1989 = vunpack.c.h.b16 %v741
    %v1990 = vunpack.c.l.b16 %v742
    %v1991 = vunpack.c.h.b16 %v742
    %v1992 = vunpack.c.l.b16 %v743
    %v1993 = vunpack.c.h.b16 %v743
    %v1994 = vunpack.c.l.b16 %v744
    %v1995 = vunpack.c.h.b16 %v744
    %v1996 = vunpack.c.l.b16 %v745
    %v1997 = vunpack.c.h.b16 %v745
    %v1998 = vunpack.c.l.b16 %v746
    %v1999 = vunpack.c.h.b16 %v746
    %v2000 = vunpack.c.l.b16 %v747
    %v2001 = vunpack.c.h.b16 %v747
    %v2002 = vunpack.c.l.b16 %v748
    %v2003 = vunpack.c.h.b16 %v748
    %v2004 = vunpack.c.l.b16 %v749
    %v2005 = vunpack.c.h.b16 %v749
    %v2006 = vunpack.c.l.b16 %v750
    %v2007 = vunpack.c.h.b16 %v750
    %v2008 = vunpack.c.l.b16 %v751
    %v2009 = vunpack.c.h.b16 %v751
    %v2010 = vunpack.c.l.b16 %v752
    %v2011 = vunpack.c.h.b16 %v752
    %v2012 = vunpack.c.l.b16 %v753
    %v2013 = vunpack.c.h.b16 %v753
    %v2014 = vunpack.c.l.b16 %v754
    %v2015 = vunpack.c.h.b16 %v754
    %v2016 = vunpack.c.l.b16 %v755
    %v2017 = vunpack.c.h.b16 %v755
    %v2018 = vunpack.c.l.b16 %v756
    %v2019 = vunpack.c.h.b16 %v756
    %v2020 = vunpack.c.l.b16 %v757
    %v2021 = vunpack.c.h.b16 %v757
    %v2022 = vunpack.c.l.b16 %v758
    %v2023 = vunpack.c.h.b16 %v758
    %v2024 = vunpack.c.l.b16 %v759
    %v2025 = vunpack.c.h.b16 %v759
    %v2026 = vunpack.c.l.b16 %v760
    %v2027 = vunpack.c.h.b16 %v760
    %v2028 = vunpack.c.l.b16 %v761
    %v2029 = vunpack.c.h.b16 %v761
    %v2030 = vunpack.c.l.b16 %v762
    %v2031 = vunpack.c.h.b16 %v762
    %v2032 = vunpack.c.l.b16 %v763
    %v2033 = vunpack.c.h.b16 %v763
    %v2034 = vunpack.c.l.b16 %v764
    %v2035 = vunpack.c.h.b16 %v764
    %v2036 = vunpack.c.l.b16 %v765
    %v2037 = vunpack.c.h.b16 %v765
    %v2038 = vunpack.c.l.b16 %v766
    %v2039 = vunpack.c.h.b16 %v766
    %v2040 = vunpack.c.l.b16 %v767
    %v2041 = vunpack.c.h.b16 %v767
    %v2042 = vunpack.c.l.b16 %v768
    %v2043 = vunpack.c.h.b16 %v768
    %v2044 = vunpack.c.l.b16 %v769
    %v2045 = vunpack.c.h.b16 %v769
    %v2046 = vunpack.c.l.b16 %v770
    %v2047 = vunpack.c.h.b16 %v770
    %v2048 = vunpack.c.l.b16 %v771
    %v2049 = vunpack.c.h.b16 %v771
    %v2050 = vunpack.c.l.b16 %v772
    %v2051 = vunpack.c.h.b16 %v772
    %v2052 = vunpack.c.l.b16 %v773
    %v2053 = vunpack.c.h.b16 %v773
    %v2054 = vunpack.c.l.b16 %v774
    %v2055 = vunpack.c.h.b16 %v774
    %v2056 = vunpack.c.l.b16 %v775
    %v2057 = vunpack.c.h.b16 %v775
    %v2058 = vunpack.c.l.b16 %v776
    %v2059 = vunpack.c.h.b16 %v776
    %v2060 = vunpack.c.l.b16 %v777
    %v2061 = vunpack.c.h.b16 %v777
    %v2062 = vunpack.c.l.b16 %v778
    %v2063 = vunpack.c.h.b16 %v778
    %v2064 = vunpack.c.l.b16 %v779
    %v2065 = vunpack.c.h.b16 %v779
    %v2066 = vunpack.c.l.b16 %v780
    %v2067 = vunpack.c.h.b16 %v780
    %v2068 = vunpack.c.l.b16 %v781
    %v2069 = vunpack.c.h.b16 %v781
    %v2070 = vunpack.c.l.b16 %v782
    %v2071 = vunpack.c.h.b16 %v782
    %v2072 = vunpack.c.l.b16 %v783
    %v2073 = vunpack.c.h.b16 %v783
    %v2074 = vunpack.c.l.b16 %v784
    %v2075 = vunpack.c.h.b16 %v784
    %v2076 = vunpack.c.l.b16 %v785
    %v2077 = vunpack.c.h.b16 %v785
    %v2078 = vunpack.c.l.b16 %v786
    %v2079 = vunpack.c.h.b16 %v786
    %v2080 = vunpack.c.l.b16 %v787
    %v2081 = vunpack.c.h.b16 %v787
    %v2082 = vunpack.c.l.b16 %v788
    %v2083 = vunpack.c.h.b16 %v788
    %v2084 = vunpack.c.l.b16 %v789
    %v2085 = vunpack.c.h.b16 %v789
    %v2086 = vunpack.c.l.b16 %v790
    %v2087 = vunpack.c.h.b16 %v790
    %v2088 = vunpack.c.l.b16 %v791
    %v2089 = vunpack.c.h.b16 %v791
    %v2090 = vunpack.c.l.b16 %v792
    %v2091 = vunpack.c.h.b16 %v792
    %v2092 = vunpack.c.l.b16 %v793
    %v2093 = vunpack.c.h.b16 %v793
    %v2094 = vunpack.c.l.b16 %v794
    %v2095 = vunpack.c.h.b16 %v794
    %v2096 = vunpack.c.l.b16 %v795
    %v2097 = vunpack.c.h.b16 %v795
    %v2098 = vunpack.c.l.b16 %v796
    %v2099 = vunpack.c.h.b16 %v796
    %v2100 = vunpack.c.l.b16 %v797
    %v2101 = vunpack.c.h.b16 %v797
    %v2102 = vunpack.c.l.b16 %v798
    %v2103 = vunpack.c.h.b16 %v798
    %v2104 = vunpack.c.l.b16 %v799
    %v2105 = vunpack.c.h.b16 %v799
    %v2106 = vunpack.c.l.b16 %v800
    %v2107 = vunpack.c.h.b16 %v800
    %v2108 = vunpack.c.l.b16 %v801
    %v2109 = vunpack.c.h.b16 %v801
    %v2110 = vunpack.c.l.b16 %v802
    %v2111 = vunpack.c.h.b16 %v802
    %v2112 = vunpack.c.l.b16 %v803
    %v2113 = vunpack.c.h.b16 %v803
    %v2114 = vunpack.c.l.b16 %v804
    %v2115 = vunpack.c.h.b16 %v804
    %v2116 = vunpack.c.l.b16 %v805
    %v2117 = vunpack.c.h.b16 %v805
    %v2118 = vunpack.c.l.b16 %v806
    %v2119 = vunpack.c.h.b16 %v806
    %v2120 = vunpack.c.l.b16 %v807
    %v2121 = vunpack.c.h.b16 %v807
    %v2122 = vunpack.c.l.b16 %v808
    %v2123 = vunpack.c.h.b16 %v808
    %v2124 = vunpack.c.l.b16 %v809
    %v2125 = vunpack.c.h.b16 %v809
    %v2126 = vunpack.c.l.b16 %v810
    %v2127 = vunpack.c.h.b16 %v810
    %v2128 = vunpack.c.l.b16 %v811
    %v2129 = vunpack.c.h.b16 %v811
    %v2130 = vunpack.c.l.b16 %v812
    %v2131 = vunpack.c.h.b16 %v812
    %v2132 = vunpack.c.l.b16 %v813
    %v2133 = vunpack.c.h.b16 %v813
    %v2134 = vunpack.c.l.b16 %v814
    %v2135 = vunpack.c.h.b16 %v814
    %v2136 = vunpack.c.l.b16 %v815
    %v2137 = vunpack.c.h.b16 %v815
    %v2138 = vunpack.c.l.b16 %v816
    %v2139 = vunpack.c.h.b16 %v816
    %v2140 = vunpack.c.l.b16 %v817
    %v2141 = vunpack.c.h.b16 %v817
    %v2142 = vunpack.c.l.b16 %v818
    %v2143 = vunpack.c.h.b16 %v818
    %v2144 = vunpack.c.l.b16 %v819
    %v2145 = vunpack.c.h.b16 %v819
    %v2146 = vunpack.c.l.b16 %v820
    %v2147 = vunpack.c.h.b16 %v820
    %v2148 = vunpack.c.l.b16 %v821
    %v2149 = vunpack.c.h.b16 %v821
    %v2150 = vunpack.c.l.b16 %v822
    %v2151 = vunpack.c.h.b16 %v822
    %v2152 = vunpack.c.l.b16 %v823
    %v2153 = vunpack.c.h.b16 %v823
    %v2154 = vunpack.c.l.b16 %v824
    %v2155 = vunpack.c.h.b16 %v824
    %v2156 = vunpack.c.l.b16 %v825
    %v2157 = vunpack.c.h.b16 %v825
    %v2158 = vunpack.c.l.b16 %v826
    %v2159 = vunpack.c.h.b16 %v826
    %v2160 = vunpack.c.l.b16 %v827
    %v2161 = vunpack.c.h.b16 %v827
    %v2162 = vunpack.c.l.b16 %v828
    %v2163 = vunpack.c.h.b16 %v828
    %v2164 = vunpack.c.l.b16 %v829
    %v2165 = vunpack.c.h.b16 %v829
    %v2166 = vunpack.c.l.b16 %v830
    %v2167 = vunpack.c.h.b16 %v830
    %v2168 = vunpack.c.l.b16 %v831
    %v2169 = vunpack.c.h.b16 %v831
    %v2170 = vunpack.c.l.b16 %v832
    %v2171 = vunpack.c.h.b16 %v832
    %v2172 = vunpack.c.l.b16 %v833
    %v2173 = vunpack.c.h.b16 %v833
    %v2174 = vunpack.c.l.b16 %v834
    %v2175 = vunpack.c.h.b16 %v834
    %v2176 = vunpack.c.l.b16 %v835
    %v2177 = vunpack.c.h.b16 %v835
    %v2178 = vunpack.c.l.b16 %v836
    %v2179 = vunpack.c.h.b16 %v836
    %v2180 = vunpack.c.l.b16 %v837
    %v2181 = vunpack.c.h.b16 %v837
    %v2182 = vunpack.c.l.b16 %v838
    %v2183 = vunpack.c.h.b16 %v838
    %v2184 = vunpack.c.l.b16 %v839
    %v2185 = vunpack.c.h.b16 %v839
    %v2186 = vunpack.c.l.b16 %v840
    %v2187 = vunpack.c.h.b16 %v840
    %v2188 = vunpack.c.l.b16 %v841
    %v2189 = vunpack.c.h.b16 %v841
    %v2190 = vunpack.c.l.b16 %v842
    %v2191 = vunpack.c.h.b16 %v842
    %v2192 = vunpack.c.l.b16 %v843
    %v2193 = vunpack.c.h.b16 %v843
    %v2194 = vunpack.c.l.b16 %v844
    %v2195 = vunpack.c.h.b16 %v844
    %v2196 = vunpack.c.l.b16 %v845
    %v2197 = vunpack.c.h.b16 %v845
    %v2198 = vunpack.c.l.b16 %v846
    %v2199 = vunpack.c.h.b16 %v846
    %v2200 = vunpack.c.l.b16 %v847
    %v2201 = vunpack.c.h.b16 %v847
    %v2202 = vunpack.c.l.b16 %v848
    %v2203 = vunpack.c.h.b16 %v848
    %v2204 = vunpack.c.l.b16 %v849
    %v2205 = vunpack.c.h.b16 %v849
    %v2206 = vunpack.c.l.b16 %v850
    %v2207 = vunpack.c.h.b16 %v850
    %v2208 = vunpack.c.l.b16 %v851
    %v2209 = vunpack.c.h.b16 %v851
    %v2210 = vunpack.c.l.b16 %v852
    %v2211 = vunpack.c.h.b16 %v852
    %v2212 = vunpack.c.l.b16 %v853
    %v2213 = vunpack.c.h.b16 %v853
    %v2214 = vunpack.c.l.b16 %v854
    %v2215 = vunpack.c.h.b16 %v854
    %v2216 = vunpack.c.l.b16 %v855
    %v2217 = vunpack.c.h.b16 %v855
    %v2218 = vunpack.c.l.b16 %v856
    %v2219 = vunpack.c.h.b16 %v856
    %v2220 = vunpack.c.l.b16 %v857
    %v2221 = vunpack.c.h.b16 %v857
    %v2222 = vunpack.c.l.b16 %v858
    %v2223 = vunpack.c.h.b16 %v858
    %v2224 = vunpack.c.l.b16 %v859
    %v2225 = vunpack.c.h.b16 %v859
    %v2226 = vunpack.c.l.b16 %v860
    %v2227 = vunpack.c.h.b16 %v860
    %v2228 = vunpack.c.l.b16 %v861
    %v2229 = vunpack.c.h.b16 %v861
    %v2230 = vunpack.c.l.b16 %v862
    %v2231 = vunpack.c.h.b16 %v862
    %v2232 = vunpack.c.l.b16 %v863
    %v2233 = vunpack.c.h.b16 %v863
    %v2234 = vunpack.c.l.b16 %v864
    %v2235 = vunpack.c.h.b16 %v864
    %v2236 = vunpack.c.l.b16 %v865
    %v2237 = vunpack.c.h.b16 %v865
    %v2238 = vunpack.c.l.b16 %v866
    %v2239 = vunpack.c.h.b16 %v866
    %v2240 = vunpack.c.l.b16 %v867
    %v2241 = vunpack.c.h.b16 %v867
    %v2242 = vunpack.c.l.b16 %v868
    %v2243 = vunpack.c.h.b16 %v868
    %v2244 = vunpack.c.l.b16 %v869
    %v2245 = vunpack.c.h.b16 %v869
    %v2246 = vunpack.c.l.b16 %v870
    %v2247 = vunpack.c.h.b16 %v870
    %v2248 = vunpack.c.l.b16 %v871
    %v2249 = vunpack.c.h.b16 %v871
    %v2250 = vunpack.c.l.b16 %v872
    %v2251 = vunpack.c.h.b16 %v872
    %v2252 = vunpack.c.l.b16 %v873
    %v2253 = vunpack.c.h.b16 %v873
    %v2254 = vunpack.c.l.b16 %v874
    %v2255 = vunpack.c.h.b16 %v874
    %v2256 = vunpack.c.l.b16 %v875
    %v2257 = vunpack.c.h.b16 %v875
    %v2258 = vunpack.c.l.b16 %v876
    %v2259 = vunpack.c.h.b16 %v876
    %v2260 = vunpack.c.l.b16 %v877
    %v2261 = vunpack.c.h.b16 %v877
    %v2262 = vunpack.c.l.b16 %v878
    %v2263 = vunpack.c.h.b16 %v878
    %v2264 = vunpack.c.l.b16 %v879
    %v2265 = vunpack.c.h.b16 %v879
    %v2266 = vunpack.c.l.b16 %v880
    %v2267 = vunpack.c.h.b16 %v880
    %v2268 = vunpack.c.l.b16 %v881
    %v2269 = vunpack.c.h.b16 %v881
    %v2270 = vunpack.c.l.b16 %v882
    %v2271 = vunpack.c.h.b16 %v882
    %v2272 = vunpack.c.l.b16 %v883
    %v2273 = vunpack.c.h.b16 %v883
    %v2274 = vunpack.c.l.b16 %v884
    %v2275 = vunpack.c.h.b16 %v884
    %v2276 = vunpack.c.l.b16 %v885
    %v2277 = vunpack.c.h.b16 %v885
    %v2278 = vunpack.c.l.b16 %v886
    %v2279 = vunpack.c.h.b16 %v886
    %v2280 = vunpack.c.l.b16 %v887
    %v2281 = vunpack.c.h.b16 %v887
    %v2282 = vunpack.c.l.b16 %v888
    %v2283 = vunpack.c.h.b16 %v888
    %v2284 = vunpack.c.l.b16 %v889
    %v2285 = vunpack.c.h.b16 %v889
    %v2286 = vunpack.c.l.b16 %v890
    %v2287 = vunpack.c.h.b16 %v890
    %v2288 = vunpack.c.l.b16 %v891
    %v2289 = vunpack.c.h.b16 %v891
    %v2290 = vunpack.c.l.b16 %v892
    %v2291 = vunpack.c.h.b16 %v892
    %v2292 = vunpack.c.l.b16 %v893
    %v2293 = vunpack.c.h.b16 %v893
    %v2294 = vunpack.c.l.b16 %v894
    %v2295 = vunpack.c.h.b16 %v894
    %v2296 = vunpack.c.l.b16 %v895
    %v2297 = vunpack.c.h.b16 %v895
    %v2298 = vunpack.c.l.b16 %v896
    %v2299 = vunpack.c.h.b16 %v896
    %v2300 = vunpack.c.l.b16 %v897
    %v2301 = vunpack.c.h.b16 %v897
    %v2302 = vunpack.c.l.b16 %v898
    %v2303 = vunpack.c.h.b16 %v898
    %v2304 = vunpack.c.l.b16 %v899
    %v2305 = vunpack.c.h.b16 %v899
    %v2306 = vunpack.c.l.b16 %v900
    %v2307 = vunpack.c.h.b16 %v900
    %v2308 = vunpack.c.l.b16 %v901
    %v2309 = vunpack.c.h.b16 %v901
    %v2310 = vunpack.c.l.b16 %v902
    %v2311 = vunpack.c.h.b16 %v902
    %v2312 = vunpack.c.l.b16 %v903
    %v2313 = vunpack.c.h.b16 %v903
    %v2314 = vunpack.c.l.b16 %v904
    %v2315 = vunpack.c.h.b16 %v904
    %v2316 = vunpack.c.l.b16 %v905
    %v2317 = vunpack.c.h.b16 %v905
    %v2318 = vunpack.c.l.b16 %v906
    %v2319 = vunpack.c.h.b16 %v906
    %v2320 = vunpack.c.l.b16 %v907
    %v2321 = vunpack.c.h.b16 %v907
    %v2322 = vunpack.c.l.b16 %v908
    %v2323 = vunpack.c.h.b16 %v908
    %v2324 = vunpack.c.l.b16 %v909
    %v2325 = vunpack.c.h.b16 %v909
    %v2326 = vunpack.c.l.b16 %v910
    %v2327 = vunpack.c.h.b16 %v910
    %v2328 = vunpack.c.l.b16 %v911
    %v2329 = vunpack.c.h.b16 %v911
    %v2330 = vunpack.c.l.b16 %v912
    %v2331 = vunpack.c.h.b16 %v912
    %v2332 = vunpack.c.l.b16 %v913
    %v2333 = vunpack.c.h.b16 %v913
    %v2334 = vunpack.c.l.b16 %v914
    %v2335 = vunpack.c.h.b16 %v914
    %v2336 = vunpack.c.l.b16 %v915
    %v2337 = vunpack.c.h.b16 %v915
    %v2338 = vunpack.c.l.b16 %v916
    %v2339 = vunpack.c.h.b16 %v916
    %v2340 = vunpack.c.l.b16 %v917
    %v2341 = vunpack.c.h.b16 %v917
    %v2342 = vunpack.c.l.b16 %v918
    %v2343 = vunpack.c.h.b16 %v918
    %v2344 = vunpack.c.l.b16 %v919
    %v2345 = vunpack.c.h.b16 %v919
    %v2346 = vunpack.c.l.b16 %v920
    %v2347 = vunpack.c.h.b16 %v920
    %v2348 = vunpack.c.l.b16 %v921
    %v2349 = vunpack.c.h.b16 %v921
    %v2350 = vunpack.c.l.b16 %v922
    %v2351 = vunpack.c.h.b16 %v922
    %v2352 = vunpack.c.l.b16 %v923
    %v2353 = vunpack.c.h.b16 %v923
    %v2354 = vunpack.c.l.b16 %v924
    %v2355 = vunpack.c.h.b16 %v924
    %v2356 = vunpack.c.l.b16 %v925
    %v2357 = vunpack.c.h.b16 %v925
    %v2358 = vunpack.c.l.b16 %v926
    %v2359 = vunpack.c.h.b16 %v926
    %v2360 = vunpack.c.l.b16 %v927
    %v2361 = vunpack.c.h.b16 %v927
    %v2362 = vunpack.c.l.b16 %v928
    %v2363 = vunpack.c.h.b16 %v928
    %v2364 = vunpack.c.l.b16 %v929
    %v2365 = vunpack.c.h.b16 %v929
    %v2366 = vunpack.c.l.b16 %v930
    %v2367 = vunpack.c.h.b16 %v930
    %v2368 = vunpack.c.l.b16 %v931
    %v2369 = vunpack.c.h.b16 %v931
    %v2370 = vunpack.c.l.b16 %v932
    %v2371 = vunpack.c.h.b16 %v932
    %v2372 = vunpack.c.l.b16 %v933
    %v2373 = vunpack.c.h.b16 %v933
    %v2374 = vunpack.c.l.b16 %v934
    %v2375 = vunpack.c.h.b16 %v934
    %v2376 = vunpack.c.l.b16 %v935
    %v2377 = vunpack.c.h.b16 %v935
    %v2378 = vunpack.c.l.b16 %v936
    %v2379 = vunpack.c.h.b16 %v936
    %v2380 = vunpack.c.l.b16 %v937
    %v2381 = vunpack.c.h.b16 %v937
    %v2382 = vunpack.c.l.b16 %v938
    %v2383 = vunpack.c.h.b16 %v938
    %v2384 = vunpack.c.l.b16 %v939
    %v2385 = vunpack.c.h.b16 %v939
    %v2386 = vunpack.c.l.b16 %v940
    %v2387 = vunpack.c.h.b16 %v940
    %v2388 = vunpack.c.l.b16 %v941
    %v2389 = vunpack.c.h.b16 %v941
    %v2390 = vunpack.c.l.b16 %v942
    %v2391 = vunpack.c.h.b16 %v942
    %v2392 = vunpack.c.l.b16 %v943
    %v2393 = vunpack.c.h.b16 %v943
    %v2394 = vunpack.c.l.b16 %v944
    %v2395 = vunpack.c.h.b16 %v944
    %v2396 = vunpack.c.l.b16 %v945
    %v2397 = vunpack.c.h.b16 %v945
    %v2398 = vunpack.c.l.b16 %v946
    %v2399 = vunpack.c.h.b16 %v946
    %v2400 = vunpack.c.l.b16 %v947
    %v2401 = vunpack.c.h.b16 %v947
    %v2402 = vunpack.c.l.b16 %v948
    %v2403 = vunpack.c.h.b16 %v948
    %v2404 = vunpack.c.l.b16 %v949
    %v2405 = vunpack.c.h.b16 %v949
    %v2406 = vunpack.c.l.b16 %v950
    %v2407 = vunpack.c.h.b16 %v950
    %v2408 = vunpack.c.l.b16 %v951
    %v2409 = vunpack.c.h.b16 %v951
    %v2410 = vunpack.c.l.b16 %v952
    %v2411 = vunpack.c.h.b16 %v952
    %v2412 = vunpack.c.l.b16 %v953
    %v2413 = vunpack.c.h.b16 %v953
    %v2414 = vunpack.c.l.b16 %v954
    %v2415 = vunpack.c.h.b16 %v954
    %v2416 = vunpack.c.l.b16 %v955
    %v2417 = vunpack.c.h.b16 %v955
    %v2418 = vunpack.c.l.b16 %v956
    %v2419 = vunpack.c.h.b16 %v956
    %v2420 = vunpack.c.l.b16 %v957
    %v2421 = vunpack.c.h.b16 %v957
    %v2422 = vunpack.c.l.b16 %v958
    %v2423 = vunpack.c.h.b16 %v958
    %v2424 = vunpack.c.l.b16 %v959
    %v2425 = vunpack.c.h.b16 %v959
    %v2426 = vunpack.c.l.b16 %v960
    %v2427 = vunpack.c.h.b16 %v960
    %v2428 = vunpack.c.l.b16 %v961
    %v2429 = vunpack.c.h.b16 %v961
    %v2430 = vunpack.c.l.b16 %v962
    %v2431 = vunpack.c.h.b16 %v962
    %v2432 = vunpack.c.l.b16 %v963
    %v2433 = vunpack.c.h.b16 %v963
    %v2434 = vunpack.c.l.b16 %v964
    %v2435 = vunpack.c.h.b16 %v964
    %v2436 = vunpack.c.l.b16 %v965
    %v2437 = vunpack.c.h.b16 %v965
    %v2438 = vunpack.c.l.b16 %v966
    %v2439 = vunpack.c.h.b16 %v966
    %v2440 = vunpack.c.l.b16 %v967
    %v2441 = vunpack.c.h.b16 %v967
    %v2442 = vunpack.c.l.b16 %v968
    %v2443 = vunpack.c.h.b16 %v968
    %v2444 = vunpack.c.l.b16 %v969
    %v2445 = vunpack.c.h.b16 %v969
    %v2446 = vunpack.c.l.b16 %v970
    %v2447 = vunpack.c.h.b16 %v970
    %v2448 = vunpack.c.l.b16 %v971
    %v2449 = vunpack.c.h.b16 %v971
    %v2450 = vunpack.c.l.b16 %v972
    %v2451 = vunpack.c.h.b16 %v972
    %v2452 = vunpack.c.l.b16 %v973
    %v2453 = vunpack.c.h.b16 %v973
    %v2454 = vunpack.c.l.b16 %v974
    %v2455 = vunpack.c.h.b16 %v974
    %v2456 = vunpack.c.l.b16 %v975
    %v2457 = vunpack.c.h.b16 %v975
    %v2458 = vunpack.c.l.b16 %v976
    %v2459 = vunpack.c.h.b16 %v976
    %v2460 = vunpack.c.l.b16 %v977
    %v2461 = vunpack.c.h.b16 %v977
    %v2462 = vunpack.c.l.b16 %v978
    %v2463 = vunpack.c.h.b16 %v978
    %v2464 = vunpack.c.l.b16 %v979
    %v2465 = vunpack.c.h.b16 %v979
    %v2466 = vunpack.c.l.b16 %v980
    %v2467 = vunpack.c.h.b16 %v980
    %v2468 = vunpack.c.l.b16 %v981
    %v2469 = vunpack.c.h.b16 %v981
    %v2470 = vunpack.c.l.b16 %v982
    %v2471 = vunpack.c.h.b16 %v982
    %v2472 = vunpack.c.l.b16 %v983
    %v2473 = vunpack.c.h.b16 %v983
    %v2474 = vunpack.c.l.b16 %v984
    %v2475 = vunpack.c.h.b16 %v984
    %v2476 = vunpack.c.l.b16 %v985
    %v2477 = vunpack.c.h.b16 %v985
    %v2478 = vunpack.c.l.b16 %v986
    %v2479 = vunpack.c.h.b16 %v986
    %v2480 = vunpack.c.l.b16 %v987
    %v2481 = vunpack.c.h.b16 %v987
    %v2482 = vunpack.c.l.b16 %v988
    %v2483 = vunpack.c.h.b16 %v988
    %v2484 = vunpack.c.l.b16 %v989
    %v2485 = vunpack.c.h.b16 %v989
    %v2486 = vunpack.c.l.b16 %v990
    %v2487 = vunpack.c.h.b16 %v990
    %v2488 = vunpack.c.l.b16 %v991
    %v2489 = vunpack.c.h.b16 %v991
    %v2490 = vunpack.c.l.b16 %v992
    %v2491 = vunpack.c.h.b16 %v992
    %v2492 = vunpack.c.l.b16 %v993
    %v2493 = vunpack.c.h.b16 %v993
    %v2494 = vunpack.c.l.b16 %v994
    %v2495 = vunpack.c.h.b16 %v994
    %v2496 = vunpack.c.l.b16 %v995
    %v2497 = vunpack.c.h.b16 %v995
    %v2498 = vunpack.c.l.b16 %v996
    %v2499 = vunpack.c.h.b16 %v996
    %v2500 = vunpack.c.l.b16 %v997
    %v2501 = vunpack.c.h.b16 %v997
    %v2502 = vunpack.c.l.b16 %v998
    %v2503 = vunpack.c.h.b16 %v998
    %v2504 = vunpack.c.l.b16 %v999
    %v2505 = vunpack.c.h.b16 %v999
    %v2506 = vunpack.c.l.b16 %v1000
    %v2507 = vunpack.c.h.b16 %v1000
    %v2508 = vunpack.c.l.b16 %v1001
    %v2509 = vunpack.c.h.b16 %v1001
    %v2510 = vunpack.c.l.b16 %v1002
    %v2511 = vunpack.c.h.b16 %v1002
    %v2512 = vunpack.c.l.b16 %v1003
    %v2513 = vunpack.c.h.b16 %v1003
    %v2514 = vunpack.c.l.b16 %v1004
    %v2515 = vunpack.c.h.b16 %v1004
    %v2516 = vunpack.c.l.b16 %v1005
    %v2517 = vunpack.c.h.b16 %v1005
    %v2518 = vunpack.c.l.b16 %v1006
    %v2519 = vunpack.c.h.b16 %v1006
    %v2520 = vunpack.c.l.b16 %v1007
    %v2521 = vunpack.c.h.b16 %v1007
    %v2522 = vunpack.c.l.b16 %v1008
    %v2523 = vunpack.c.h.b16 %v1008
    %v2524 = vunpack.c.l.b16 %v1009
    %v2525 = vunpack.c.h.b16 %v1009
    %v2526 = vunpack.c.l.b16 %v1010
    %v2527 = vunpack.c.h.b16 %v1010
    %v2528 = vunpack.c.l.b16 %v1011
    %v2529 = vunpack.c.h.b16 %v1011
    %v2530 = vunpack.c.l.b16 %v1012
    %v2531 = vunpack.c.h.b16 %v1012
    %v2532 = vunpack.c.l.b16 %v1013
    %v2533 = vunpack.c.h.b16 %v1013
    %v2534 = vunpack.c.l.b16 %v1014
    %v2535 = vunpack.c.h.b16 %v1014
    %v2536 = vunpack.c.l.b16 %v1015
    %v2537 = vunpack.c.h.b16 %v1015
    %v2538 = vunpack.c.l.b16 %v1016
    %v2539 = vunpack.c.h.b16 %v1016
    %v2540 = vunpack.c.l.b16 %v1017
    %v2541 = vunpack.c.h.b16 %v1017
    %v2542 = vunpack.c.l.b16 %v1018
    %v2543 = vunpack.c.h.b16 %v1018
    %v2544 = vunpack.c.l.b16 %v1019
    %v2545 = vunpack.c.h.b16 %v1019
    %v2546 = vunpack.c.l.b16 %v1020
    %v2547 = vunpack.c.h.b16 %v1020
    %v2548 = vunpack.c.l.b16 %v1021
    %v2549 = vunpack.c.h.b16 %v1021
    %v2550 = vunpack.c.l.b16 %v1022
    %v2551 = vunpack.c.h.b16 %v1022
    %v2552 = vunpack.c.l.b16 %v1023
    %v2553 = vunpack.c.h.b16 %v1023
    %v2554 = vunpack.c.l.b16 %v1024
    %v2555 = vunpack.c.h.b16 %v1024
    %v2556 = vunpack.c.l.b16 %v1025
    %v2557 = vunpack.c.h.b16 %v1025
    %v2558 = vunpack.c.l.b16 %v1026
    %v2559 = vunpack.c.h.b16 %v1026
    %v2560 = vunpack.c.l.b16 %v1027
    %v2561 = vunpack.c.h.b16 %v1027
    %v2562 = vunpack.c.l.b16 %v1028
    %v2563 = vunpack.c.h.b16 %v1028
    %v2564 = vunpack.c.l.b16 %v1029
    %v2565 = vunpack.c.h.b16 %v1029
    %v2566 = vpack.c.b16 %v1550, %v1542
    %v2567 = vpack.c.b16 %v1551, %v1543
    %v2568 = vpack.c.b16 %v1552, %v1544
    %v2569 = vpack.c.b16 %v1553, %v1545
    %v2570 = vpack.c.b16 %v1554, %v1546
    %v2571 = vpack.c.b16 %v1555, %v1547
    %v2572 = vpack.c.b16 %v1556, %v1548
    %v2573 = vpack.c.b16 %v1557, %v1549
    %v2574 = vpack.c.b16 %v1566, %v1558
    %v2575 = vpack.c.b16 %v1567, %v1559
    %v2576 = vpack.c.b16 %v1568, %v1560
    %v2577 = vpack.c.b16 %v1569, %v1561
    %v2578 = vpack.c.b16 %v1570, %v1562
    %v2579 = vpack.c.b16 %v1571, %v1563
    %v2580 = vpack.c.b16 %v1572, %v1564
    %v2581 = vpack.c.b16 %v1573, %v1565
    %v2582 = vpack.c.b16 %v1582, %v1574
    %v2583 = vpack.c.b16 %v1583, %v1575
    %v2584 = vpack.c.b16 %v1584, %v1576
    %v2585 = vpack.c.b16 %v1585, %v1577
    %v2586 = vpack.c.b16 %v1586, %v1578
    %v2587 = vpack.c.b16 %v1587, %v1579
    %v2588 = vpack.c.b16 %v1588, %v1580
    %v2589 = vpack.c.b16 %v1589, %v1581
    %v2590 = vpack.c.b16 %v1598, %v1590
    %v2591 = vpack.c.b16 %v1599, %v1591
    %v2592 = vpack.c.b16 %v1600, %v1592
    %v2593 = vpack.c.b16 %v1601, %v1593
    %v2594 = vpack.c.b16 %v1602, %v1594
    %v2595 = vpack.c.b16 %v1603, %v1595
    %v2596 = vpack.c.b16 %v1604, %v1596
    %v2597 = vpack.c.b16 %v1605, %v1597
    %v2598 = vpack.c.b16 %v1614, %v1606
    %v2599 = vpack.c.b16 %v1615, %v1607
    %v2600 = vpack.c.b16 %v1616, %v1608
    %v2601 = vpack.c.b16 %v1617, %v1609
    %v2602 = vpack.c.b16 %v1618, %v1610
    %v2603 = vpack.c.b16 %v1619, %v1611
    %v2604 = vpack.c.b16 %v1620, %v1612
    %v2605 = vpack.c.b16 %v1621, %v1613
    %v2606 = vpack.c.b16 %v1630, %v1622
    %v2607 = vpack.c.b16 %v1631, %v1623
    %v2608 = vpack.c.b16 %v1632, %v1624
    %v2609 = vpack.c.b16 %v1633, %v1625
    %v2610 = vpack.c.b16 %v1634, %v1626
    %v2611 = vpack.c.b16 %v1635, %v1627
    %v2612 = vpack.c.b16 %v1636, %v1628
    %v2613 = vpack.c.b16 %v1637, %v1629
    %v2614 = vpack.c.b16 %v1646, %v1638
    %v2615 = vpack.c.b16 %v1647, %v1639
    %v2616 = vpack.c.b16 %v1648, %v1640
    %v2617 = vpack.c.b16 %v1649, %v1641
    %v2618 = vpack.c.b16 %v1650, %v1642
    %v2619 = vpack.c.b16 %v1651, %v1643
    %v2620 = vpack.c.b16 %v1652, %v1644
    %v2621 = vpack.c.b16 %v1653, %v1645
    %v2622 = vpack.c.b16 %v1662, %v1654
    %v2623 = vpack.c.b16 %v1663, %v1655
    %v2624 = vpack.c.b16 %v1664, %v1656
    %v2625 = vpack.c.b16 %v1665, %v1657
    %v2626 = vpack.c.b16 %v1666, %v1658
    %v2627 = vpack.c.b16 %v1667, %v1659
    %v2628 = vpack.c.b16 %v1668, %v1660
    %v2629 = vpack.c.b16 %v1669, %v1661
    %v2630 = vpack.c.b16 %v1678, %v1670
    %v2631 = vpack.c.b16 %v1679, %v1671
    %v2632 = vpack.c.b16 %v1680, %v1672
    %v2633 = vpack.c.b16 %v1681, %v1673
    %v2634 = vpack.c.b16 %v1682, %v1674
    %v2635 = vpack.c.b16 %v1683, %v1675
    %v2636 = vpack.c.b16 %v1684, %v1676
    %v2637 = vpack.c.b16 %v1685, %v1677
    %v2638 = vpack.c.b16 %v1694, %v1686
    %v2639 = vpack.c.b16 %v1695, %v1687
    %v2640 = vpack.c.b16 %v1696, %v1688
    %v2641 = vpack.c.b16 %v1697, %v1689
    %v2642 = vpack.c.b16 %v1698, %v1690
    %v2643 = vpack.c.b16 %v1699, %v1691
    %v2644 = vpack.c.b16 %v1700, %v1692
    %v2645 = vpack.c.b16 %v1701, %v1693
    %v2646 = vpack.c.b16 %v1710, %v1702
    %v2647 = vpack.c.b16 %v1711, %v1703
    %v2648 = vpack.c.b16 %v1712, %v1704
    %v2649 = vpack.c.b16 %v1713, %v1705
    %v2650 = vpack.c.b16 %v1714, %v1706
    %v2651 = vpack.c.b16 %v1715, %v1707
    %v2652 = vpack.c.b16 %v1716, %v1708
    %v2653 = vpack.c.b16 %v1717, %v1709
    %v2654 = vpack.c.b16 %v1726, %v1718
    %v2655 = vpack.c.b16 %v1727, %v1719
    %v2656 = vpack.c.b16 %v1728, %v1720
    %v2657 = vpack.c.b16 %v1729, %v1721
    %v2658 = vpack.c.b16 %v1730, %v1722
    %v2659 = vpack.c.b16 %v1731, %v1723
    %v2660 = vpack.c.b16 %v1732, %v1724
    %v2661 = vpack.c.b16 %v1733, %v1725
    %v2662 = vpack.c.b16 %v1742, %v1734
    %v2663 = vpack.c.b16 %v1743, %v1735
    %v2664 = vpack.c.b16 %v1744, %v1736
    %v2665 = vpack.c.b16 %v1745, %v1737
    %v2666 = vpack.c.b16 %v1746, %v1738
    %v2667 = vpack.c.b16 %v1747, %v1739
    %v2668 = vpack.c.b16 %v1748, %v1740
    %v2669 = vpack.c.b16 %v1749, %v1741
    %v2670 = vpack.c.b16 %v1758, %v1750
    %v2671 = vpack.c.b16 %v1759, %v1751
    %v2672 = vpack.c.b16 %v1760, %v1752
    %v2673 = vpack.c.b16 %v1761, %v1753
    %v2674 = vpack.c.b16 %v1762, %v1754
    %v2675 = vpack.c.b16 %v1763, %v1755
    %v2676 = vpack.c.b16 %v1764, %v1756
    %v2677 = vpack.c.b16 %v1765, %v1757
    %v2678 = vpack.c.b16 %v1774, %v1766
    %v2679 = vpack.c.b16 %v1775, %v1767
    %v2680 = vpack.c.b16 %v1776, %v1768
    %v2681 = vpack.c.b16 %v1777, %v1769
    %v2682 = vpack.c.b16 %v1778, %v1770
    %v2683 = vpack.c.b16 %v1779, %v1771
    %v2684 = vpack.c.b16 %v1780, %v1772
    %v2685 = vpack.c.b16 %v1781, %v1773
    %v2686 = vpack.c.b16 %v1790, %v1782
    %v2687 = vpack.c.b16 %v1791, %v1783
    %v2688 = vpack.c.b16 %v1792, %v1784
    %v2689 = vpack.c.b16 %v1793, %v1785
    %v2690 = vpack.c.b16 %v1794, %v1786
    %v2691 = vpack.c.b16 %v1795, %v1787
    %v2692 = vpack.c.b16 %v1796, %v1788
    %v2693 = vpack.c.b16 %v1797, %v1789
    %v2694 = vpack.c.b16 %v1806, %v1798
    %v2695 = vpack.c.b16 %v1807, %v1799
    %v2696 = vpack.c.b16 %v1808, %v1800
    %v2697 = vpack.c.b16 %v1809, %v1801
    %v2698 = vpack.c.b16 %v1810, %v1802
    %v2699 = vpack.c.b16 %v1811, %v1803
    %v2700 = vpack.c.b16 %v1812, %v1804
    %v2701 = vpack.c.b16 %v1813, %v1805
    %v2702 = vpack.c.b16 %v1822, %v1814
    %v2703 = vpack.c.b16 %v1823, %v1815
    %v2704 = vpack.c.b16 %v1824, %v1816
    %v2705 = vpack.c.b16 %v1825, %v1817
    %v2706 = vpack.c.b16 %v1826, %v1818
    %v2707 = vpack.c.b16 %v1827, %v1819
    %v2708 = vpack.c.b16 %v1828, %v1820
    %v2709 = vpack.c.b16 %v1829, %v1821
    %v2710 = vpack.c.b16 %v1838, %v1830
    %v2711 = vpack.c.b16 %v1839, %v1831
    %v2712 = vpack.c.b16 %v1840, %v1832
    %v2713 = vpack.c.b16 %v1841, %v1833
    %v2714 = vpack.c.b16 %v1842, %v1834
    %v2715 = vpack.c.b16 %v1843, %v1835
    %v2716 = vpack.c.b16 %v1844, %v1836
    %v2717 = vpack.c.b16 %v1845, %v1837
    %v2718 = vpack.c.b16 %v1854, %v1846
    %v2719 = vpack.c.b16 %v1855, %v1847
    %v2720 = vpack.c.b16 %v1856, %v1848
    %v2721 = vpack.c.b16 %v1857, %v1849
    %v2722 = vpack.c.b16 %v1858, %v1850
    %v2723 = vpack.c.b16 %v1859, %v1851
    %v2724 = vpack.c.b16 %v1860, %v1852
    %v2725 = vpack.c.b16 %v1861, %v1853
    %v2726 = vpack.c.b16 %v1870, %v1862
    %v2727 = vpack.c.b16 %v1871, %v1863
    %v2728 = vpack.c.b16 %v1872, %v1864
    %v2729 = vpack.c.b16 %v1873, %v1865
    %v2730 = vpack.c.b16 %v1874, %v1866
    %v2731 = vpack.c.b16 %v1875, %v1867
    %v2732 = vpack.c.b16 %v1876, %v1868
    %v2733 = vpack.c.b16 %v1877, %v1869
    %v2734 = vpack.c.b16 %v1886, %v1878
    %v2735 = vpack.c.b16 %v1887, %v1879
    %v2736 = vpack.c.b16 %v1888, %v1880
    %v2737 = vpack.c.b16 %v1889, %v1881
    %v2738 = vpack.c.b16 %v1890, %v1882
    %v2739 = vpack.c.b16 %v1891, %v1883
    %v2740 = vpack.c.b16 %v1892, %v1884
    %v2741 = vpack.c.b16 %v1893, %v1885
    %v2742 = vpack.c.b16 %v1902, %v1894
    %v2743 = vpack.c.b16 %v1903, %v1895
    %v2744 = vpack.c.b16 %v1904, %v1896
    %v2745 = vpack.c.b16 %v1905, %v1897
    %v2746 = vpack.c.b16 %v1906, %v1898
    %v2747 = vpack.c.b16 %v1907, %v1899
    %v2748 = vpack.c.b16 %v1908, %v1900
    %v2749 = vpack.c.b16 %v1909, %v1901
    %v2750 = vpack.c.b16 %v1918, %v1910
    %v2751 = vpack.c.b16 %v1919, %v1911
    %v2752 = vpack.c.b16 %v1920, %v1912
    %v2753 = vpack.c.b16 %v1921, %v1913
    %v2754 = vpack.c.b16 %v1922, %v1914
    %v2755 = vpack.c.b16 %v1923, %v1915
    %v2756 = vpack.c.b16 %v1924, %v1916
    %v2757 = vpack.c.b16 %v1925, %v1917
    %v2758 = vpack.c.b16 %v1934, %v1926
    %v2759 = vpack.c.b16 %v1935, %v1927
    %v2760 = vpack.c.b16 %v1936, %v1928
    %v2761 = vpack.c.b16 %v1937, %v1929
    %v2762 = vpack.c.b16 %v1938, %v1930
    %v2763 = vpack.c.b16 %v1939, %v1931
    %v2764 = vpack.c.b16 %v1940, %v1932
    %v2765 = vpack.c.b16 %v1941, %v1933
    %v2766 = vpack.c.b16 %v1950, %v1942
    %v2767 = vpack.c.b16 %v1951, %v1943
    %v2768 = vpack.c.b16 %v1952, %v1944
    %v2769 = vpack.c.b16 %v1953, %v1945
    %v2770 = vpack.c.b16 %v1954, %v1946
    %v2771 = vpack.c.b16 %v1955, %v1947
    %v2772 = vpack.c.b16 %v1956, %v1948
    %v2773 = vpack.c.b16 %v1957, %v1949
    %v2774 = vpack.c.b16 %v1966, %v1958
    %v2775 = vpack.c.b16 %v1967, %v1959
    %v2776 = vpack.c.b16 %v1968, %v1960
    %v2777 = vpack.c.b16 %v1969, %v1961
    %v2778 = vpack.c.b16 %v1970, %v1962
    %v2779 = vpack.c.b16 %v1971, %v1963
    %v2780 = vpack.c.b16 %v1972, %v1964
    %v2781 = vpack.c.b16 %v1973, %v1965
    %v2782 = vpack.c.b16 %v1982, %v1974
    %v2783 = vpack.c.b16 %v1983, %v1975
    %v2784 = vpack.c.b16 %v1984, %v1976
    %v2785 = vpack.c.b16 %v1985, %v1977
    %v2786 = vpack.c.b16 %v1986, %v1978
    %v2787 = vpack.c.b16 %v1987, %v1979
    %v2788 = vpack.c.b16 %v1988, %v1980
    %v2789 = vpack.c.b16 %v1989, %v1981
    %v2790 = vpack.c.b16 %v1998, %v1990
    %v2791 = vpack.c.b16 %v1999, %v1991
    %v2792 = vpack.c.b16 %v2000, %v1992
    %v2793 = vpack.c.b16 %v2001, %v1993
    %v2794 = vpack.c.b16 %v2002, %v1994
    %v2795 = vpack.c.b16 %v2003, %v1995
    %v2796 = vpack.c.b16 %v2004, %v1996
    %v2797 = vpack.c.b16 %v2005, %v1997
    %v2798 = vpack.c.b16 %v2014, %v2006
    %v2799 = vpack.c.b16 %v2015, %v2007
    %v2800 = vpack.c.b16 %v2016, %v2008
    %v2801 = vpack.c.b16 %v2017, %v2009
    %v2802 = vpack.c.b16 %v2018, %v2010
    %v2803 = vpack.c.b16 %v2019, %v2011
    %v2804 = vpack.c.b16 %v2020, %v2012
    %v2805 = vpack.c.b16 %v2021, %v2013
    %v2806 = vpack.c.b16 %v2030, %v2022
    %v2807 = vpack.c.b16 %v2031, %v2023
    %v2808 = vpack.c.b16 %v2032, %v2024
    %v2809 = vpack.c.b16 %v2033, %v2025
    %v2810 = vpack.c.b16 %v2034, %v2026
    %v2811 = vpack.c.b16 %v2035, %v2027
    %v2812 = vpack.c.b16 %v2036, %v2028
    %v2813 = vpack.c.b16 %v2037, %v2029
    %v2814 = vpack.c.b16 %v2046, %v2038
    %v2815 = vpack.c.b16 %v2047, %v2039
    %v2816 = vpack.c.b16 %v2048, %v2040
    %v2817 = vpack.c.b16 %v2049, %v2041
    %v2818 = vpack.c.b16 %v2050, %v2042
    %v2819 = vpack.c.b16 %v2051, %v2043
    %v2820 = vpack.c.b16 %v2052, %v2044
    %v2821 = vpack.c.b16 %v2053, %v2045
    %v2822 = vpack.c.b16 %v2062, %v2054
    %v2823 = vpack.c.b16 %v2063, %v2055
    %v2824 = vpack.c.b16 %v2064, %v2056
    %v2825 = vpack.c.b16 %v2065, %v2057
    %v2826 = vpack.c.b16 %v2066, %v2058
    %v2827 = vpack.c.b16 %v2067, %v2059
    %v2828 = vpack.c.b16 %v2068, %v2060
    %v2829 = vpack.c.b16 %v2069, %v2061
    %v2830 = vpack.c.b16 %v2078, %v2070
    %v2831 = vpack.c.b16 %v2079, %v2071
    %v2832 = vpack.c.b16 %v2080, %v2072
    %v2833 = vpack.c.b16 %v2081, %v2073
    %v2834 = vpack.c.b16 %v2082, %v2074
    %v2835 = vpack.c.b16 %v2083, %v2075
    %v2836 = vpack.c.b16 %v2084, %v2076
    %v2837 = vpack.c.b16 %v2085, %v2077
    %v2838 = vpack.c.b16 %v2094, %v2086
    %v2839 = vpack.c.b16 %v2095, %v2087
    %v2840 = vpack.c.b16 %v2096, %v2088
    %v2841 = vpack.c.b16 %v2097, %v2089
    %v2842 = vpack.c.b16 %v2098, %v2090
    %v2843 = vpack.c.b16 %v2099, %v2091
    %v2844 = vpack.c.b16 %v2100, %v2092
    %v2845 = vpack.c.b16 %v2101, %v2093
    %v2846 = vpack.c.b16 %v2110, %v2102
    %v2847 = vpack.c.b16 %v2111, %v2103
    %v2848 = vpack.c.b16 %v2112, %v2104
    %v2849 = vpack.c.b16 %v2113, %v2105
    %v2850 = vpack.c.b16 %v2114, %v2106
    %v2851 = vpack.c.b16 %v2115, %v2107
    %v2852 = vpack.c.b16 %v2116, %v2108
    %v2853 = vpack.c.b16 %v2117, %v2109
    %v2854 = vpack.c.b16 %v2126, %v2118
    %v2855 = vpack.c.b16 %v2127, %v2119
    %v2856 = vpack.c.b16 %v2128, %v2120
    %v2857 = vpack.c.b16 %v2129, %v2121
    %v2858 = vpack.c.b16 %v2130, %v2122
    %v2859 = vpack.c.b16 %v2131, %v2123
    %v2860 = vpack.c.b16 %v2132, %v2124
    %v2861 = vpack.c.b16 %v2133, %v2125
    %v2862 = vpack.c.b16 %v2142, %v2134
    %v2863 = vpack.c.b16 %v2143, %v2135
    %v2864 = vpack.c.b16 %v2144, %v2136
    %v2865 = vpack.c.b16 %v2145, %v2137
    %v2866 = vpack.c.b16 %v2146, %v2138
    %v2867 = vpack.c.b16 %v2147, %v2139
    %v2868 = vpack.c.b16 %v2148, %v2140
    %v2869 = vpack.c.b16 %v2149, %v2141
    %v2870 = vpack.c.b16 %v2158, %v2150
    %v2871 = vpack.c.b16 %v2159, %v2151
    %v2872 = vpack.c.b16 %v2160, %v2152
    %v2873 = vpack.c.b16 %v2161, %v2153
    %v2874 = vpack.c.b16 %v2162, %v2154
    %v2875 = vpack.c.b16 %v2163, %v2155
    %v2876 = vpack.c.b16 %v2164, %v2156
    %v2877 = vpack.c.b16 %v2165, %v2157
    %v2878 = vpack.c.b16 %v2174, %v2166
    %v2879 = vpack.c.b16 %v2175, %v2167
    %v2880 = vpack.c.b16 %v2176, %v2168
    %v2881 = vpack.c.b16 %v2177, %v2169
    %v2882 = vpack.c.b16 %v2178, %v2170
    %v2883 = vpack.c.b16 %v2179, %v2171
    %v2884 = vpack.c.b16 %v2180, %v2172
    %v2885 = vpack.c.b16 %v2181, %v2173
    %v2886 = vpack.c.b16 %v2190, %v2182
    %v2887 = vpack.c.b16 %v2191, %v2183
    %v2888 = vpack.c.b16 %v2192, %v2184
    %v2889 = vpack.c.b16 %v2193, %v2185
    %v2890 = vpack.c.b16 %v2194, %v2186
    %v2891 = vpack.c.b16 %v2195, %v2187
    %v2892 = vpack.c.b16 %v2196, %v2188
    %v2893 = vpack.c.b16 %v2197, %v2189
    %v2894 = vpack.c.b16 %v2206, %v2198
    %v2895 = vpack.c.b16 %v2207, %v2199
    %v2896 = vpack.c.b16 %v2208, %v2200
    %v2897 = vpack.c.b16 %v2209, %v2201
    %v2898 = vpack.c.b16 %v2210, %v2202
    %v2899 = vpack.c.b16 %v2211, %v2203
    %v2900 = vpack.c.b16 %v2212, %v2204
    %v2901 = vpack.c.b16 %v2213, %v2205
    %v2902 = vpack.c.b16 %v2222, %v2214
    %v2903 = vpack.c.b16 %v2223, %v2215
    %v2904 = vpack.c.b16 %v2224, %v2216
    %v2905 = vpack.c.b16 %v2225, %v2217
    %v2906 = vpack.c.b16 %v2226, %v2218
    %v2907 = vpack.c.b16 %v2227, %v2219
    %v2908 = vpack.c.b16 %v2228, %v2220
    %v2909 = vpack.c.b16 %v2229, %v2221
    %v2910 = vpack.c.b16 %v2238, %v2230
    %v2911 = vpack.c.b16 %v2239, %v2231
    %v2912 = vpack.c.b16 %v2240, %v2232
    %v2913 = vpack.c.b16 %v2241, %v2233
    %v2914 = vpack.c.b16 %v2242, %v2234
    %v2915 = vpack.c.b16 %v2243, %v2235
    %v2916 = vpack.c.b16 %v2244, %v2236
    %v2917 = vpack.c.b16 %v2245, %v2237
    %v2918 = vpack.c.b16 %v2254, %v2246
    %v2919 = vpack.c.b16 %v2255, %v2247
    %v2920 = vpack.c.b16 %v2256, %v2248
    %v2921 = vpack.c.b16 %v2257, %v2249
    %v2922 = vpack.c.b16 %v2258, %v2250
    %v2923 = vpack.c.b16 %v2259, %v2251
    %v2924 = vpack.c.b16 %v2260, %v2252
    %v2925 = vpack.c.b16 %v2261, %v2253
    %v2926 = vpack.c.b16 %v2270, %v2262
    %v2927 = vpack.c.b16 %v2271, %v2263
    %v2928 = vpack.c.b16 %v2272, %v2264
    %v2929 = vpack.c.b16 %v2273, %v2265
    %v2930 = vpack.c.b16 %v2274, %v2266
    %v2931 = vpack.c.b16 %v2275, %v2267
    %v2932 = vpack.c.b16 %v2276, %v2268
    %v2933 = vpack.c.b16 %v2277, %v2269
    %v2934 = vpack.c.b16 %v2286, %v2278
    %v2935 = vpack.c.b16 %v2287, %v2279
    %v2936 = vpack.c.b16 %v2288, %v2280
    %v2937 = vpack.c.b16 %v2289, %v2281
    %v2938 = vpack.c.b16 %v2290, %v2282
    %v2939 = vpack.c.b16 %v2291, %v2283
    %v2940 = vpack.c.b16 %v2292, %v2284
    %v2941 = vpack.c.b16 %v2293, %v2285
    %v2942 = vpack.c.b16 %v2302, %v2294
    %v2943 = vpack.c.b16 %v2303, %v2295
    %v2944 = vpack.c.b16 %v2304, %v2296
    %v2945 = vpack.c.b16 %v2305, %v2297
    %v2946 = vpack.c.b16 %v2306, %v2298
    %v2947 = vpack.c.b16 %v2307, %v2299
    %v2948 = vpack.c.b16 %v2308, %v2300
    %v2949 = vpack.c.b16 %v2309, %v2301
    %v2950 = vpack.c.b16 %v2318, %v2310
    %v2951 = vpack.c.b16 %v2319, %v2311
    %v2952 = vpack.c.b16 %v2320, %v2312
    %v2953 = vpack.c.b16 %v2321, %v2313
    %v2954 = vpack.c.b16 %v2322, %v2314
    %v2955 = vpack.c.b16 %v2323, %v2315
    %v2956 = vpack.c.b16 %v2324, %v2316
    %v2957 = vpack.c.b16 %v2325, %v2317
    %v2958 = vpack.c.b16 %v2334, %v2326
    %v2959 = vpack.c.b16 %v2335, %v2327
    %v2960 = vpack.c.b16 %v2336, %v2328
    %v2961 = vpack.c.b16 %v2337, %v2329
    %v2962 = vpack.c.b16 %v2338, %v2330
    %v2963 = vpack.c.b16 %v2339, %v2331
    %v2964 = vpack.c.b16 %v2340, %v2332
    %v2965 = vpack.c.b16 %v2341, %v2333
    %v2966 = vpack.c.b16 %v2350, %v2342
    %v2967 = vpack.c.b16 %v2351, %v2343
    %v2968 = vpack.c.b16 %v2352, %v2344
    %v2969 = vpack.c.b16 %v2353, %v2345
    %v2970 = vpack.c.b16 %v2354, %v2346
    %v2971 = vpack.c.b16 %v2355, %v2347
    %v2972 = vpack.c.b16 %v2356, %v2348
    %v2973 = vpack.c.b16 %v2357, %v2349
    %v2974 = vpack.c.b16 %v2366, %v2358
    %v2975 = vpack.c.b16 %v2367, %v2359
    %v2976 = vpack.c.b16 %v2368, %v2360
    %v2977 = vpack.c.b16 %v2369, %v2361
    %v2978 = vpack.c.b16 %v2370, %v2362
    %v2979 = vpack.c.b16 %v2371, %v2363
    %v2980 = vpack.c.b16 %v2372, %v2364
    %v2981 = vpack.c.b16 %v2373, %v2365
    %v2982 = vpack.c.b16 %v2382, %v2374
    %v2983 = vpack.c.b16 %v2383, %v2375
    %v2984 = vpack.c.b16 %v2384, %v2376
    %v2985 = vpack.c.b16 %v2385, %v2377
    %v2986 = vpack.c.b16 %v2386, %v2378
    %v2987 = vpack.c.b16 %v2387, %v2379
    %v2988 = vpack.c.b16 %v2388, %v2380
    %v2989 = vpack.c.b16 %v2389, %v2381
    %v2990 = vpack.c.b16 %v2398, %v2390
    %v2991 = vpack.c.b16 %v2399, %v2391
    %v2992 = vpack.c.b16 %v2400, %v2392
    %v2993 = vpack.c.b16 %v2401, %v2393
    %v2994 = vpack.c.b16 %v2402, %v2394
    %v2995 = vpack.c.b16 %v2403, %v2395
    %v2996 = vpack.c.b16 %v2404, %v2396
    %v2997 = vpack.c.b16 %v2405, %v2397
    %v2998 = vpack.c.b16 %v2414, %v2406
    %v2999 = vpack.c.b16 %v2415, %v2407
    %v3000 = vpack.c.b16 %v2416, %v2408
    %v3001 = vpack.c.b16 %v2417, %v2409
    %v3002 = vpack.c.b16 %v2418, %v2410
    %v3003 = vpack.c.b16 %v2419, %v2411
    %v3004 = vpack.c.b16 %v2420, %v2412
    %v3005 = vpack.c.b16 %v2421, %v2413
    %v3006 = vpack.c.b16 %v2430, %v2422
    %v3007 = vpack.c.b16 %v2431, %v2423
    %v3008 = vpack.c.b16 %v2432, %v2424
    %v3009 = vpack.c.b16 %v2433, %v2425
    %v3010 = vpack.c.b16 %v2434, %v2426
    %v3011 = vpack.c.b16 %v2435, %v2427
    %v3012 = vpack.c.b16 %v2436, %v2428
    %v3013 = vpack.c.b16 %v2437, %v2429
    %v3014 = vpack.c.b16 %v2446, %v2438
    %v3015 = vpack.c.b16 %v2447, %v2439
    %v3016 = vpack.c.b16 %v2448, %v2440
    %v3017 = vpack.c.b16 %v2449, %v2441
    %v3018 = vpack.c.b16 %v2450, %v2442
    %v3019 = vpack.c.b16 %v2451, %v2443
    %v3020 = vpack.c.b16 %v2452, %v2444
    %v3021 = vpack.c.b16 %v2453, %v2445
    %v3022 = vpack.c.b16 %v2462, %v2454
    %v3023 = vpack.c.b16 %v2463, %v2455
    %v3024 = vpack.c.b16 %v2464, %v2456
    %v3025 = vpack.c.b16 %v2465, %v2457
    %v3026 = vpack.c.b16 %v2466, %v2458
    %v3027 = vpack.c.b16 %v2467, %v2459
    %v3028 = vpack.c.b16 %v2468, %v2460
    %v3029 = vpack.c.b16 %v2469, %v2461
    %v3030 = vpack.c.b16 %v2478, %v2470
    %v3031 = vpack.c.b16 %v2479, %v2471
    %v3032 = vpack.c.b16 %v2480, %v2472
    %v3033 = vpack.c.b16 %v2481, %v2473
    %v3034 = vpack.c.b16 %v2482, %v2474
    %v3035 = vpack.c.b16 %v2483, %v2475
    %v3036 = vpack.c.b16 %v2484, %v2476
    %v3037 = vpack.c.b16 %v2485, %v2477
    %v3038 = vpack.c.b16 %v2494, %v2486
    %v3039 = vpack.c.b16 %v2495, %v2487
    %v3040 = vpack.c.b16 %v2496, %v2488
    %v3041 = vpack.c.b16 %v2497, %v2489
    %v3042 = vpack.c.b16 %v2498, %v2490
    %v3043 = vpack.c.b16 %v2499, %v2491
    %v3044 = vpack.c.b16 %v2500, %v2492
    %v3045 = vpack.c.b16 %v2501, %v2493
    %v3046 = vpack.c.b16 %v2510, %v2502
    %v3047 = vpack.c.b16 %v2511, %v2503
    %v3048 = vpack.c.b16 %v2512, %v2504
    %v3049 = vpack.c.b16 %v2513, %v2505
    %v3050 = vpack.c.b16 %v2514, %v2506
    %v3051 = vpack.c.b16 %v2515, %v2507
    %v3052 = vpack.c.b16 %v2516, %v2508
    %v3053 = vpack.c.b16 %v2517, %v2509
    %v3054 = vpack.c.b16 %v2526, %v2518
    %v3055 = vpack.c.b16 %v2527, %v2519
    %v3056 = vpack.c.b16 %v2528, %v2520
    %v3057 = vpack.c.b16 %v2529, %v2521
    %v3058 = vpack.c.b16 %v2530, %v2522
    %v3059 = vpack.c.b16 %v2531, %v2523
    %v3060 = vpack.c.b16 %v2532, %v2524
    %v3061 = vpack.c.b16 %v2533, %v2525
    %v3062 = vpack.c.b16 %v2542, %v2534
    %v3063 = vpack.c.b16 %v2543, %v2535
    %v3064 = vpack.c.b16 %v2544, %v2536
    %v3065 = vpack.c.b16 %v2545, %v2537
    %v3066 = vpack.c.b16 %v2546, %v2538
    %v3067 = vpack.c.b16 %v2547, %v2539
    %v3068 = vpack.c.b16 %v2548, %v2540
    %v3069 = vpack.c.b16 %v2549, %v2541
    %v3070 = vpack.c.b16 %v2558, %v2550
    %v3071 = vpack.c.b16 %v2559, %v2551
    %v3072 = vpack.c.b16 %v2560, %v2552
    %v3073 = vpack.c.b16 %v2561, %v2553
    %v3074 = vpack.c.b16 %v2562, %v2554
    %v3075 = vpack.c.b16 %v2563, %v2555
    %v3076 = vpack.c.b16 %v2564, %v2556
    %v3077 = vpack.c.b16 %v2565, %v2557
    %3590 = vmatprep.subr.bf16.mxu0 %v2567
    %3591 = vmatpush1.bf16.msra.mxu0 %v2566
    %3592 = vmatprep.subr.bf16.mxu0 %v2575
    %3593 = vmatpush1.bf16.msra.mxu0 %v2574
    %3594 = vmatprep.subr.bf16.mxu0 %v2583
    %3595 = vmatpush1.bf16.msra.mxu0 %v2582
    %3596 = vmatprep.subr.bf16.mxu0 %v2591
    %3597 = vmatpush1.bf16.msra.mxu0 %v2590
    %3598 = vmatprep.subr.bf16.mxu0 %v2599
    %3599 = vmatpush1.bf16.msra.mxu0 %v2598
    %3600 = vmatprep.subr.bf16.mxu0 %v2607
    %3601 = vmatpush1.bf16.msra.mxu0 %v2606
    %3602 = vmatprep.subr.bf16.mxu0 %v2615
    %3603 = vmatpush1.bf16.msra.mxu0 %v2614
    %3604 = vmatprep.subr.bf16.mxu0 %v2623
    %3605 = vmatpush1.bf16.msra.mxu0 %v2622
    %3606 = vmatprep.subr.bf16.mxu0 %v2631
    %3607 = vmatpush1.bf16.msra.mxu0 %v2630
    %3608 = vmatprep.subr.bf16.mxu0 %v2639
    %3609 = vmatpush1.bf16.msra.mxu0 %v2638
    %3610 = vmatprep.subr.bf16.mxu0 %v2647
    %3611 = vmatpush1.bf16.msra.mxu0 %v2646
    %3612 = vmatprep.subr.bf16.mxu0 %v2655
    %3613 = vmatpush1.bf16.msra.mxu0 %v2654
    %3614 = vmatprep.subr.bf16.mxu0 %v2663
    %3615 = vmatpush1.bf16.msra.mxu0 %v2662
    %3616 = vmatprep.subr.bf16.mxu0 %v2671
    %3617 = vmatpush1.bf16.msra.mxu0 %v2670
    %3618 = vmatprep.subr.bf16.mxu0 %v2679
    %3619 = vmatpush1.bf16.msra.mxu0 %v2678
    %3620 = vmatprep.subr.bf16.mxu0 %v2687
    %3621 = vmatpush1.bf16.msra.mxu0 %v2686
    %3622 = vmatprep.mubr.bf16.mxu0 %v509
    %3623 = vmatmul.mubr.bf16.gmra.mrb[0].mxu0 %v508
    %v3624 = vpop.f32.mrb[0].mxu0
    %v3625 = vadd.f32 0.0, %v3624
    %v3626 = vpop.f32.mrb[0].mxu0
    %v3627 = vadd.f32 0.0, %v3626
    %v3628 = vpop.f32.mrb[0].mxu0
    %v3629 = vpop.f32.mrb[0].mxu0
    %3630 = vdwg.mxu0
    %3631 = vmatprep.subr.bf16.mxu0 %v2695
    %3632 = vmatpush1.bf16.msra.mxu0 %v2694
    %3633 = vmatprep.subr.bf16.mxu0 %v2703
    %3634 = vmatpush1.bf16.msra.mxu0 %v2702
    %3635 = vmatprep.subr.bf16.mxu0 %v2711
    %3636 = vmatpush1.bf16.msra.mxu0 %v2710
    %3637 = vmatprep.subr.bf16.mxu0 %v2719
    %3638 = vmatpush1.bf16.msra.mxu0 %v2718
    %3639 = vmatprep.subr.bf16.mxu0 %v2727
    %3640 = vmatpush1.bf16.msra.mxu0 %v2726
    %3641 = vmatprep.subr.bf16.mxu0 %v2735
    %3642 = vmatpush1.bf16.msra.mxu0 %v2734
    %3643 = vmatprep.subr.bf16.mxu0 %v2743
    %3644 = vmatpush1.bf16.msra.mxu0 %v2742
    %3645 = vmatprep.subr.bf16.mxu0 %v2751
    %3646 = vmatpush1.bf16.msra.mxu0 %v2750
    %3647 = vmatprep.subr.bf16.mxu0 %v2759
    %3648 = vmatpush1.bf16.msra.mxu0 %v2758
    %3649 = vmatprep.subr.bf16.mxu0 %v2767
    %3650 = vmatpush1.bf16.msra.mxu0 %v2766
    %3651 = vmatprep.subr.bf16.mxu0 %v2775
    %3652 = vmatpush1.bf16.msra.mxu0 %v2774
    %3653 = vmatprep.subr.bf16.mxu0 %v2783
    %3654 = vmatpush1.bf16.msra.mxu0 %v2782
    %3655 = vmatprep.subr.bf16.mxu0 %v2791
    %3656 = vmatpush1.bf16.msra.mxu0 %v2790
    %3657 = vmatprep.subr.bf16.mxu0 %v2799
    %3658 = vmatpush1.bf16.msra.mxu0 %v2798
    %3659 = vmatprep.subr.bf16.mxu0 %v2807
    %3660 = vmatpush1.bf16.msra.mxu0 %v2806
    %3661 = vmatprep.subr.bf16.mxu0 %v2815
    %3662 = vmatpush1.bf16.msra.mxu0 %v2814
    %3663 = vmatprep.mubr.bf16.mxu0 %v511
    %3664 = vmatmul.mubr.bf16.gmra.mrb[0].mxu0 %v510
    %v3665 = vpop.f32.mrb[0].mxu0
    %v3666 = vadd.f32 %v3625, %v3665
    %v3667 = vpop.f32.mrb[0].mxu0
    %v3668 = vadd.f32 %v3627, %v3667
    %v3669 = vpop.f32.mrb[0].mxu0
    %v3670 = vpop.f32.mrb[0].mxu0
    %3671 = vdwg.mxu0
    %3672 = vmatprep.subr.bf16.mxu0 %v2823
    %3673 = vmatpush1.bf16.msra.mxu0 %v2822
    %3674 = vmatprep.subr.bf16.mxu0 %v2831
    %3675 = vmatpush1.bf16.msra.mxu0 %v2830
    %3676 = vmatprep.subr.bf16.mxu0 %v2839
    %3677 = vmatpush1.bf16.msra.mxu0 %v2838
    %3678 = vmatprep.subr.bf16.mxu0 %v2847
    %3679 = vmatpush1.bf16.msra.mxu0 %v2846
    %3680 = vmatprep.subr.bf16.mxu0 %v2855
    %3681 = vmatpush1.bf16.msra.mxu0 %v2854
    %3682 = vmatprep.subr.bf16.mxu0 %v2863
    %3683 = vmatpush1.bf16.msra.mxu0 %v2862
    %3684 = vmatprep.subr.bf16.mxu0 %v2871
    %3685 = vmatpush1.bf16.msra.mxu0 %v2870
    %3686 = vmatprep.subr.bf16.mxu0 %v2879
    %3687 = vmatpush1.bf16.msra.mxu0 %v2878
    %3688 = vmatprep.subr.bf16.mxu0 %v2887
    %3689 = vmatpush1.bf16.msra.mxu0 %v2886
    %3690 = vmatprep.subr.bf16.mxu0 %v2895
    %3691 = vmatpush1.bf16.msra.mxu0 %v2894
    %3692 = vmatprep.subr.bf16.mxu0 %v2903
    %3693 = vmatpush1.bf16.msra.mxu0 %v2902
    %3694 = vmatprep.subr.bf16.mxu0 %v2911
    %3695 = vmatpush1.bf16.msra.mxu0 %v2910
    %3696 = vmatprep.subr.bf16.mxu0 %v2919
    %3697 = vmatpush1.bf16.msra.mxu0 %v2918
    %3698 = vmatprep.subr.bf16.mxu0 %v2927
    %3699 = vmatpush1.bf16.msra.mxu0 %v2926
    %3700 = vmatprep.subr.bf16.mxu0 %v2935
    %3701 = vmatpush1.bf16.msra.mxu0 %v2934
    %3702 = vmatprep.subr.bf16.mxu0 %v2943
    %3703 = vmatpush1.bf16.msra.mxu0 %v2942
    %3704 = vmatprep.mubr.bf16.mxu0 %v513
    %3705 = vmatmul.mubr.bf16.gmra.mrb[0].mxu0 %v512
    %v3706 = vpop.f32.mrb[0].mxu0
    %v3707 = vadd.f32 %v3666, %v3706
    %v3708 = vpop.f32.mrb[0].mxu0
    %v3709 = vadd.f32 %v3668, %v3708
    %v3710 = vpop.f32.mrb[0].mxu0
    %v3711 = vpop.f32.mrb[0].mxu0
    %3712 = vdwg.mxu0
    %3713 = vmatprep.subr.bf16.mxu0 %v2951
    %3714 = vmatpush1.bf16.msra.mxu0 %v2950
    %3715 = vmatprep.subr.bf16.mxu0 %v2959
    %3716 = vmatpush1.bf16.msra.mxu0 %v2958
    %3717 = vmatprep.subr.bf16.mxu0 %v2967
    %3718 = vmatpush1.bf16.msra.mxu0 %v2966
    %3719 = vmatprep.subr.bf16.mxu0 %v2975
    %3720 = vmatpush1.bf16.msra.mxu0 %v2974
    %3721 = vmatprep.subr.bf16.mxu0 %v2983
    %3722 = vmatpush1.bf16.msra.mxu0 %v2982
    %3723 = vmatprep.subr.bf16.mxu0 %v2991
    %3724 = vmatpush1.bf16.msra.mxu0 %v2990
    %3725 = vmatprep.subr.bf16.mxu0 %v2999
    %3726 = vmatpush1.bf16.msra.mxu0 %v2998
    %3727 = vmatprep.subr.bf16.mxu0 %v3007
    %3728 = vmatpush1.bf16.msra.mxu0 %v3006
    %3729 = vmatprep.subr.bf16.mxu0 %v3015
    %3730 = vmatpush1.bf16.msra.mxu0 %v3014
    %3731 = vmatprep.subr.bf16.mxu0 %v3023
    %3732 = vmatpush1.bf16.msra.mxu0 %v3022
    %3733 = vmatprep.subr.bf16.mxu0 %v3031
    %3734 = vmatpush1.bf16.msra.mxu0 %v3030
    %3735 = vmatprep.subr.bf16.mxu0 %v3039
    %3736 = vmatpush1.bf16.msra.mxu0 %v3038
    %3737 = vmatprep.subr.bf16.mxu0 %v3047
    %3738 = vmatpush1.bf16.msra.mxu0 %v3046
    %3739 = vmatprep.subr.bf16.mxu0 %v3055
    %3740 = vmatpush1.bf16.msra.mxu0 %v3054
    %3741 = vmatprep.subr.bf16.mxu0 %v3063
    %3742 = vmatpush1.bf16.msra.mxu0 %v3062
    %3743 = vmatprep.subr.bf16.mxu0 %v3071
    %3744 = vmatpush1.bf16.msra.mxu0 %v3070
    %3745 = vmatprep.mubr.bf16.mxu0 %v515
    %3746 = vmatmul.mubr.bf16.gmra.mrb[0].mxu0 %v514
    %v3747 = vpop.f32.mrb[0].mxu0
    %v3748 = vadd.f32 %v3707, %v3747
    %v3749 = vpop.f32.mrb[0].mxu0
    %v3750 = vadd.f32 %v3709, %v3749
    %v3751 = vpop.f32.mrb[0].mxu0
    %v3752 = vpop.f32.mrb[0].mxu0
    %3753 = vdwg.mxu0
    %3754 = vmatprep.subr.bf16.mxu0 %v2569
    %3755 = vmatpush1.bf16.msra.mxu0 %v2568
    %3756 = vmatprep.subr.bf16.mxu0 %v2577
    %3757 = vmatpush1.bf16.msra.mxu0 %v2576
    %3758 = vmatprep.subr.bf16.mxu0 %v2585
    %3759 = vmatpush1.bf16.msra.mxu0 %v2584
    %3760 = vmatprep.subr.bf16.mxu0 %v2593
    %3761 = vmatpush1.bf16.msra.mxu0 %v2592
    %3762 = vmatprep.subr.bf16.mxu0 %v2601
    %3763 = vmatpush1.bf16.msra.mxu0 %v2600
    %3764 = vmatprep.subr.bf16.mxu0 %v2609
    %3765 = vmatpush1.bf16.msra.mxu0 %v2608
    %3766 = vmatprep.subr.bf16.mxu0 %v2617
    %3767 = vmatpush1.bf16.msra.mxu0 %v2616
    %3768 = vmatprep.subr.bf16.mxu0 %v2625
    %3769 = vmatpush1.bf16.msra.mxu0 %v2624
    %3770 = vmatprep.subr.bf16.mxu0 %v2633
    %3771 = vmatpush1.bf16.msra.mxu0 %v2632
    %3772 = vmatprep.subr.bf16.mxu0 %v2641
    %3773 = vmatpush1.bf16.msra.mxu0 %v2640
    %3774 = vmatprep.subr.bf16.mxu0 %v2649
    %3775 = vmatpush1.bf16.msra.mxu0 %v2648
    %3776 = vmatprep.subr.bf16.mxu0 %v2657
    %3777 = vmatpush1.bf16.msra.mxu0 %v2656
    %3778 = vmatprep.subr.bf16.mxu0 %v2665
    %3779 = vmatpush1.bf16.msra.mxu0 %v2664
    %3780 = vmatprep.subr.bf16.mxu0 %v2673
    %3781 = vmatpush1.bf16.msra.mxu0 %v2672
    %3782 = vmatprep.subr.bf16.mxu0 %v2681
    %3783 = vmatpush1.bf16.msra.mxu0 %v2680
    %3784 = vmatprep.subr.bf16.mxu0 %v2689
    %3785 = vmatpush1.bf16.msra.mxu0 %v2688
    %3786 = vmatprep.mubr.bf16.mxu0 %v509
    %3787 = vmatmul.mubr.bf16.gmra.mrb[0].mxu0 %v508
    %v3788 = vpop.f32.mrb[0].mxu0
    %v3789 = vadd.f32 0.0, %v3788
    %v3790 = vpop.f32.mrb[0].mxu0
    %v3791 = vadd.f32 0.0, %v3790
    %v3792 = vpop.f32.mrb[0].mxu0
    %v3793 = vpop.f32.mrb[0].mxu0
    %3794 = vdwg.mxu0
    %3795 = vmatprep.subr.bf16.mxu0 %v2697
    %3796 = vmatpush1.bf16.msra.mxu0 %v2696
    %3797 = vmatprep.subr.bf16.mxu0 %v2705
    %3798 = vmatpush1.bf16.msra.mxu0 %v2704
    %3799 = vmatprep.subr.bf16.mxu0 %v2713
    %3800 = vmatpush1.bf16.msra.mxu0 %v2712
    %3801 = vmatprep.subr.bf16.mxu0 %v2721
    %3802 = vmatpush1.bf16.msra.mxu0 %v2720
    %3803 = vmatprep.subr.bf16.mxu0 %v2729
    %3804 = vmatpush1.bf16.msra.mxu0 %v2728
    %3805 = vmatprep.subr.bf16.mxu0 %v2737
    %3806 = vmatpush1.bf16.msra.mxu0 %v2736
    %3807 = vmatprep.subr.bf16.mxu0 %v2745
    %3808 = vmatpush1.bf16.msra.mxu0 %v2744
    %3809 = vmatprep.subr.bf16.mxu0 %v2753
    %3810 = vmatpush1.bf16.msra.mxu0 %v2752
    %3811 = vmatprep.subr.bf16.mxu0 %v2761
    %3812 = vmatpush1.bf16.msra.mxu0 %v2760
    %3813 = vmatprep.subr.bf16.mxu0 %v2769
    %3814 = vmatpush1.bf16.msra.mxu0 %v2768
    %3815 = vmatprep.subr.bf16.mxu0 %v2777
    %3816 = vmatpush1.bf16.msra.mxu0 %v2776
    %3817 = vmatprep.subr.bf16.mxu0 %v2785
    %3818 = vmatpush1.bf16.msra.mxu0 %v2784
    %3819 = vmatprep.subr.bf16.mxu0 %v2793
    %3820 = vmatpush1.bf16.msra.mxu0 %v2792
    %3821 = vmatprep.subr.bf16.mxu0 %v2801
    %3822 = vmatpush1.bf16.msra.mxu0 %v2800
    %3823 = vmatprep.subr.bf16.mxu0 %v2809
    %3824 = vmatpush1.bf16.msra.mxu0 %v2808
    %3825 = vmatprep.subr.bf16.mxu0 %v2817
    %3826 = vmatpush1.bf16.msra.mxu0 %v2816
    %3827 = vmatprep.mubr.bf16.mxu0 %v511
    %3828 = vmatmul.mubr.bf16.gmra.mrb[0].mxu0 %v510
    %v3829 = vpop.f32.mrb[0].mxu0
    %v3830 = vadd.f32 %v3789, %v3829
    %v3831 = vpop.f32.mrb[0].mxu0
    %v3832 = vadd.f32 %v3791, %v3831
    %v3833 = vpop.f32.mrb[0].mxu0
    %v3834 = vpop.f32.mrb[0].mxu0
    %3835 = vdwg.mxu0
    %3836 = vmatprep.subr.bf16.mxu0 %v2825
    %3837 = vmatpush1.bf16.msra.mxu0 %v2824
    %3838 = vmatprep.subr.bf16.mxu0 %v2833
    %3839 = vmatpush1.bf16.msra.mxu0 %v2832
    %3840 = vmatprep.subr.bf16.mxu0 %v2841
    %3841 = vmatpush1.bf16.msra.mxu0 %v2840
    %3842 = vmatprep.subr.bf16.mxu0 %v2849
    %3843 = vmatpush1.bf16.msra.mxu0 %v2848
    %3844 = vmatprep.subr.bf16.mxu0 %v2857
    %3845 = vmatpush1.bf16.msra.mxu0 %v2856
    %3846 = vmatprep.subr.bf16.mxu0 %v2865
    %3847 = vmatpush1.bf16.msra.mxu0 %v2864
    %3848 = vmatprep.subr.bf16.mxu0 %v2873
    %3849 = vmatpush1.bf16.msra.mxu0 %v2872
    %3850 = vmatprep.subr.bf16.mxu0 %v2881
    %3851 = vmatpush1.bf16.msra.mxu0 %v2880
    %3852 = vmatprep.subr.bf16.mxu0 %v2889
    %3853 = vmatpush1.bf16.msra.mxu0 %v2888
    %3854 = vmatprep.subr.bf16.mxu0 %v2897
    %3855 = vmatpush1.bf16.msra.mxu0 %v2896
    %3856 = vmatprep.subr.bf16.mxu0 %v2905
    %3857 = vmatpush1.bf16.msra.mxu0 %v2904
    %3858 = vmatprep.subr.bf16.mxu0 %v2913
    %3859 = vmatpush1.bf16.msra.mxu0 %v2912
    %3860 = vmatprep.subr.bf16.mxu0 %v2921
    %3861 = vmatpush1.bf16.msra.mxu0 %v2920
    %3862 = vmatprep.subr.bf16.mxu0 %v2929
    %3863 = vmatpush1.bf16.msra.mxu0 %v2928
    %3864 = vmatprep.subr.bf16.mxu0 %v2937
    %3865 = vmatpush1.bf16.msra.mxu0 %v2936
    %3866 = vmatprep.subr.bf16.mxu0 %v2945
    %3867 = vmatpush1.bf16.msra.mxu0 %v2944
    %3868 = vmatprep.mubr.bf16.mxu0 %v513
    %3869 = vmatmul.mubr.bf16.gmra.mrb[0].mxu0 %v512
    %v3870 = vpop.f32.mrb[0].mxu0
    %v3871 = vadd.f32 %v3830, %v3870
    %v3872 = vpop.f32.mrb[0].mxu0
    %v3873 = vadd.f32 %v3832, %v3872
    %v3874 = vpop.f32.mrb[0].mxu0
    %v3875 = vpop.f32.mrb[0].mxu0
    %3876 = vdwg.mxu0
    %3877 = vmatprep.subr.bf16.mxu0 %v2953
    %3878 = vmatpush1.bf16.msra.mxu0 %v2952
    %3879 = vmatprep.subr.bf16.mxu0 %v2961
    %3880 = vmatpush1.bf16.msra.mxu0 %v2960
    %3881 = vmatprep.subr.bf16.mxu0 %v2969
    %3882 = vmatpush1.bf16.msra.mxu0 %v2968
    %3883 = vmatprep.subr.bf16.mxu0 %v2977
    %3884 = vmatpush1.bf16.msra.mxu0 %v2976
    %3885 = vmatprep.subr.bf16.mxu0 %v2985
    %3886 = vmatpush1.bf16.msra.mxu0 %v2984
    %3887 = vmatprep.subr.bf16.mxu0 %v2993
    %3888 = vmatpush1.bf16.msra.mxu0 %v2992
    %3889 = vmatprep.subr.bf16.mxu0 %v3001
    %3890 = vmatpush1.bf16.msra.mxu0 %v3000
    %3891 = vmatprep.subr.bf16.mxu0 %v3009
    %3892 = vmatpush1.bf16.msra.mxu0 %v3008
    %3893 = vmatprep.subr.bf16.mxu0 %v3017
    %3894 = vmatpush1.bf16.msra.mxu0 %v3016
    %3895 = vmatprep.subr.bf16.mxu0 %v3025
    %3896 = vmatpush1.bf16.msra.mxu0 %v3024
    %3897 = vmatprep.subr.bf16.mxu0 %v3033
    %3898 = vmatpush1.bf16.msra.mxu0 %v3032
    %3899 = vmatprep.subr.bf16.mxu0 %v3041
    %3900 = vmatpush1.bf16.msra.mxu0 %v3040
    %3901 = vmatprep.subr.bf16.mxu0 %v3049
    %3902 = vmatpush1.bf16.msra.mxu0 %v3048
    %3903 = vmatprep.subr.bf16.mxu0 %v3057
    %3904 = vmatpush1.bf16.msra.mxu0 %v3056
    %3905 = vmatprep.subr.bf16.mxu0 %v3065
    %3906 = vmatpush1.bf16.msra.mxu0 %v3064
    %3907 = vmatprep.subr.bf16.mxu0 %v3073
    %3908 = vmatpush1.bf16.msra.mxu0 %v3072
    %3909 = vmatprep.mubr.bf16.mxu0 %v515
    %3910 = vmatmul.mubr.bf16.gmra.mrb[0].mxu0 %v514
    %v3911 = vpop.f32.mrb[0].mxu0
    %v3912 = vadd.f32 %v3871, %v3911
    %v3913 = vpop.f32.mrb[0].mxu0
    %v3914 = vadd.f32 %v3873, %v3913
    %v3915 = vpop.f32.mrb[0].mxu0
    %v3916 = vpop.f32.mrb[0].mxu0
    %3917 = vdwg.mxu0
    %3918 = vmatprep.subr.bf16.mxu0 %v2571
    %3919 = vmatpush1.bf16.msra.mxu0 %v2570
    %3920 = vmatprep.subr.bf16.mxu0 %v2579
    %3921 = vmatpush1.bf16.msra.mxu0 %v2578
    %3922 = vmatprep.subr.bf16.mxu0 %v2587
    %3923 = vmatpush1.bf16.msra.mxu0 %v2586
    %3924 = vmatprep.subr.bf16.mxu0 %v2595
    %3925 = vmatpush1.bf16.msra.mxu0 %v2594
    %3926 = vmatprep.subr.bf16.mxu0 %v2603
    %3927 = vmatpush1.bf16.msra.mxu0 %v2602
    %3928 = vmatprep.subr.bf16.mxu0 %v2611
    %3929 = vmatpush1.bf16.msra.mxu0 %v2610
    %3930 = vmatprep.subr.bf16.mxu0 %v2619
    %3931 = vmatpush1.bf16.msra.mxu0 %v2618
    %3932 = vmatprep.subr.bf16.mxu0 %v2627
    %3933 = vmatpush1.bf16.msra.mxu0 %v2626
    %3934 = vmatprep.subr.bf16.mxu0 %v2635
    %3935 = vmatpush1.bf16.msra.mxu0 %v2634
    %3936 = vmatprep.subr.bf16.mxu0 %v2643
    %3937 = vmatpush1.bf16.msra.mxu0 %v2642
    %3938 = vmatprep.subr.bf16.mxu0 %v2651
    %3939 = vmatpush1.bf16.msra.mxu0 %v2650
    %3940 = vmatprep.subr.bf16.mxu0 %v2659
    %3941 = vmatpush1.bf16.msra.mxu0 %v2658
    %3942 = vmatprep.subr.bf16.mxu0 %v2667
    %3943 = vmatpush1.bf16.msra.mxu0 %v2666
    %3944 = vmatprep.subr.bf16.mxu0 %v2675
    %3945 = vmatpush1.bf16.msra.mxu0 %v2674
    %3946 = vmatprep.subr.bf16.mxu0 %v2683
    %3947 = vmatpush1.bf16.msra.mxu0 %v2682
    %3948 = vmatprep.subr.bf16.mxu0 %v2691
    %3949 = vmatpush1.bf16.msra.mxu0 %v2690
    %3950 = vmatprep.mubr.bf16.mxu0 %v509
    %3951 = vmatmul.mubr.bf16.gmra.mrb[0].mxu0 %v508
    %v3952 = vpop.f32.mrb[0].mxu0
    %v3953 = vadd.f32 0.0, %v3952
    %v3954 = vpop.f32.mrb[0].mxu0
    %v3955 = vadd.f32 0.0, %v3954
    %v3956 = vpop.f32.mrb[0].mxu0
    %v3957 = vpop.f32.mrb[0].mxu0
    %3958 = vdwg.mxu0
    %3959 = vmatprep.subr.bf16.mxu0 %v2699
    %3960 = vmatpush1.bf16.msra.mxu0 %v2698
    %3961 = vmatprep.subr.bf16.mxu0 %v2707
    %3962 = vmatpush1.bf16.msra.mxu0 %v2706
    %3963 = vmatprep.subr.bf16.mxu0 %v2715
    %3964 = vmatpush1.bf16.msra.mxu0 %v2714
    %3965 = vmatprep.subr.bf16.mxu0 %v2723
    %3966 = vmatpush1.bf16.msra.mxu0 %v2722
    %3967 = vmatprep.subr.bf16.mxu0 %v2731
    %3968 = vmatpush1.bf16.msra.mxu0 %v2730
    %3969 = vmatprep.subr.bf16.mxu0 %v2739
    %3970 = vmatpush1.bf16.msra.mxu0 %v2738
    %3971 = vmatprep.subr.bf16.mxu0 %v2747
    %3972 = vmatpush1.bf16.msra.mxu0 %v2746
    %3973 = vmatprep.subr.bf16.mxu0 %v2755
    %3974 = vmatpush1.bf16.msra.mxu0 %v2754
    %3975 = vmatprep.subr.bf16.mxu0 %v2763
    %3976 = vmatpush1.bf16.msra.mxu0 %v2762
    %3977 = vmatprep.subr.bf16.mxu0 %v2771
    %3978 = vmatpush1.bf16.msra.mxu0 %v2770
    %3979 = vmatprep.subr.bf16.mxu0 %v2779
    %3980 = vmatpush1.bf16.msra.mxu0 %v2778
    %3981 = vmatprep.subr.bf16.mxu0 %v2787
    %3982 = vmatpush1.bf16.msra.mxu0 %v2786
    %3983 = vmatprep.subr.bf16.mxu0 %v2795
    %3984 = vmatpush1.bf16.msra.mxu0 %v2794
    %3985 = vmatprep.subr.bf16.mxu0 %v2803
    %3986 = vmatpush1.bf16.msra.mxu0 %v2802
    %3987 = vmatprep.subr.bf16.mxu0 %v2811
    %3988 = vmatpush1.bf16.msra.mxu0 %v2810
    %3989 = vmatprep.subr.bf16.mxu0 %v2819
    %3990 = vmatpush1.bf16.msra.mxu0 %v2818
    %3991 = vmatprep.mubr.bf16.mxu0 %v511
    %3992 = vmatmul.mubr.bf16.gmra.mrb[0].mxu0 %v510
    %v3993 = vpop.f32.mrb[0].mxu0
    %v3994 = vadd.f32 %v3953, %v3993
    %v3995 = vpop.f32.mrb[0].mxu0
    %v3996 = vadd.f32 %v3955, %v3995
    %v3997 = vpop.f32.mrb[0].mxu0
    %v3998 = vpop.f32.mrb[0].mxu0
    %3999 = vdwg.mxu0
    %4000 = vmatprep.subr.bf16.mxu0 %v2827
    %4001 = vmatpush1.bf16.msra.mxu0 %v2826
    %4002 = vmatprep.subr.bf16.mxu0 %v2835
    %4003 = vmatpush1.bf16.msra.mxu0 %v2834
    %4004 = vmatprep.subr.bf16.mxu0 %v2843
    %4005 = vmatpush1.bf16.msra.mxu0 %v2842
    %4006 = vmatprep.subr.bf16.mxu0 %v2851
    %4007 = vmatpush1.bf16.msra.mxu0 %v2850
    %4008 = vmatprep.subr.bf16.mxu0 %v2859
    %4009 = vmatpush1.bf16.msra.mxu0 %v2858
    %4010 = vmatprep.subr.bf16.mxu0 %v2867
    %4011 = vmatpush1.bf16.msra.mxu0 %v2866
    %4012 = vmatprep.subr.bf16.mxu0 %v2875
    %4013 = vmatpush1.bf16.msra.mxu0 %v2874
    %4014 = vmatprep.subr.bf16.mxu0 %v2883
    %4015 = vmatpush1.bf16.msra.mxu0 %v2882
    %4016 = vmatprep.subr.bf16.mxu0 %v2891
    %4017 = vmatpush1.bf16.msra.mxu0 %v2890
    %4018 = vmatprep.subr.bf16.mxu0 %v2899
    %4019 = vmatpush1.bf16.msra.mxu0 %v2898
    %4020 = vmatprep.subr.bf16.mxu0 %v2907
    %4021 = vmatpush1.bf16.msra.mxu0 %v2906
    %4022 = vmatprep.subr.bf16.mxu0 %v2915
    %4023 = vmatpush1.bf16.msra.mxu0 %v2914
    %4024 = vmatprep.subr.bf16.mxu0 %v2923
    %4025 = vmatpush1.bf16.msra.mxu0 %v2922
    %4026 = vmatprep.subr.bf16.mxu0 %v2931
    %4027 = vmatpush1.bf16.msra.mxu0 %v2930
    %4028 = vmatprep.subr.bf16.mxu0 %v2939
    %4029 = vmatpush1.bf16.msra.mxu0 %v2938
    %4030 = vmatprep.subr.bf16.mxu0 %v2947
    %4031 = vmatpush1.bf16.msra.mxu0 %v2946
    %4032 = vmatprep.mubr.bf16.mxu0 %v513
    %4033 = vmatmul.mubr.bf16.gmra.mrb[0].mxu0 %v512
    %v4034 = vpop.f32.mrb[0].mxu0
    %v4035 = vadd.f32 %v3994, %v4034
    %v4036 = vpop.f32.mrb[0].mxu0
    %v4037 = vadd.f32 %v3996, %v4036
    %v4038 = vpop.f32.mrb[0].mxu0
    %v4039 = vpop.f32.mrb[0].mxu0
    %4040 = vdwg.mxu0
    %4041 = vmatprep.subr.bf16.mxu0 %v2955
    %4042 = vmatpush1.bf16.msra.mxu0 %v2954
    %4043 = vmatprep.subr.bf16.mxu0 %v2963
    %4044 = vmatpush1.bf16.msra.mxu0 %v2962
    %4045 = vmatprep.subr.bf16.mxu0 %v2971
    %4046 = vmatpush1.bf16.msra.mxu0 %v2970
    %4047 = vmatprep.subr.bf16.mxu0 %v2979
    %4048 = vmatpush1.bf16.msra.mxu0 %v2978
    %4049 = vmatprep.subr.bf16.mxu0 %v2987
    %4050 = vmatpush1.bf16.msra.mxu0 %v2986
    %4051 = vmatprep.subr.bf16.mxu0 %v2995
    %4052 = vmatpush1.bf16.msra.mxu0 %v2994
    %4053 = vmatprep.subr.bf16.mxu0 %v3003
    %4054 = vmatpush1.bf16.msra.mxu0 %v3002
    %4055 = vmatprep.subr.bf16.mxu0 %v3011
    %4056 = vmatpush1.bf16.msra.mxu0 %v3010
    %4057 = vmatprep.subr.bf16.mxu0 %v3019
    %4058 = vmatpush1.bf16.msra.mxu0 %v3018
    %4059 = vmatprep.subr.bf16.mxu0 %v3027
    %4060 = vmatpush1.bf16.msra.mxu0 %v3026
    %4061 = vmatprep.subr.bf16.mxu0 %v3035
    %4062 = vmatpush1.bf16.msra.mxu0 %v3034
    %4063 = vmatprep.subr.bf16.mxu0 %v3043
    %4064 = vmatpush1.bf16.msra.mxu0 %v3042
    %4065 = vmatprep.subr.bf16.mxu0 %v3051
    %4066 = vmatpush1.bf16.msra.mxu0 %v3050
    %4067 = vmatprep.subr.bf16.mxu0 %v3059
    %4068 = vmatpush1.bf16.msra.mxu0 %v3058
    %4069 = vmatprep.subr.bf16.mxu0 %v3067
    %4070 = vmatpush1.bf16.msra.mxu0 %v3066
    %4071 = vmatprep.subr.bf16.mxu0 %v3075
    %4072 = vmatpush1.bf16.msra.mxu0 %v3074
    %4073 = vmatprep.mubr.bf16.mxu0 %v515
    %4074 = vmatmul.mubr.bf16.gmra.mrb[0].mxu0 %v514
    %v4075 = vpop.f32.mrb[0].mxu0
    %v4076 = vadd.f32 %v4035, %v4075
    %v4077 = vpop.f32.mrb[0].mxu0
    %v4078 = vadd.f32 %v4037, %v4077
    %v4079 = vpop.f32.mrb[0].mxu0
    %v4080 = vpop.f32.mrb[0].mxu0
    %4081 = vdwg.mxu0
    %4082 = vmatprep.subr.bf16.mxu0 %v2573
    %4083 = vmatpush1.bf16.msra.mxu0 %v2572
    %4084 = vmatprep.subr.bf16.mxu0 %v2581
    %4085 = vmatpush1.bf16.msra.mxu0 %v2580
    %4086 = vmatprep.subr.bf16.mxu0 %v2589
    %4087 = vmatpush1.bf16.msra.mxu0 %v2588
    %4088 = vmatprep.subr.bf16.mxu0 %v2597
    %4089 = vmatpush1.bf16.msra.mxu0 %v2596
    %4090 = vmatprep.subr.bf16.mxu0 %v2605
    %4091 = vmatpush1.bf16.msra.mxu0 %v2604
    %4092 = vmatprep.subr.bf16.mxu0 %v2613
    %4093 = vmatpush1.bf16.msra.mxu0 %v2612
    %4094 = vmatprep.subr.bf16.mxu0 %v2621
    %4095 = vmatpush1.bf16.msra.mxu0 %v2620
    %4096 = vmatprep.subr.bf16.mxu0 %v2629
    %4097 = vmatpush1.bf16.msra.mxu0 %v2628
    %4098 = vmatprep.subr.bf16.mxu0 %v2637
    %4099 = vmatpush1.bf16.msra.mxu0 %v2636
    %4100 = vmatprep.subr.bf16.mxu0 %v2645
    %4101 = vmatpush1.bf16.msra.mxu0 %v2644
    %4102 = vmatprep.subr.bf16.mxu0 %v2653
    %4103 = vmatpush1.bf16.msra.mxu0 %v2652
    %4104 = vmatprep.subr.bf16.mxu0 %v2661
    %4105 = vmatpush1.bf16.msra.mxu0 %v2660
    %4106 = vmatprep.subr.bf16.mxu0 %v2669
    %4107 = vmatpush1.bf16.msra.mxu0 %v2668
    %4108 = vmatprep.subr.bf16.mxu0 %v2677
    %4109 = vmatpush1.bf16.msra.mxu0 %v2676
    %4110 = vmatprep.subr.bf16.mxu0 %v2685
    %4111 = vmatpush1.bf16.msra.mxu0 %v2684
    %4112 = vmatprep.subr.bf16.mxu0 %v2693
    %4113 = vmatpush1.bf16.msra.mxu0 %v2692
    %4114 = vmatprep.mubr.bf16.mxu0 %v509
    %4115 = vmatmul.mubr.bf16.gmra.mrb[0].mxu0 %v508
    %v4116 = vpop.f32.mrb[0].mxu0
    %v4117 = vadd.f32 0.0, %v4116
    %v4118 = vpop.f32.mrb[0].mxu0
    %v4119 = vadd.f32 0.0, %v4118
    %v4120 = vpop.f32.mrb[0].mxu0
    %v4121 = vpop.f32.mrb[0].mxu0
    %4122 = vdwg.mxu0
    %4123 = vmatprep.subr.bf16.mxu0 %v2701
    %4124 = vmatpush1.bf16.msra.mxu0 %v2700
    %4125 = vmatprep.subr.bf16.mxu0 %v2709
    %4126 = vmatpush1.bf16.msra.mxu0 %v2708
    %4127 = vmatprep.subr.bf16.mxu0 %v2717
    %4128 = vmatpush1.bf16.msra.mxu0 %v2716
    %4129 = vmatprep.subr.bf16.mxu0 %v2725
    %4130 = vmatpush1.bf16.msra.mxu0 %v2724
    %4131 = vmatprep.subr.bf16.mxu0 %v2733
    %4132 = vmatpush1.bf16.msra.mxu0 %v2732
    %4133 = vmatprep.subr.bf16.mxu0 %v2741
    %4134 = vmatpush1.bf16.msra.mxu0 %v2740
    %4135 = vmatprep.subr.bf16.mxu0 %v2749
    %4136 = vmatpush1.bf16.msra.mxu0 %v2748
    %4137 = vmatprep.subr.bf16.mxu0 %v2757
    %4138 = vmatpush1.bf16.msra.mxu0 %v2756
    %4139 = vmatprep.subr.bf16.mxu0 %v2765
    %4140 = vmatpush1.bf16.msra.mxu0 %v2764
    %4141 = vmatprep.subr.bf16.mxu0 %v2773
    %4142 = vmatpush1.bf16.msra.mxu0 %v2772
    %4143 = vmatprep.subr.bf16.mxu0 %v2781
    %4144 = vmatpush1.bf16.msra.mxu0 %v2780
    %4145 = vmatprep.subr.bf16.mxu0 %v2789
    %4146 = vmatpush1.bf16.msra.mxu0 %v2788
    %4147 = vmatprep.subr.bf16.mxu0 %v2797
    %4148 = vmatpush1.bf16.msra.mxu0 %v2796
    %4149 = vmatprep.subr.bf16.mxu0 %v2805
    %4150 = vmatpush1.bf16.msra.mxu0 %v2804
    %4151 = vmatprep.subr.bf16.mxu0 %v2813
    %4152 = vmatpush1.bf16.msra.mxu0 %v2812
    %4153 = vmatprep.subr.bf16.mxu0 %v2821
    %4154 = vmatpush1.bf16.msra.mxu0 %v2820
    %4155 = vmatprep.mubr.bf16.mxu0 %v511
    %4156 = vmatmul.mubr.bf16.gmra.mrb[0].mxu0 %v510
    %v4157 = vpop.f32.mrb[0].mxu0
    %v4158 = vadd.f32 %v4117, %v4157
    %v4159 = vpop.f32.mrb[0].mxu0
    %v4160 = vadd.f32 %v4119, %v4159
    %v4161 = vpop.f32.mrb[0].mxu0
    %v4162 = vpop.f32.mrb[0].mxu0
    %4163 = vdwg.mxu0
    %4164 = vmatprep.subr.bf16.mxu0 %v2829
    %4165 = vmatpush1.bf16.msra.mxu0 %v2828
    %4166 = vmatprep.subr.bf16.mxu0 %v2837
    %4167 = vmatpush1.bf16.msra.mxu0 %v2836
    %4168 = vmatprep.subr.bf16.mxu0 %v2845
    %4169 = vmatpush1.bf16.msra.mxu0 %v2844
    %4170 = vmatprep.subr.bf16.mxu0 %v2853
    %4171 = vmatpush1.bf16.msra.mxu0 %v2852
    %4172 = vmatprep.subr.bf16.mxu0 %v2861
    %4173 = vmatpush1.bf16.msra.mxu0 %v2860
    %4174 = vmatprep.subr.bf16.mxu0 %v2869
    %4175 = vmatpush1.bf16.msra.mxu0 %v2868
    %4176 = vmatprep.subr.bf16.mxu0 %v2877
    %4177 = vmatpush1.bf16.msra.mxu0 %v2876
    %4178 = vmatprep.subr.bf16.mxu0 %v2885
    %4179 = vmatpush1.bf16.msra.mxu0 %v2884
    %4180 = vmatprep.subr.bf16.mxu0 %v2893
    %4181 = vmatpush1.bf16.msra.mxu0 %v2892
    %4182 = vmatprep.subr.bf16.mxu0 %v2901
    %4183 = vmatpush1.bf16.msra.mxu0 %v2900
    %4184 = vmatprep.subr.bf16.mxu0 %v2909
    %4185 = vmatpush1.bf16.msra.mxu0 %v2908
    %4186 = vmatprep.subr.bf16.mxu0 %v2917
    %4187 = vmatpush1.bf16.msra.mxu0 %v2916
    %4188 = vmatprep.subr.bf16.mxu0 %v2925
    %4189 = vmatpush1.bf16.msra.mxu0 %v2924
    %4190 = vmatprep.subr.bf16.mxu0 %v2933
    %4191 = vmatpush1.bf16.msra.mxu0 %v2932
    %4192 = vmatprep.subr.bf16.mxu0 %v2941
    %4193 = vmatpush1.bf16.msra.mxu0 %v2940
    %4194 = vmatprep.subr.bf16.mxu0 %v2949
    %4195 = vmatpush1.bf16.msra.mxu0 %v2948
    %4196 = vmatprep.mubr.bf16.mxu0 %v513
    %4197 = vmatmul.mubr.bf16.gmra.mrb[0].mxu0 %v512
    %v4198 = vpop.f32.mrb[0].mxu0
    %v4199 = vadd.f32 %v4158, %v4198
    %v4200 = vpop.f32.mrb[0].mxu0
    %v4201 = vadd.f32 %v4160, %v4200
    %v4202 = vpop.f32.mrb[0].mxu0
    %v4203 = vpop.f32.mrb[0].mxu0
    %4204 = vdwg.mxu0
    %4205 = vmatprep.subr.bf16.mxu0 %v2957
    %4206 = vmatpush1.bf16.msra.mxu0 %v2956
    %4207 = vmatprep.subr.bf16.mxu0 %v2965
    %4208 = vmatpush1.bf16.msra.mxu0 %v2964
    %4209 = vmatprep.subr.bf16.mxu0 %v2973
    %4210 = vmatpush1.bf16.msra.mxu0 %v2972
    %4211 = vmatprep.subr.bf16.mxu0 %v2981
    %4212 = vmatpush1.bf16.msra.mxu0 %v2980
    %4213 = vmatprep.subr.bf16.mxu0 %v2989
    %4214 = vmatpush1.bf16.msra.mxu0 %v2988
    %4215 = vmatprep.subr.bf16.mxu0 %v2997
    %4216 = vmatpush1.bf16.msra.mxu0 %v2996
    %4217 = vmatprep.subr.bf16.mxu0 %v3005
    %4218 = vmatpush1.bf16.msra.mxu0 %v3004
    %4219 = vmatprep.subr.bf16.mxu0 %v3013
    %4220 = vmatpush1.bf16.msra.mxu0 %v3012
    %4221 = vmatprep.subr.bf16.mxu0 %v3021
    %4222 = vmatpush1.bf16.msra.mxu0 %v3020
    %4223 = vmatprep.subr.bf16.mxu0 %v3029
    %4224 = vmatpush1.bf16.msra.mxu0 %v3028
    %4225 = vmatprep.subr.bf16.mxu0 %v3037
    %4226 = vmatpush1.bf16.msra.mxu0 %v3036
    %4227 = vmatprep.subr.bf16.mxu0 %v3045
    %4228 = vmatpush1.bf16.msra.mxu0 %v3044
    %4229 = vmatprep.subr.bf16.mxu0 %v3053
    %4230 = vmatpush1.bf16.msra.mxu0 %v3052
    %4231 = vmatprep.subr.bf16.mxu0 %v3061
    %4232 = vmatpush1.bf16.msra.mxu0 %v3060
    %4233 = vmatprep.subr.bf16.mxu0 %v3069
    %4234 = vmatpush1.bf16.msra.mxu0 %v3068
    %4235 = vmatprep.subr.bf16.mxu0 %v3077
    %4236 = vmatpush1.bf16.msra.mxu0 %v3076
    %4237 = vmatprep.mubr.bf16.mxu0 %v515
    %4238 = vmatmul.mubr.bf16.gmra.mrb[0].mxu0 %v514
    %v4239 = vpop.f32.mrb[0].mxu0
    %v4240 = vadd.f32 %v4199, %v4239
    %v4241 = vpop.f32.mrb[0].mxu0
    %v4242 = vadd.f32 %v4201, %v4241
    %v4243 = vpop.f32.mrb[0].mxu0
    %v4244 = vpop.f32.mrb[0].mxu0
    %4245 = vdwg.mxu0
    %v4254 = vcombine.low %v3748, %v3750
    %v4255 = vcombine.low %v3912, %v3914
    %v4257 = vunpack.c.l.s4 1983009808
    %v4258 = vunpack.c.0.s8 %v4257
    %v4259 = vlaneseq
    %v4260 = vshrl.u32 %v4259, 7
    %v4261 = vsub.s32 %v4258, %v4260
    %v4262 = vrot.slane %v4254, %v4261
    %v4264 = vunpack.c.l.s4 1983009808
    %v4265 = vunpack.c.0.s8 %v4264
    %v4266 = vlaneseq
    %v4267 = vshrl.u32 %v4266, 7
    %v4268 = vsub.s32 %v4265, %v4267
    %v4269 = vrot.slane %v4255, %v4268
    %v4270 = vcombine.low %v4262, %v4269
    %v4271 = vcombine.low %v4076, %v4078
    %v4272 = vcombine.low %v4240, %v4242
    %v4274 = vunpack.c.l.s4 1983009808
    %v4275 = vunpack.c.0.s8 %v4274
    %v4276 = vlaneseq
    %v4277 = vshrl.u32 %v4276, 7
    %v4278 = vsub.s32 %v4275, %v4277
    %v4279 = vrot.slane %v4271, %v4278
    %v4281 = vunpack.c.l.s4 1983009808
    %v4282 = vunpack.c.0.s8 %v4281
    %v4283 = vlaneseq
    %v4284 = vshrl.u32 %v4283, 7
    %v4285 = vsub.s32 %v4282, %v4284
    %v4286 = vrot.slane %v4272, %v4285
    %v4287 = vcombine.low %v4279, %v4286
    %v4290 = vadd.f32 %v516, %v4270
    %v4291 = vadd.f32 %v517, %v4287
    %4292 = vst [vmem:[#allocation2] sm:$0xff] %v4290
    %4293 = vst [vmem:[#allocation2 + $0x8] sm:$0xff] %v4291
    // Predicated region
    $region38: #{flow_match_loss.1} parent=1 // pred_check
      %p4294 = pneg %p53
    $region39: #{flow_match_loss.1} parent=1 // pred_check_branch
      %4296 = sbr.rel (%p4294) target = $region41
    $region40: #{flow_match_loss.1} parent=1 // pred_region
      %s4297 = smul.u32 0, 1024
      %s4298 = sshra.s32 %s4297, 7
      %s4299 = sand.u32 %s4297, 127
      %s4300 = smul.addr %s4298, 2
      %s4301 = scalar_lea.vmem %s1, %s4300
      %v4302 = vld [vmem:[%s4301] sm:$0xff]
      %v4303 = vld [vmem:[%s4301 + $0x8] sm:$0xff]
      %s4304 = smul.addr %s4298, 2
      %s4305 = scalar_lea.vmem %s2, %s4304
      %v4306 = vld [vmem:[%s4305] sm:$0xff]
      %v4307 = vld [vmem:[%s4305 + $0x8] sm:$0xff]
      %v4308 = vmul.f32 %v4306, 0.9999
      %v4309 = vmul.f32 %v4307, 0.9999
      %v4310 = vsub.f32 %v4302, %v4308
      %v4311 = vsub.f32 %v4303, %v4309
      %v4312 = vld [vmem:[#allocation2] sm:$0xff]
      %v4313 = vld [vmem:[#allocation2 + $0x8] sm:$0xff]
      %v4314 = vsub.f32 %v4312, %v4310
      %v4315 = vsub.f32 %v4313, %v4311
      %v4316 = vmul.f32 %v4314, %v4314
      %v4317 = vmul.f32 %v4315, %v4315
      %v4320 = vcombine.high %v4316, %v4316
      %v4322 = vunpack.c.l.s4 1983009808
      %v4323 = vunpack.c.0.s8 %v4322
      %v4324 = vlaneseq
      %v4325 = vshrl.u32 %v4324, 7
      %v4326 = vsub.s32 %v4323, %v4325
      %v4327 = vrot.slane %v4316, %v4326
      %v4329 = vunpack.c.l.s4 1983009808
      %v4330 = vunpack.c.0.s8 %v4329
      %v4331 = vlaneseq
      %v4332 = vshrl.u32 %v4331, 7
      %v4333 = vsub.s32 %v4330, %v4332
      %v4334 = vrot.slane %v4320, %v4333
      %v4335 = vcombine.high %v4327, %v4327
      %v4336 = vcombine.high %v4334, %v4334
      %v4337 = vcombine.high %v4317, %v4317
      %v4339 = vunpack.c.l.s4 1983009808
      %v4340 = vunpack.c.0.s8 %v4339
      %v4341 = vlaneseq
      %v4342 = vshrl.u32 %v4341, 7
      %v4343 = vsub.s32 %v4340, %v4342
      %v4344 = vrot.slane %v4317, %v4343
      %v4346 = vunpack.c.l.s4 1983009808
      %v4347 = vunpack.c.0.s8 %v4346
      %v4348 = vlaneseq
      %v4349 = vshrl.u32 %v4348, 7
      %v4350 = vsub.s32 %v4347, %v4349
      %v4351 = vrot.slane %v4337, %v4350
      %v4352 = vcombine.high %v4344, %v4344
      %v4353 = vcombine.high %v4351, %v4351
      %vm4362 = vcmask 1041408
      %v4363 = vsel %vm4362, %v4327, 0.0
      %v4364 = vrot.slane %v4363, 4
      %v4365 = vadd.f32 %v4363, %v4364
      %v4366 = vrot.slane %v4365, 2
      %v4367 = vadd.f32 %v4365, %v4366
      %v4368 = vrot.slane %v4367, 1
      %v4369 = vadd.f32 %v4367, %v4368
      %v4370 = vsel %vm4362, %v4335, 0.0
      %v4371 = vrot.slane %v4370, 4
      %v4372 = vadd.f32 %v4370, %v4371
      %v4373 = vrot.slane %v4372, 2
      %v4374 = vadd.f32 %v4372, %v4373
      %v4375 = vrot.slane %v4374, 1
      %v4376 = vadd.f32 %v4374, %v4375
      %v4377 = vsel %vm4362, %v4334, 0.0
      %v4378 = vrot.slane %v4377, 4
      %v4379 = vadd.f32 %v4377, %v4378
      %v4380 = vrot.slane %v4379, 2
      %v4381 = vadd.f32 %v4379, %v4380
      %v4382 = vrot.slane %v4381, 1
      %v4383 = vadd.f32 %v4381, %v4382
      %v4384 = vsel %vm4362, %v4336, 0.0
      %v4385 = vrot.slane %v4384, 4
      %v4386 = vadd.f32 %v4384, %v4385
      %v4387 = vrot.slane %v4386, 2
      %v4388 = vadd.f32 %v4386, %v4387
      %v4389 = vrot.slane %v4388, 1
      %v4390 = vadd.f32 %v4388, %v4389
      %v4391 = vsel %vm4362, %v4344, 0.0
      %v4392 = vrot.slane %v4391, 4
      %v4393 = vadd.f32 %v4391, %v4392
      %v4394 = vrot.slane %v4393, 2
      %v4395 = vadd.f32 %v4393, %v4394
      %v4396 = vrot.slane %v4395, 1
      %v4397 = vadd.f32 %v4395, %v4396
      %v4398 = vsel %vm4362, %v4352, 0.0
      %v4399 = vrot.slane %v4398, 4
      %v4400 = vadd.f32 %v4398, %v4399
      %v4401 = vrot.slane %v4400, 2
      %v4402 = vadd.f32 %v4400, %v4401
      %v4403 = vrot.slane %v4402, 1
      %v4404 = vadd.f32 %v4402, %v4403
      %v4405 = vsel %vm4362, %v4351, 0.0
      %v4406 = vrot.slane %v4405, 4
      %v4407 = vadd.f32 %v4405, %v4406
      %v4408 = vrot.slane %v4407, 2
      %v4409 = vadd.f32 %v4407, %v4408
      %v4410 = vrot.slane %v4409, 1
      %v4411 = vadd.f32 %v4409, %v4410
      %v4412 = vsel %vm4362, %v4353, 0.0
      %v4413 = vrot.slane %v4412, 4
      %v4414 = vadd.f32 %v4412, %v4413
      %v4415 = vrot.slane %v4414, 2
      %v4416 = vadd.f32 %v4414, %v4415
      %v4417 = vrot.slane %v4416, 1
      %v4418 = vadd.f32 %v4416, %v4417
      %v4427 = vcombine.low %v4369, %v4376
      %v4428 = vcombine.low %v4383, %v4390
      %v4429 = vcombine.low %v4397, %v4404
      %v4430 = vcombine.low %v4411, %v4418
      %v4432 = vunpack.c.l.s4 1966171168
      %v4433 = vunpack.c.0.s8 %v4432
      %v4434 = vlaneseq
      %v4435 = vshrl.u32 %v4434, 7
      %v4436 = vsub.s32 %v4433, %v4435
      %v4437 = vrot.slane %v4427, %v4436
      %v4439 = vunpack.c.l.s4 1966171168
      %v4440 = vunpack.c.0.s8 %v4439
      %v4441 = vlaneseq
      %v4442 = vshrl.u32 %v4441, 7
      %v4443 = vsub.s32 %v4440, %v4442
      %v4444 = vrot.slane %v4428, %v4443
      %v4446 = vunpack.c.l.s4 1966171168
      %v4447 = vunpack.c.0.s8 %v4446
      %v4448 = vlaneseq
      %v4449 = vshrl.u32 %v4448, 7
      %v4450 = vsub.s32 %v4447, %v4449
      %v4451 = vrot.slane %v4429, %v4450
      %v4453 = vunpack.c.l.s4 1966171168
      %v4454 = vunpack.c.0.s8 %v4453
      %v4455 = vlaneseq
      %v4456 = vshrl.u32 %v4455, 7
      %v4457 = vsub.s32 %v4454, %v4456
      %v4458 = vrot.slane %v4430, %v4457
      %v4459 = vcombine.low %v4437, %v4444
      %v4460 = vcombine.low %v4451, %v4458
      %v4462 = vunpack.c.l.s4 1966171168
      %v4463 = vunpack.c.0.s8 %v4462
      %v4464 = vlaneseq
      %v4465 = vshrl.u32 %v4464, 7
      %v4466 = vsub.s32 %v4463, %v4465
      %v4467 = vrot.slane %v4459, %v4466
      %v4469 = vunpack.c.l.s4 1966171168
      %v4470 = vunpack.c.0.s8 %v4469
      %v4471 = vlaneseq
      %v4472 = vshrl.u32 %v4471, 7
      %v4473 = vsub.s32 %v4470, %v4472
      %v4474 = vrot.slane %v4460, %v4473
      %v4475 = vcombine.low %v4467, %v4474
      %4477 = vst [vmem:[%s6] sm:$0xff] %v4475
    $region41: #{flow_match_loss.1} parent=1 // pred_fallthru
      _
    // Predicated region
    $region42: #{flow_match_loss.1} parent=1 // pred_check
      _
    $region43: #{flow_match_loss.1} parent=1 // pred_check_branch
      %4479 = sbr.rel (0) target = $region45
    $region44: #{flow_match_loss.1} parent=1 // pred_region
      _
    $region45: #{flow_match_loss.1} parent=1 // pred_fallthru
      _
    // Predicated region
    $region46: #{flow_match_loss.1} parent=1 // pred_check
      _
    $region47: #{flow_match_loss.1} parent=1 // pred_check_branch
      %4481 = sbr.rel (0) target = $region49
    $region48: #{flow_match_loss.1} parent=1 // pred_region
      _
    $region49: #{flow_match_loss.1} parent=1 // pred_fallthru
      _
    %4482 = vsyncpa [#allocation4], 1
    %4483 = vsyncpa [#allocation6], 1

</llo_original>
